<compile_context>
chip_gen: v7x
topology: tpu7x:2x2x1
jax: 0.10.0
libtpu: 0.0.40
codegen_flags: <defaults>
</compile_context>

<pallas_src>
import math
from functools import partial

import jax
import jax.numpy as jnp
from jax.experimental import pallas as pl
from jax.experimental.pallas import tpu as pltpu

LN_EPS = 1e-5  # PyTorch nn.LayerNorm default


# ----------------------------- kernel helpers ------------------------------

def _layernorm(x, w, b):
    # x: (M, C) f32, w/b: (1, C) f32
    mu = jnp.mean(x, axis=-1, keepdims=True)
    var = jnp.mean((x - mu) * (x - mu), axis=-1, keepdims=True)
    return (x - mu) * jax.lax.rsqrt(var + LN_EPS) * w + b


# ------------------------------ fused kernel --------------------------------

def gpt_fused_kernel(x0_ref, vec_ref, wqkv_ref, wp_ref, w1_ref, w2_ref, lnf_ref,
                     out_ref, x_sc, *, n_head):
    """grid = (num_batch_blocks, n_layer).

    x0_ref : (B_blk, T, C) f32   embedded tokens (fetched once per batch block)
    vec_ref: (1, 8, Kmax) f32    packed per-layer vectors (one DMA per layer)
    wqkv/wp/w1/w2: per-layer bf16 matmul weights, streamed along the layer axis
    lnf_ref: (2, C) f32          final LayerNorm weight / bias
    x_sc   : VMEM (B_blk*T, C) f32, carried across the sequential layer axis.
    """
    l = pl.program_id(1)
    B_blk, T, C = x0_ref.shape
    hid = w1_ref.shape[2]
    M = B_blk * T
    hd = C // n_head
    scale = 1.0 / math.sqrt(hd)

    # ---- first layer step of this batch block: load embedded tokens ----
    @pl.when(l == 0)
    def _init():
        x_sc[...] = x0_ref[...].reshape(M, C)

    x = x_sc[...]                                     # (M, C) f32

    # packed per-layer vectors (all rows lane-dense from lane 0)
    vec = vec_ref[0]                                  # (8, Kmax) f32
    ln1w = vec[0:1, :C]
    ln1b = vec[1:2, :C]
    bqkv = vec[2:3, :3 * C]
    bp   = vec[3:4, :C]
    ln2w = vec[4:5, :C]
    ln2b = vec[5:6, :C]
    b1   = vec[6:7, :hid]
    b2   = vec[7:8, :C]

    # ---- attention branch: y = proj(softmax(q k^T / sqrt(d)) v) ----
    h = _layernorm(x, ln1w, ln1b)
    qkv = jnp.dot(h.astype(jnp.bfloat16), wqkv_ref[0],          # fused QKV matmul
                  preferred_element_type=jnp.float32) + bqkv
    qkv = qkv.astype(jnp.bfloat16)                    # (M, 3C)

    dn_score = (((2,), (2,)), ((0,), (0,)))           # (B,T,hd)x(B,S,hd) -> (B,T,S)
    dn_pv    = (((2,), (1,)), ((0,), (0,)))           # (B,T,S)x(B,S,hd) -> (B,T,hd)
    heads = []
    for hh in range(n_head):                          # static head loop (small)
        q_h = qkv[:, hh * hd:(hh + 1) * hd].reshape(B_blk, T, hd)
        k_h = qkv[:, C + hh * hd:C + (hh + 1) * hd].reshape(B_blk, T, hd)
        v_h = qkv[:, 2 * C + hh * hd:2 * C + (hh + 1) * hd].reshape(B_blk, T, hd)
        att = jax.lax.dot_general(q_h, k_h, dn_score,
                                  preferred_element_type=jnp.float32) * scale
        att = att - jnp.max(att, axis=-1, keepdims=True)
        p = jnp.exp(att)
        p = p * pl.reciprocal(jnp.sum(p, axis=-1, keepdims=True), approx=True)
        y_h = jax.lax.dot_general(p.astype(jnp.bfloat16), v_h, dn_pv,
                                  preferred_element_type=jnp.float32)  # (B,T,hd)
        heads.append(y_h.reshape(M, hd).astype(jnp.bfloat16))
    y = jnp.concatenate(heads, axis=-1)               # (M, C) bf16, heads on lanes
    # single K=C projection matmul + residual 1 (attn_drop / resid_drop = id)
    x = x + jnp.dot(y, wp_ref[0], preferred_element_type=jnp.float32) + bp

    # ---- MLP branch: Linear -> ReLU -> Linear ----
    h2 = _layernorm(x, ln2w, ln2b)
    m = jnp.dot(h2.astype(jnp.bfloat16), w1_ref[0],
                preferred_element_type=jnp.float32) + b1
    m = jnp.maximum(m, 0.0)
    m = jnp.dot(m.astype(jnp.bfloat16), w2_ref[0],
                preferred_element_type=jnp.float32) + b2
    x = x + m                                         # residual 2 (dropout = id)

    x_sc[...] = x                                     # carry to next layer

    # ---- last layer: final LayerNorm, lane-dense (B_blk, T, C) store ----
    @pl.when(l == pl.num_programs(1) - 1)
    def _final():
        lnf = lnf_ref[...]                            # (2, C)
        out = _layernorm(x, lnf[0:1, :], lnf[1:2, :])
        out_ref[...] = out.reshape(B_blk, T, C).astype(out_ref.dtype)


# ---------------------------- pallas_call wrapper ----------------------------

def _vmem_limit_bytes(C, hid, B_blk, T, Kmax):
    """Derive the scoped-VMEM limit from actual buffer sizes (v7x-safe)."""
    M = B_blk * T
    w_bytes = 2 * 2 * (3 * C * C + C * C + 2 * C * hid)   # double-buffered bf16 mats
    vec_bytes = 2 * 4 * 8 * Kmax + 4 * 2 * C               # packed vectors + lnf
    io_bytes = 2 * 4 * M * C * 2                            # x0 in + out, double-buffered
    scratch = 4 * M * C                                     # activation carry
    interm = 4 * (3 * M * C + M * hid + B_blk * T * T + 6 * M * C)  # live temporaries
    total = w_bytes + vec_bytes + io_bytes + scratch + interm + (8 << 20)
    return int(min(max(total, 32 << 20), 56 << 20))         # headroom under v7x's 64 MiB


def gpt_forward(image, lidar, velocity, packed, n_head):
    B, C, Hi, Wi = image.shape
    _, _, Hl, Wl = lidar.shape
    Ti, Tl = Hi * Wi, Hl * Wl
    T = Ti + Tl
    L = packed['wqkv'].shape[0]
    hid = packed['w1'].shape[2]
    Kmax = packed['vecs'].shape[2]

    # NCHW -> tokens once in the wrapper (lane-dense C-last layout for the kernel)
    img_tok = jnp.transpose(image.reshape(B, C, Ti), (0, 2, 1))   # (B, Ti, C)
    lid_tok = jnp.transpose(lidar.reshape(B, C, Tl), (0, 2, 1))   # (B, Tl, C)
    tokens = jnp.concatenate([img_tok, lid_tok], axis=1)          # (B, T, C)
    vel_emb = velocity @ packed['vel_w'] + packed['vel_b']        # (B, C)
    x0 = packed['pos_emb'] + tokens + vel_emb[:, None, :]         # drop(embd_pdrop)=id

    # batch blocking: fold B_blk rows into the matmul M dimension; the
    # remaining batch-block axis is the outer "parallel" grid dim (megacore).
    B_blk = 1
    for d in range(1, B + 1):
        if B % d == 0 and d * T <= 512:
            B_blk = d
    NB = B // B_blk
    M = B_blk * T

    wmap = lambda nb, l: (l, 0, 0)       # weights: stream once per layer step
    bmap = lambda nb, l: (nb, 0, 0)      # tokens/out: constant along the layer axis

    out = pl.pallas_call(
        partial(gpt_fused_kernel, n_head=n_head),
        out_shape=jax.ShapeDtypeStruct((B, T, C), jnp.float32),
        grid=(NB, L),
        in_specs=[
            pl.BlockSpec((B_blk, T, C), bmap),        # embedded tokens
            pl.BlockSpec((1, 8, Kmax), wmap),         # packed per-layer vectors
            pl.BlockSpec((1, C, 3 * C), wmap),        # wqkv (bf16)
            pl.BlockSpec((1, C, C), wmap),            # wp   (bf16)
            pl.BlockSpec((1, C, hid), wmap),          # w1   (bf16)
            pl.BlockSpec((1, hid, C), wmap),          # w2   (bf16)
            pl.BlockSpec((2, C), lambda nb, l: (0, 0)),  # final LN w/b
        ],
        out_specs=pl.BlockSpec((B_blk, T, C), bmap),
        scratch_shapes=[pltpu.VMEM((M, C), jnp.float32)],
        compiler_params=pltpu.CompilerParams(
            dimension_semantics=("parallel", "arbitrary"),
            vmem_limit_bytes=_vmem_limit_bytes(C, hid, B_blk, T, Kmax)),
    )(x0, packed['vecs'], packed['wqkv'], packed['wp'],
      packed['w1'], packed['w2'], packed['lnf'])

    # tokens -> NCHW once in the wrapper (kernel output stays lane-dense)
    out_t = jnp.transpose(out, (0, 2, 1))                         # (B, C, T)
    return (out_t[..., :Ti].reshape(image.shape),
            out_t[..., Ti:].reshape(lidar.shape))


# ------------------------------ parameter setup ------------------------------

def init_params(key, n_embd, block_exp, n_layer, seq_len, total_anchors,
                mean=0.0, std=0.02, ln_init=1.0):
    hid = block_exp * n_embd
    params = {}
    params['pos_emb'] = jnp.zeros((1, total_anchors, n_embd), jnp.float32)
    key, k = jax.random.split(key)
    # Linear weights stored as (in, out) = W^T of PyTorch layout.
    params['vel_w'] = mean + std * jax.random.normal(k, (seq_len, n_embd), jnp.float32)
    params['vel_b'] = jnp.zeros((n_embd,), jnp.float32)

    blocks = []
    for _ in range(n_layer):
        blk = {
            'ln1_w': jnp.full((1, n_embd), ln_init, jnp.float32),
            'ln1_b': jnp.zeros((1, n_embd), jnp.float32),
            'ln2_w': jnp.full((1, n_embd), ln_init, jnp.float32),
            'ln2_b': jnp.zeros((1, n_embd), jnp.float32),
            'bq': jnp.zeros((1, n_embd), jnp.float32),
            'bk': jnp.zeros((1, n_embd), jnp.float32),
            'bv': jnp.zeros((1, n_embd), jnp.float32),
            'bp': jnp.zeros((1, n_embd), jnp.float32),
            'b1': jnp.zeros((1, hid), jnp.float32),
            'b2': jnp.zeros((1, n_embd), jnp.float32),
        }
        for name, shape in [('wq', (n_embd, n_embd)), ('wk', (n_embd, n_embd)),
                            ('wv', (n_embd, n_embd)), ('wp', (n_embd, n_embd)),
                            ('w1', (n_embd, hid)), ('w2', (hid, n_embd))]:
            key, k = jax.random.split(key)
            blk[name] = mean + std * jax.random.normal(k, shape, jnp.float32)
        blocks.append(blk)
    params['blocks'] = blocks
    params['lnf_w'] = jnp.full((1, n_embd), ln_init, jnp.float32)
    params['lnf_b'] = jnp.zeros((1, n_embd), jnp.float32)
    return params


def pack_params(params):
    """Stack per-layer weights along a leading layer axis, fuse QKV, bf16 matmul
    weights, coalesce the 8 small per-layer vectors into one (L, 8, Kmax) array."""
    blocks = params['blocks']
    C = params['lnf_w'].shape[1]
    hid = blocks[0]['b1'].shape[1]
    Kmax = max(3 * C, hid)

    def row(v):
        v = v.reshape(-1)
        return jnp.pad(v, (0, Kmax - v.shape[0]))

    vecs, wqkv, wp, w1, w2 = [], [], [], [], []
    for b in blocks:
        bqkv = jnp.concatenate([b['bq'], b['bk'], b['bv']], axis=1)   # (1, 3C)
        vecs.append(jnp.stack([row(b['ln1_w']), row(b['ln1_b']), row(bqkv),
                               row(b['bp']), row(b['ln2_w']), row(b['ln2_b']),
                               row(b['b1']), row(b['b2'])], axis=0))  # (8, Kmax)
        wqkv.append(jnp.concatenate([b['wq'], b['wk'], b['wv']], axis=1))  # (C, 3C)
        wp.append(b['wp']); w1.append(b['w1']); w2.append(b['w2'])

    # NOTE: on v7x the large matmul weights could be stored fp8 (+ per-tensor
    # scale) to halve weight DMA; v5e/v6e MXUs do not take fp8 so bf16 is used.
    return dict(
        pos_emb=params['pos_emb'],
        vel_w=params['vel_w'], vel_b=params['vel_b'],
        vecs=jnp.stack(vecs, 0),                               # (L, 8, Kmax) f32
        wqkv=jnp.stack(wqkv, 0).astype(jnp.bfloat16),          # (L, C, 3C)
        wp=jnp.stack(wp, 0).astype(jnp.bfloat16),              # (L, C, C)
        w1=jnp.stack(w1, 0).astype(jnp.bfloat16),              # (L, C, hid)
        w2=jnp.stack(w2, 0).astype(jnp.bfloat16),              # (L, hid, C)
        lnf=jnp.concatenate([params['lnf_w'], params['lnf_b']], axis=0),  # (2, C)
    )


# -------------------------- pure-JAX reference check --------------------------

def _ref_ln(x, w, b):
    mu = jnp.mean(x, axis=-1, keepdims=True)
    var = jnp.mean((x - mu) ** 2, axis=-1, keepdims=True)
    return (x - mu) / jnp.sqrt(var + LN_EPS) * w + b


def ref_forward(image, lidar, velocity, params, n_head):
    B, C, Hi, Wi = image.shape
    _, _, Hl, Wl = lidar.shape
    ia = Hi * Wi
    img_tok = jnp.transpose(image.reshape(B, C, ia), (0, 2, 1))
    lid_tok = jnp.transpose(lidar.reshape(B, C, Hl * Wl), (0, 2, 1))
    x = jnp.concatenate([img_tok, lid_tok], axis=1)
    x = params['pos_emb'] + x + (velocity @ params['vel_w'] + params['vel_b'])[:, None, :]
    T = x.shape[1]
    hd = C // n_head
    for p in params['blocks']:
        h = _ref_ln(x, p['ln1_w'], p['ln1_b'])
        q = (h @ p['wq'] + p['bq']).reshape(B, T, n_head, hd).transpose(0, 2, 1, 3)
        k = (h @ p['wk'] + p['bk']).reshape(B, T, n_head, hd).transpose(0, 2, 1, 3)
        v = (h @ p['wv'] + p['bv']).reshape(B, T, n_head, hd).transpose(0, 2, 1, 3)
        att = jax.nn.softmax(q @ jnp.swapaxes(k, -2, -1) / math.sqrt(hd), axis=-1)
        y = (att @ v).transpose(0, 2, 1, 3).reshape(B, T, C)
        x = x + (y @ p['wp'] + p['bp'])
        h2 = _ref_ln(x, p['ln2_w'], p['ln2_b'])
        m = jnp.maximum(h2 @ p['w1'] + p['b1'], 0.0) @ p['w2'] + p['b2']
        x = x + m
    x = _ref_ln(x, params['lnf_w'], params['lnf_b'])
    x = jnp.transpose(x, (0, 2, 1))
    return x[..., :ia].reshape(image.shape), x[..., ia:].reshape(lidar.shape)


# ------------------------------------ main ------------------------------------

if __name__ == "__main__":
    # Small shapes consistent with the module: seq_len == 1 (asserted in GPT).
    n_embd, n_head, block_exp, n_layer, seq_len = 32, 4, 4, 2, 1
    B, Hi, Wi, Hl, Wl = 2, 4, 4, 4, 4
    img_anchors, lidar_anchors = Hi * Wi, Hl * Wl

    key = jax.random.PRNGKey(0)
    k_img, k_lid, k_vel, k_par = jax.random.split(key, 4)
    image = jax.random.normal(k_img, (B, n_embd, Hi, Wi), jnp.float32)
    lidar = jax.random.normal(k_lid, (B, n_embd, Hl, Wl), jnp.float32)
    velocity = jax.random.normal(k_vel, (B, seq_len), jnp.float32)

    params = init_params(k_par, n_embd, block_exp, n_layer, seq_len,
                         img_anchors + lidar_anchors)
    packed = pack_params(params)

    img_out, lid_out = gpt_forward(image, lidar, velocity, packed, n_head)
    jax.block_until_ready((img_out, lid_out))

    # correctness check against pure-JAX f32 reference
    # (kernel uses bf16 MXU inputs, f32 accumulation, approx softmax reciprocal)
    ref_img, ref_lid = ref_forward(image, lidar, velocity, params, n_head)
    assert img_out.shape == image.shape and lid_out.shape == lidar.shape
    assert jnp.allclose(img_out, ref_img, rtol=2e-2, atol=2e-2)
    assert jnp.allclose(lid_out, ref_lid, rtol=2e-2, atol=2e-2)

    print("KERNEL_OK")
</pallas_src>

<mosaic_0001>
module attributes {stable_mosaic.version = 11 : i64} {
  func.func @gpt_fused_kernel(%arg0: i32, %arg1: i32, %arg2: memref<2x32x32xf32, #tpu.memory_space<vmem>>, %arg3: memref<1x8x128xf32, #tpu.memory_space<vmem>>, %arg4: memref<1x32x96xbf16, #tpu.memory_space<vmem>>, %arg5: memref<1x32x32xbf16, #tpu.memory_space<vmem>>, %arg6: memref<1x32x128xbf16, #tpu.memory_space<vmem>>, %arg7: memref<1x128x32xbf16, #tpu.memory_space<vmem>>, %arg8: memref<2x32xf32, #tpu.memory_space<vmem>>, %arg9: memref<2x32x32xf32, #tpu.memory_space<vmem>>, %arg10: memref<64x32xf32, #tpu.memory_space<vmem>>) attributes {dimension_semantics = [#tpu.dimension_semantics<parallel>, #tpu.dimension_semantics<arbitrary>], iteration_bounds = array<i64: 1, 2>, scalar_prefetch = 0 : i64, scratch_operands = 1 : i64, tpu.core_type = #tpu.core_type<tc>, window_params = [{transform_indices = @transform_0, window_bounds = array<i64: 2, 32, 32>}, {transform_indices = @transform_1, window_bounds = array<i64: 1, 8, 128>}, {transform_indices = @transform_2, window_bounds = array<i64: 1, 32, 96>}, {transform_indices = @transform_3, window_bounds = array<i64: 1, 32, 32>}, {transform_indices = @transform_4, window_bounds = array<i64: 1, 32, 128>}, {transform_indices = @transform_5, window_bounds = array<i64: 1, 128, 32>}, {pipeline_mode = #tpu.pipeline_mode<synchronous>, transform_indices = @transform_6, window_bounds = array<i64: 2, 32>}, {transform_indices = @transform_7, window_bounds = array<i64: 2, 32, 32>}]} {
    %c0_i32 = arith.constant 0 : i32
    %0 = arith.cmpi eq, %arg1, %c0_i32 : i32
    %1 = arith.extui %0 : i1 to i32
    %c0_i32_0 = arith.constant 0 : i32
    %2 = arith.cmpi ne, %1, %c0_i32_0 : i32
    scf.if %2 {
      %c0_54 = arith.constant 0 : index
      %c0_55 = arith.constant 0 : index
      %c0_56 = arith.constant 0 : index
      %187 = vector.load %arg2[%c0_54, %c0_55, %c0_56] : memref<2x32x32xf32, #tpu.memory_space<vmem>>, vector<2x32x32xf32>
      %188 = vector.shape_cast %187 : vector<2x32x32xf32> to vector<64x32xf32>
      %c0_57 = arith.constant 0 : index
      %c0_58 = arith.constant 0 : index
      %189 = vector.load %arg10[%c0_57, %c0_58] : memref<64x32xf32, #tpu.memory_space<vmem>>, vector<64x32xf32>
      tpu.vector_store %arg10[%c0_57, %c0_58], %188 {strides = array<i32>} : memref<64x32xf32, #tpu.memory_space<vmem>>, vector<64x32xf32>,
    } else {
    }
    %c0 = arith.constant 0 : index
    %c0_1 = arith.constant 0 : index
    %3 = vector.load %arg10[%c0, %c0_1] : memref<64x32xf32, #tpu.memory_space<vmem>>, vector<64x32xf32>
    %c0_2 = arith.constant 0 : index
    %c0_3 = arith.constant 0 : index
    %c0_4 = arith.constant 0 : index
    %4 = vector.load %arg3[%c0_2, %c0_3, %c0_4] : memref<1x8x128xf32, #tpu.memory_space<vmem>>, vector<1x8x128xf32>
    %5 = vector.shape_cast %4 : vector<1x8x128xf32> to vector<8x128xf32>
    %6 = vector.extract_strided_slice %5 {offsets = [0, 0], sizes = [1, 32], strides = [1, 1]} : vector<8x128xf32> to vector<1x32xf32>
    %7 = vector.extract_strided_slice %5 {offsets = [1, 0], sizes = [1, 32], strides = [1, 1]} : vector<8x128xf32> to vector<1x32xf32>
    %8 = vector.extract_strided_slice %5 {offsets = [2, 0], sizes = [1, 96], strides = [1, 1]} : vector<8x128xf32> to vector<1x96xf32>
    %9 = vector.extract_strided_slice %5 {offsets = [3, 0], sizes = [1, 32], strides = [1, 1]} : vector<8x128xf32> to vector<1x32xf32>
    %10 = vector.extract_strided_slice %5 {offsets = [4, 0], sizes = [1, 32], strides = [1, 1]} : vector<8x128xf32> to vector<1x32xf32>
    %11 = vector.extract_strided_slice %5 {offsets = [5, 0], sizes = [1, 32], strides = [1, 1]} : vector<8x128xf32> to vector<1x32xf32>
    %12 = vector.extract_strided_slice %5 {offsets = [6, 0], sizes = [1, 128], strides = [1, 1]} : vector<8x128xf32> to vector<1x128xf32>
    %13 = vector.extract_strided_slice %5 {offsets = [7, 0], sizes = [1, 32], strides = [1, 1]} : vector<8x128xf32> to vector<1x32xf32>
    %cst = arith.constant dense<0.000000e+00> : vector<64xf32>
    %14 = vector.multi_reduction <add>, %3, %cst [1] : vector<64x32xf32> to vector<64xf32>
    %15 = vector.shape_cast %14 : vector<64xf32> to vector<64x1xf32>
    %cst_5 = arith.constant 3.200000e+01 : f32
    %16 = vector.broadcast %cst_5 : f32 to vector<64x1xf32>
    %17 = arith.divf %15, %16 : vector<64x1xf32>
    %18 = vector.broadcast %17 : vector<64x1xf32> to vector<64x32xf32>
    %19 = arith.subf %3, %18 : vector<64x32xf32>
    %20 = vector.broadcast %17 : vector<64x1xf32> to vector<64x32xf32>
    %21 = arith.subf %3, %20 : vector<64x32xf32>
    %22 = arith.mulf %19, %21 : vector<64x32xf32>
    %cst_6 = arith.constant dense<0.000000e+00> : vector<64xf32>
    %23 = vector.multi_reduction <add>, %22, %cst_6 [1] : vector<64x32xf32> to vector<64xf32>
    %24 = vector.shape_cast %23 : vector<64xf32> to vector<64x1xf32>
    %cst_7 = arith.constant 3.200000e+01 : f32
    %25 = vector.broadcast %cst_7 : f32 to vector<64x1xf32>
    %26 = arith.divf %24, %25 : vector<64x1xf32>
    %27 = vector.broadcast %17 : vector<64x1xf32> to vector<64x32xf32>
    %28 = arith.subf %3, %27 : vector<64x32xf32>
    %cst_8 = arith.constant 9.99999974E-6 : f32
    %29 = vector.broadcast %cst_8 : f32 to vector<64x1xf32>
    %30 = arith.addf %26, %29 : vector<64x1xf32>
    %31 = math.rsqrt %30 : vector<64x1xf32>
    %32 = vector.broadcast %31 : vector<64x1xf32> to vector<64x32xf32>
    %33 = arith.mulf %28, %32 : vector<64x32xf32>
    %34 = vector.broadcast %6 : vector<1x32xf32> to vector<64x32xf32>
    %35 = arith.mulf %33, %34 : vector<64x32xf32>
    %36 = vector.broadcast %7 : vector<1x32xf32> to vector<64x32xf32>
    %37 = arith.addf %35, %36 : vector<64x32xf32>
    %38 = arith.truncf %37 : vector<64x32xf32> to vector<64x32xbf16>
    %c0_9 = arith.constant 0 : index
    %c0_10 = arith.constant 0 : index
    %c0_11 = arith.constant 0 : index
    %39 = vector.load %arg4[%c0_9, %c0_10, %c0_11] : memref<1x32x96xbf16, #tpu.memory_space<vmem>>, vector<1x32x96xbf16>
    %40 = vector.shape_cast %39 : vector<1x32x96xbf16> to vector<32x96xbf16>
    %cst_12 = arith.constant dense<0.000000e+00> : vector<64x96xf32>
    %41 = tpu.matmul %38, %40, %cst_12 {dimension_numbers = #tpu.dot_dimension_numbers<[1], [0], [0], [1], [0, 0, 1, 1], [], []>} : vector<64x32xbf16>, vector<32x96xbf16>, vector<64x96xf32> -> vector<64x96xf32>
    %42 = vector.broadcast %8 : vector<1x96xf32> to vector<64x96xf32>
    %43 = arith.addf %41, %42 : vector<64x96xf32>
    %44 = arith.truncf %43 : vector<64x96xf32> to vector<64x96xbf16>
    %45 = vector.extract_strided_slice %44 {offsets = [0, 0], sizes = [64, 8], strides = [1, 1]} : vector<64x96xbf16> to vector<64x8xbf16>
    %46 = vector.shape_cast %45 : vector<64x8xbf16> to vector<2x32x8xbf16>
    %47 = vector.extract_strided_slice %44 {offsets = [0, 32], sizes = [64, 8], strides = [1, 1]} : vector<64x96xbf16> to vector<64x8xbf16>
    %48 = vector.shape_cast %47 : vector<64x8xbf16> to vector<2x32x8xbf16>
    %49 = vector.extract_strided_slice %44 {offsets = [0, 64], sizes = [64, 8], strides = [1, 1]} : vector<64x96xbf16> to vector<64x8xbf16>
    %50 = vector.shape_cast %49 : vector<64x8xbf16> to vector<2x32x8xbf16>
    %cst_13 = arith.constant dense<0.000000e+00> : vector<2x32x32xf32>
    %51 = tpu.matmul %46, %48, %cst_13 {dimension_numbers = #tpu.dot_dimension_numbers<[2], [2], [1], [1], [0, 0, 0, 1, 1, 1], [0], [0]>} : vector<2x32x8xbf16>, vector<2x32x8xbf16>, vector<2x32x32xf32> -> vector<2x32x32xf32>
    %cst_14 = arith.constant 0.353553385 : f32
    %52 = vector.broadcast %cst_14 : f32 to vector<2x32x32xf32>
    %53 = arith.mulf %51, %52 : vector<2x32x32xf32>
    %cst_15 = arith.constant dense<0xFF800000> : vector<2x32xf32>
    %54 = vector.multi_reduction <maximumf>, %53, %cst_15 [2] : vector<2x32x32xf32> to vector<2x32xf32>
    %55 = vector.shape_cast %54 : vector<2x32xf32> to vector<2x32x1xf32>
    %56 = vector.broadcast %55 : vector<2x32x1xf32> to vector<2x32x32xf32>
    %57 = arith.subf %53, %56 : vector<2x32x32xf32>
    %58 = math.exp %57 : vector<2x32x32xf32>
    %cst_16 = arith.constant dense<0.000000e+00> : vector<2x32xf32>
    %59 = vector.multi_reduction <add>, %58, %cst_16 [2] : vector<2x32x32xf32> to vector<2x32xf32>
    %60 = vector.shape_cast %59 : vector<2x32xf32> to vector<2x32x1xf32>
    %61 = tpu.reciprocal %60 {approx = true} : vector<2x32x1xf32> -> vector<2x32x1xf32>
    %62 = vector.broadcast %61 : vector<2x32x1xf32> to vector<2x32x32xf32>
    %63 = arith.mulf %58, %62 : vector<2x32x32xf32>
    %64 = arith.truncf %63 : vector<2x32x32xf32> to vector<2x32x32xbf16>
    %cst_17 = arith.constant dense<0.000000e+00> : vector<2x32x8xf32>
    %65 = tpu.matmul %64, %50, %cst_17 {dimension_numbers = #tpu.dot_dimension_numbers<[2], [1], [1], [2], [0, 0, 0, 1, 1, 2], [0], [0]>} : vector<2x32x32xbf16>, vector<2x32x8xbf16>, vector<2x32x8xf32> -> vector<2x32x8xf32>
    %66 = vector.shape_cast %65 : vector<2x32x8xf32> to vector<64x8xf32>
    %67 = arith.truncf %66 : vector<64x8xf32> to vector<64x8xbf16>
    %68 = vector.extract_strided_slice %44 {offsets = [0, 8], sizes = [64, 8], strides = [1, 1]} : vector<64x96xbf16> to vector<64x8xbf16>
    %69 = vector.shape_cast %68 : vector<64x8xbf16> to vector<2x32x8xbf16>
    %70 = vector.extract_strided_slice %44 {offsets = [0, 40], sizes = [64, 8], strides = [1, 1]} : vector<64x96xbf16> to vector<64x8xbf16>
    %71 = vector.shape_cast %70 : vector<64x8xbf16> to vector<2x32x8xbf16>
    %72 = vector.extract_strided_slice %44 {offsets = [0, 72], sizes = [64, 8], strides = [1, 1]} : vector<64x96xbf16> to vector<64x8xbf16>
    %73 = vector.shape_cast %72 : vector<64x8xbf16> to vector<2x32x8xbf16>
    %cst_18 = arith.constant dense<0.000000e+00> : vector<2x32x32xf32>
    %74 = tpu.matmul %69, %71, %cst_18 {dimension_numbers = #tpu.dot_dimension_numbers<[2], [2], [1], [1], [0, 0, 0, 1, 1, 1], [0], [0]>} : vector<2x32x8xbf16>, vector<2x32x8xbf16>, vector<2x32x32xf32> -> vector<2x32x32xf32>
    %cst_19 = arith.constant 0.353553385 : f32
    %75 = vector.broadcast %cst_19 : f32 to vector<2x32x32xf32>
    %76 = arith.mulf %74, %75 : vector<2x32x32xf32>
    %cst_20 = arith.constant dense<0xFF800000> : vector<2x32xf32>
    %77 = vector.multi_reduction <maximumf>, %76, %cst_20 [2] : vector<2x32x32xf32> to vector<2x32xf32>
    %78 = vector.shape_cast %77 : vector<2x32xf32> to vector<2x32x1xf32>
    %79 = vector.broadcast %78 : vector<2x32x1xf32> to vector<2x32x32xf32>
    %80 = arith.subf %76, %79 : vector<2x32x32xf32>
    %81 = math.exp %80 : vector<2x32x32xf32>
    %cst_21 = arith.constant dense<0.000000e+00> : vector<2x32xf32>
    %82 = vector.multi_reduction <add>, %81, %cst_21 [2] : vector<2x32x32xf32> to vector<2x32xf32>
    %83 = vector.shape_cast %82 : vector<2x32xf32> to vector<2x32x1xf32>
    %84 = tpu.reciprocal %83 {approx = true} : vector<2x32x1xf32> -> vector<2x32x1xf32>
    %85 = vector.broadcast %84 : vector<2x32x1xf32> to vector<2x32x32xf32>
    %86 = arith.mulf %81, %85 : vector<2x32x32xf32>
    %87 = arith.truncf %86 : vector<2x32x32xf32> to vector<2x32x32xbf16>
    %cst_22 = arith.constant dense<0.000000e+00> : vector<2x32x8xf32>
    %88 = tpu.matmul %87, %73, %cst_22 {dimension_numbers = #tpu.dot_dimension_numbers<[2], [1], [1], [2], [0, 0, 0, 1, 1, 2], [0], [0]>} : vector<2x32x32xbf16>, vector<2x32x8xbf16>, vector<2x32x8xf32> -> vector<2x32x8xf32>
    %89 = vector.shape_cast %88 : vector<2x32x8xf32> to vector<64x8xf32>
    %90 = arith.truncf %89 : vector<64x8xf32> to vector<64x8xbf16>
    %91 = vector.extract_strided_slice %44 {offsets = [0, 16], sizes = [64, 8], strides = [1, 1]} : vector<64x96xbf16> to vector<64x8xbf16>
    %92 = vector.shape_cast %91 : vector<64x8xbf16> to vector<2x32x8xbf16>
    %93 = vector.extract_strided_slice %44 {offsets = [0, 48], sizes = [64, 8], strides = [1, 1]} : vector<64x96xbf16> to vector<64x8xbf16>
    %94 = vector.shape_cast %93 : vector<64x8xbf16> to vector<2x32x8xbf16>
    %95 = vector.extract_strided_slice %44 {offsets = [0, 80], sizes = [64, 8], strides = [1, 1]} : vector<64x96xbf16> to vector<64x8xbf16>
    %96 = vector.shape_cast %95 : vector<64x8xbf16> to vector<2x32x8xbf16>
    %cst_23 = arith.constant dense<0.000000e+00> : vector<2x32x32xf32>
    %97 = tpu.matmul %92, %94, %cst_23 {dimension_numbers = #tpu.dot_dimension_numbers<[2], [2], [1], [1], [0, 0, 0, 1, 1, 1], [0], [0]>} : vector<2x32x8xbf16>, vector<2x32x8xbf16>, vector<2x32x32xf32> -> vector<2x32x32xf32>
    %cst_24 = arith.constant 0.353553385 : f32
    %98 = vector.broadcast %cst_24 : f32 to vector<2x32x32xf32>
    %99 = arith.mulf %97, %98 : vector<2x32x32xf32>
    %cst_25 = arith.constant dense<0xFF800000> : vector<2x32xf32>
    %100 = vector.multi_reduction <maximumf>, %99, %cst_25 [2] : vector<2x32x32xf32> to vector<2x32xf32>
    %101 = vector.shape_cast %100 : vector<2x32xf32> to vector<2x32x1xf32>
    %102 = vector.broadcast %101 : vector<2x32x1xf32> to vector<2x32x32xf32>
    %103 = arith.subf %99, %102 : vector<2x32x32xf32>
    %104 = math.exp %103 : vector<2x32x32xf32>
    %cst_26 = arith.constant dense<0.000000e+00> : vector<2x32xf32>
    %105 = vector.multi_reduction <add>, %104, %cst_26 [2] : vector<2x32x32xf32> to vector<2x32xf32>
    %106 = vector.shape_cast %105 : vector<2x32xf32> to vector<2x32x1xf32>
    %107 = tpu.reciprocal %106 {approx = true} : vector<2x32x1xf32> -> vector<2x32x1xf32>
    %108 = vector.broadcast %107 : vector<2x32x1xf32> to vector<2x32x32xf32>
    %109 = arith.mulf %104, %108 : vector<2x32x32xf32>
    %110 = arith.truncf %109 : vector<2x32x32xf32> to vector<2x32x32xbf16>
    %cst_27 = arith.constant dense<0.000000e+00> : vector<2x32x8xf32>
    %111 = tpu.matmul %110, %96, %cst_27 {dimension_numbers = #tpu.dot_dimension_numbers<[2], [1], [1], [2], [0, 0, 0, 1, 1, 2], [0], [0]>} : vector<2x32x32xbf16>, vector<2x32x8xbf16>, vector<2x32x8xf32> -> vector<2x32x8xf32>
    %112 = vector.shape_cast %111 : vector<2x32x8xf32> to vector<64x8xf32>
    %113 = arith.truncf %112 : vector<64x8xf32> to vector<64x8xbf16>
    %114 = vector.extract_strided_slice %44 {offsets = [0, 24], sizes = [64, 8], strides = [1, 1]} : vector<64x96xbf16> to vector<64x8xbf16>
    %115 = vector.shape_cast %114 : vector<64x8xbf16> to vector<2x32x8xbf16>
    %116 = vector.extract_strided_slice %44 {offsets = [0, 56], sizes = [64, 8], strides = [1, 1]} : vector<64x96xbf16> to vector<64x8xbf16>
    %117 = vector.shape_cast %116 : vector<64x8xbf16> to vector<2x32x8xbf16>
    %118 = vector.extract_strided_slice %44 {offsets = [0, 88], sizes = [64, 8], strides = [1, 1]} : vector<64x96xbf16> to vector<64x8xbf16>
    %119 = vector.shape_cast %118 : vector<64x8xbf16> to vector<2x32x8xbf16>
    %cst_28 = arith.constant dense<0.000000e+00> : vector<2x32x32xf32>
    %120 = tpu.matmul %115, %117, %cst_28 {dimension_numbers = #tpu.dot_dimension_numbers<[2], [2], [1], [1], [0, 0, 0, 1, 1, 1], [0], [0]>} : vector<2x32x8xbf16>, vector<2x32x8xbf16>, vector<2x32x32xf32> -> vector<2x32x32xf32>
    %cst_29 = arith.constant 0.353553385 : f32
    %121 = vector.broadcast %cst_29 : f32 to vector<2x32x32xf32>
    %122 = arith.mulf %120, %121 : vector<2x32x32xf32>
    %cst_30 = arith.constant dense<0xFF800000> : vector<2x32xf32>
    %123 = vector.multi_reduction <maximumf>, %122, %cst_30 [2] : vector<2x32x32xf32> to vector<2x32xf32>
    %124 = vector.shape_cast %123 : vector<2x32xf32> to vector<2x32x1xf32>
    %125 = vector.broadcast %124 : vector<2x32x1xf32> to vector<2x32x32xf32>
    %126 = arith.subf %122, %125 : vector<2x32x32xf32>
    %127 = math.exp %126 : vector<2x32x32xf32>
    %cst_31 = arith.constant dense<0.000000e+00> : vector<2x32xf32>
    %128 = vector.multi_reduction <add>, %127, %cst_31 [2] : vector<2x32x32xf32> to vector<2x32xf32>
    %129 = vector.shape_cast %128 : vector<2x32xf32> to vector<2x32x1xf32>
    %130 = tpu.reciprocal %129 {approx = true} : vector<2x32x1xf32> -> vector<2x32x1xf32>
    %131 = vector.broadcast %130 : vector<2x32x1xf32> to vector<2x32x32xf32>
    %132 = arith.mulf %127, %131 : vector<2x32x32xf32>
    %133 = arith.truncf %132 : vector<2x32x32xf32> to vector<2x32x32xbf16>
    %cst_32 = arith.constant dense<0.000000e+00> : vector<2x32x8xf32>
    %134 = tpu.matmul %133, %119, %cst_32 {dimension_numbers = #tpu.dot_dimension_numbers<[2], [1], [1], [2], [0, 0, 0, 1, 1, 2], [0], [0]>} : vector<2x32x32xbf16>, vector<2x32x8xbf16>, vector<2x32x8xf32> -> vector<2x32x8xf32>
    %135 = vector.shape_cast %134 : vector<2x32x8xf32> to vector<64x8xf32>
    %136 = arith.truncf %135 : vector<64x8xf32> to vector<64x8xbf16>
    %137 = tpu.concatenate %67, %90, %113, %136 in 1 : vector<64x8xbf16>, vector<64x8xbf16>, vector<64x8xbf16>, vector<64x8xbf16> -> vector<64x32xbf16>
    %c0_33 = arith.constant 0 : index
    %c0_34 = arith.constant 0 : index
    %c0_35 = arith.constant 0 : index
    %138 = vector.load %arg5[%c0_33, %c0_34, %c0_35] : memref<1x32x32xbf16, #tpu.memory_space<vmem>>, vector<1x32x32xbf16>
    %139 = vector.shape_cast %138 : vector<1x32x32xbf16> to vector<32x32xbf16>
    %cst_36 = arith.constant dense<0.000000e+00> : vector<64x32xf32>
    %140 = tpu.matmul %137, %139, %cst_36 {dimension_numbers = #tpu.dot_dimension_numbers<[1], [0], [0], [1], [0, 0, 1, 1], [], []>} : vector<64x32xbf16>, vector<32x32xbf16>, vector<64x32xf32> -> vector<64x32xf32>
    %141 = arith.addf %3, %140 : vector<64x32xf32>
    %142 = vector.broadcast %9 : vector<1x32xf32> to vector<64x32xf32>
    %143 = arith.addf %141, %142 : vector<64x32xf32>
    %cst_37 = arith.constant dense<0.000000e+00> : vector<64xf32>
    %144 = vector.multi_reduction <add>, %143, %cst_37 [1] : vector<64x32xf32> to vector<64xf32>
    %145 = vector.shape_cast %144 : vector<64xf32> to vector<64x1xf32>
    %cst_38 = arith.constant 3.200000e+01 : f32
    %146 = vector.broadcast %cst_38 : f32 to vector<64x1xf32>
    %147 = arith.divf %145, %146 : vector<64x1xf32>
    %148 = vector.broadcast %147 : vector<64x1xf32> to vector<64x32xf32>
    %149 = arith.subf %143, %148 : vector<64x32xf32>
    %150 = vector.broadcast %147 : vector<64x1xf32> to vector<64x32xf32>
    %151 = arith.subf %143, %150 : vector<64x32xf32>
    %152 = arith.mulf %149, %151 : vector<64x32xf32>
    %cst_39 = arith.constant dense<0.000000e+00> : vector<64xf32>
    %153 = vector.multi_reduction <add>, %152, %cst_39 [1] : vector<64x32xf32> to vector<64xf32>
    %154 = vector.shape_cast %153 : vector<64xf32> to vector<64x1xf32>
    %cst_40 = arith.constant 3.200000e+01 : f32
    %155 = vector.broadcast %cst_40 : f32 to vector<64x1xf32>
    %156 = arith.divf %154, %155 : vector<64x1xf32>
    %157 = vector.broadcast %147 : vector<64x1xf32> to vector<64x32xf32>
    %158 = arith.subf %143, %157 : vector<64x32xf32>
    %cst_41 = arith.constant 9.99999974E-6 : f32
    %159 = vector.broadcast %cst_41 : f32 to vector<64x1xf32>
    %160 = arith.addf %156, %159 : vector<64x1xf32>
    %161 = math.rsqrt %160 : vector<64x1xf32>
    %162 = vector.broadcast %161 : vector<64x1xf32> to vector<64x32xf32>
    %163 = arith.mulf %158, %162 : vector<64x32xf32>
    %164 = vector.broadcast %10 : vector<1x32xf32> to vector<64x32xf32>
    %165 = arith.mulf %163, %164 : vector<64x32xf32>
    %166 = vector.broadcast %11 : vector<1x32xf32> to vector<64x32xf32>
    %167 = arith.addf %165, %166 : vector<64x32xf32>
    %168 = arith.truncf %167 : vector<64x32xf32> to vector<64x32xbf16>
    %c0_42 = arith.constant 0 : index
    %c0_43 = arith.constant 0 : index
    %c0_44 = arith.constant 0 : index
    %169 = vector.load %arg6[%c0_42, %c0_43, %c0_44] : memref<1x32x128xbf16, #tpu.memory_space<vmem>>, vector<1x32x128xbf16>
    %170 = vector.shape_cast %169 : vector<1x32x128xbf16> to vector<32x128xbf16>
    %cst_45 = arith.constant dense<0.000000e+00> : vector<64x128xf32>
    %171 = tpu.matmul %168, %170, %cst_45 {dimension_numbers = #tpu.dot_dimension_numbers<[1], [0], [0], [1], [0, 0, 1, 1], [], []>} : vector<64x32xbf16>, vector<32x128xbf16>, vector<64x128xf32> -> vector<64x128xf32>
    %172 = vector.broadcast %12 : vector<1x128xf32> to vector<64x128xf32>
    %173 = arith.addf %171, %172 : vector<64x128xf32>
    %cst_46 = arith.constant 0.000000e+00 : f32
    %174 = vector.broadcast %cst_46 : f32 to vector<64x128xf32>
    %175 = arith.maximumf %173, %174 : vector<64x128xf32>
    %176 = arith.truncf %175 : vector<64x128xf32> to vector<64x128xbf16>
    %c0_47 = arith.constant 0 : index
    %c0_48 = arith.constant 0 : index
    %c0_49 = arith.constant 0 : index
    %177 = vector.load %arg7[%c0_47, %c0_48, %c0_49] : memref<1x128x32xbf16, #tpu.memory_space<vmem>>, vector<1x128x32xbf16>
    %178 = vector.shape_cast %177 : vector<1x128x32xbf16> to vector<128x32xbf16>
    %cst_50 = arith.constant dense<0.000000e+00> : vector<64x32xf32>
    %179 = tpu.matmul %176, %178, %cst_50 {dimension_numbers = #tpu.dot_dimension_numbers<[1], [0], [0], [1], [0, 0, 1, 1], [], []>} : vector<64x128xbf16>, vector<128x32xbf16>, vector<64x32xf32> -> vector<64x32xf32>
    %180 = vector.broadcast %13 : vector<1x32xf32> to vector<64x32xf32>
    %181 = arith.addf %179, %180 : vector<64x32xf32>
    %182 = arith.addf %143, %181 : vector<64x32xf32>
    %c0_51 = arith.constant 0 : index
    %c0_52 = arith.constant 0 : index
    %183 = vector.load %arg10[%c0_51, %c0_52] : memref<64x32xf32, #tpu.memory_space<vmem>>, vector<64x32xf32>
    tpu.vector_store %arg10[%c0_51, %c0_52], %182 {strides = array<i32>} : memref<64x32xf32, #tpu.memory_space<vmem>>, vector<64x32xf32>,
    %c1_i32 = arith.constant 1 : i32
    %184 = arith.cmpi eq, %arg1, %c1_i32 : i32
    %185 = arith.extui %184 : i1 to i32
    %c0_i32_53 = arith.constant 0 : i32
    %186 = arith.cmpi ne, %185, %c0_i32_53 : i32
    scf.if %186 {
      %c0_54 = arith.constant 0 : index
      %c0_55 = arith.constant 0 : index
      %187 = vector.load %arg8[%c0_54, %c0_55] : memref<2x32xf32, #tpu.memory_space<vmem>>, vector<2x32xf32>
      %188 = vector.extract_strided_slice %187 {offsets = [0, 0], sizes = [1, 32], strides = [1, 1]} : vector<2x32xf32> to vector<1x32xf32>
      %189 = vector.extract_strided_slice %187 {offsets = [1, 0], sizes = [1, 32], strides = [1, 1]} : vector<2x32xf32> to vector<1x32xf32>
      %cst_56 = arith.constant dense<0.000000e+00> : vector<64xf32>
      %190 = vector.multi_reduction <add>, %182, %cst_56 [1] : vector<64x32xf32> to vector<64xf32>
      %191 = vector.shape_cast %190 : vector<64xf32> to vector<64x1xf32>
      %cst_57 = arith.constant 3.200000e+01 : f32
      %192 = vector.broadcast %cst_57 : f32 to vector<64x1xf32>
      %193 = arith.divf %191, %192 : vector<64x1xf32>
      %194 = vector.broadcast %193 : vector<64x1xf32> to vector<64x32xf32>
      %195 = arith.subf %182, %194 : vector<64x32xf32>
      %196 = vector.broadcast %193 : vector<64x1xf32> to vector<64x32xf32>
      %197 = arith.subf %182, %196 : vector<64x32xf32>
      %198 = arith.mulf %195, %197 : vector<64x32xf32>
      %cst_58 = arith.constant dense<0.000000e+00> : vector<64xf32>
      %199 = vector.multi_reduction <add>, %198, %cst_58 [1] : vector<64x32xf32> to vector<64xf32>
      %200 = vector.shape_cast %199 : vector<64xf32> to vector<64x1xf32>
      %cst_59 = arith.constant 3.200000e+01 : f32
      %201 = vector.broadcast %cst_59 : f32 to vector<64x1xf32>
      %202 = arith.divf %200, %201 : vector<64x1xf32>
      %203 = vector.broadcast %193 : vector<64x1xf32> to vector<64x32xf32>
      %204 = arith.subf %182, %203 : vector<64x32xf32>
      %cst_60 = arith.constant 9.99999974E-6 : f32
      %205 = vector.broadcast %cst_60 : f32 to vector<64x1xf32>
      %206 = arith.addf %202, %205 : vector<64x1xf32>
      %207 = math.rsqrt %206 : vector<64x1xf32>
      %208 = vector.broadcast %207 : vector<64x1xf32> to vector<64x32xf32>
      %209 = arith.mulf %204, %208 : vector<64x32xf32>
      %210 = vector.broadcast %188 : vector<1x32xf32> to vector<64x32xf32>
      %211 = arith.mulf %209, %210 : vector<64x32xf32>
      %212 = vector.broadcast %189 : vector<1x32xf32> to vector<64x32xf32>
      %213 = arith.addf %211, %212 : vector<64x32xf32>
      %214 = vector.shape_cast %213 : vector<64x32xf32> to vector<2x32x32xf32>
      %c0_61 = arith.constant 0 : index
      %c0_62 = arith.constant 0 : index
      %c0_63 = arith.constant 0 : index
      %215 = vector.load %arg9[%c0_61, %c0_62, %c0_63] : memref<2x32x32xf32, #tpu.memory_space<vmem>>, vector<2x32x32xf32>
      tpu.vector_store %arg9[%c0_61, %c0_62, %c0_63], %214 {strides = array<i32>} : memref<2x32x32xf32, #tpu.memory_space<vmem>>, vector<2x32x32xf32>,
    } else {
    }
    return
  }
  func.func @transform_0(%arg0: i32, %arg1: i32) -> (i32, i32, i32) {
    %c0_i32 = arith.constant 0 : i32
    %c0_i32_0 = arith.constant 0 : i32
    %c0_i32_1 = arith.constant 0 : i32
    return %arg0, %c0_i32, %c0_i32_0 : i32, i32, i32
  }
  func.func @transform_1(%arg0: i32, %arg1: i32) -> (i32, i32, i32) {
    %c0_i32 = arith.constant 0 : i32
    %c0_i32_0 = arith.constant 0 : i32
    %c0_i32_1 = arith.constant 0 : i32
    return %arg1, %c0_i32, %c0_i32_0 : i32, i32, i32
  }
  func.func @transform_2(%arg0: i32, %arg1: i32) -> (i32, i32, i32) {
    %c0_i32 = arith.constant 0 : i32
    %c0_i32_0 = arith.constant 0 : i32
    %c0_i32_1 = arith.constant 0 : i32
    return %arg1, %c0_i32, %c0_i32_0 : i32, i32, i32
  }
  func.func @transform_3(%arg0: i32, %arg1: i32) -> (i32, i32, i32) {
    %c0_i32 = arith.constant 0 : i32
    %c0_i32_0 = arith.constant 0 : i32
    %c0_i32_1 = arith.constant 0 : i32
    return %arg1, %c0_i32, %c0_i32_0 : i32, i32, i32
  }
  func.func @transform_4(%arg0: i32, %arg1: i32) -> (i32, i32, i32) {
    %c0_i32 = arith.constant 0 : i32
    %c0_i32_0 = arith.constant 0 : i32
    %c0_i32_1 = arith.constant 0 : i32
    return %arg1, %c0_i32, %c0_i32_0 : i32, i32, i32
  }
  func.func @transform_5(%arg0: i32, %arg1: i32) -> (i32, i32, i32) {
    %c0_i32 = arith.constant 0 : i32
    %c0_i32_0 = arith.constant 0 : i32
    %c0_i32_1 = arith.constant 0 : i32
    return %arg1, %c0_i32, %c0_i32_0 : i32, i32, i32
  }
  func.func @transform_6(%arg0: i32, %arg1: i32) -> (i32, i32) {
    %c0_i32 = arith.constant 0 : i32
    %c0_i32_0 = arith.constant 0 : i32
    %c0_i32_1 = arith.constant 0 : i32
    return %c0_i32, %c0_i32_0 : i32, i32
  }
  func.func @transform_7(%arg0: i32, %arg1: i32) -> (i32, i32, i32) {
    %c0_i32 = arith.constant 0 : i32
    %c0_i32_0 = arith.constant 0 : i32
    %c0_i32_1 = arith.constant 0 : i32
    return %arg0, %c0_i32, %c0_i32_0 : i32, i32, i32
  }
}

</mosaic_0001>

<llo_original>
// kernel: tpu_custom_call.1
$region0: #{tpu_custom_call.1}
  #allocation0 [shape = 'u32[]', space=smem, size = 0x4, offset = 0x4, fixed_abs, tag = 'smem constant byte address 0x4 - core index']
  #allocation1 [shape = 'u32[144,128]{1,0:T(1,128)}', space=vmem, size = 0x12000, scoped, tag = 'internal scratch']
  #allocation2 [shape = 'f32[64,32]{1,0:T(8,128)}', space=vmem, size = 0x8000, scoped, tag = 'scratch operand']
  %s0 = inlined_call_operand.vmem [shape: f32[2,32,32], index: 0, kind: input, shape index: {}]
  %s1 = inlined_call_operand.hbm [shape: f32[2,8,128], index: 1, kind: input, shape index: {}]
  %s2 = inlined_call_operand.vmem [shape: bf16[2,32,96], index: 2, kind: input, shape index: {}]
  %s3 = inlined_call_operand.vmem [shape: bf16[2,32,32], index: 3, kind: input, shape index: {}]
  %s4 = inlined_call_operand.vmem [shape: bf16[2,32,128], index: 4, kind: input, shape index: {}]
  %s5 = inlined_call_operand.vmem [shape: bf16[2,128,32], index: 5, kind: input, shape index: {}]
  %s6 = inlined_call_operand.vmem [shape: f32[2,32], index: 6, kind: input, shape index: {}]
  %s7 = inlined_call_operand.hbm [shape: f32[2,32,32], index: 7, kind: output, shape index: {}]
  %s8 = sld [smem:[#allocation0]]
  $region73: #{tpu_custom_call.1} parent=0
    _
  %s10 = ssub.s32 1, %s8
  %s11 = scalar_select 0, %s10, %s8
  $region1: #{tpu_custom_call.1} parent=0
    #allocation3 [shape = 'u8[8192]{0}', space=vmem, size = 0x2000, scoped, tag = 'input window, operand 1']
    #allocation4 [shape = 's32[2]{0}', space=sflag, size = 0x8, scoped, tag = 'scoped memory for tpu_custom_call.1']
    #allocation5 [shape = 's32[2]{0}', space=sflag, size = 0x8, scoped, tag = 'scoped memory for tpu_custom_call.1']
    #allocation6 [shape = 'u8[32768]{0}', space=vmem, size = 0x8000, scoped, tag = 'output window, operand 0, single buffered']
    %12 = vsyncpa [#allocation4], 0
    %s13 = scalar_lea.sflag [#allocation4], 1
    %14 = vsyncpa %s13, 0
    %15 = vsyncpa [#allocation5], 0
    loop: start=0, step=1, limit=4
    $region2: #{tpu_custom_call.1} parent=1 // loop_pre_header
      _
    $region3: #{tpu_custom_call.1} parent=1 // loop_header
      %s17 = sphi 0, %s21
      %p18 = scmp.ge.s32.totalorder %s17, 4
      %s24 = sphi 0, %s36
      %s25 = sphi 0, %s32
      %s26 = sphi 0, %s24
      %s27 = sphi 0, %s25
      %s28 = sphi 0, %s26
      %s29 = sphi 0, %s27
      %s39 = sphi 0, %s41
      %s42 = sphi 0, %s39
      %s43 = sphi 0, %s42
      %s59 = sphi 0, %s43
      %s65 = sphi 0, %s67
      %s68 = sphi 0, %s65
      %s69 = sphi 0, %s68
      %s85 = sphi 0, %s69
      %s91 = sphi 0, %s93
      %s94 = sphi 0, %s91
      %s95 = sphi 0, %s94
      %s111 = sphi 0, %s95
      %s117 = sphi 0, %s119
      %s120 = sphi 0, %s117
      %s121 = sphi 0, %s120
      %s137 = sphi 0, %s121
      %s143 = sphi 0, %s145
      %s146 = sphi 0, %s143
      %s147 = sphi 0, %s146
      %s163 = sphi 0, %s147
      %s169 = sphi 0, %s171
      %s172 = sphi 0, %s169
      %s173 = sphi 0, %s172
      %s189 = sphi 0, %s173
      %s193 = sphi 0, %s193
      %s195 = sphi 0, %s193
      %s196 = sphi 0, %s195
      %s210 = sphi 0, %s196
      %s216 = sphi 0, %s218
      %s219 = sphi 0, %s216
      %s220 = sphi 0, %s219
      %s236 = sphi 0, %s220
    $region4: #{tpu_custom_call.1} parent=1 // loop_header_branch
      %20 = sbr.rel (%p18) target = $region8
    $region5: #{tpu_custom_call.1} parent=1 // loop_body
      %s22 = ssub.s32 %s17, 1
      %s23 = ssub.s32 %s17, 2
      %s30 = sadd.s32 1, %s25
      %p31 = scmp.ge.s32.totalorder %s30, 2
      %s32 = scalar_select %p31, 0, %s30
      %s33 = sadd.s32 1, %s24
      %s34 = scalar_select %p31, %s33, %s24
      %p35 = scmp.ge.s32.totalorder %s34, 1
      %s36 = scalar_select %p35, 0, %s34
      %s37 = ssub.s32 %s24, %s36
      %p38 = scmp.eq.s32.totalorder %s37, 0
      %s40 = sadd.s32 %s39, 1
      %s41 = scalar_select %p38, %s39, %s40
      %p44 = pneg %p38
      %p45 = scmp.eq.s32.totalorder %s17, 1
      %p46 = por %p44, %p45
      %p47 = scmp.ne.s32.totalorder %s39, %s42
      %p48 = scmp.eq.s32.totalorder %s17, 0
      %p49 = por %p47, %p48
      %p50 = scmp.ne.s32.totalorder %s39, %s42
      %p51 = scmp.eq.s32.totalorder %s22, 1
      %p52 = por %p50, %p51
      %p53 = scmp.ne.s32.totalorder %s42, %s43
      %p54 = scmp.eq.s32.totalorder %s22, 0
      %p55 = por %p53, %p54
      %p56 = scmp.ne.s32.totalorder %s42, %s43
      %p57 = scmp.eq.s32.totalorder %s23, 1
      %p58 = por %p56, %p57
      %p60 = scmp.ne.s32.totalorder %s43, %s59
      %p61 = scmp.eq.s32.totalorder %s23, 0
      %p62 = por %p60, %p61
      %s63 = ssub.s32 %s25, %s32
      %p64 = scmp.eq.s32.totalorder %s63, 0
      %s66 = sadd.s32 %s65, 1
      %s67 = scalar_select %p64, %s65, %s66
      %p70 = pneg %p64
      %p71 = scmp.eq.s32.totalorder %s17, 1
      %p72 = por %p70, %p71
      %p73 = scmp.ne.s32.totalorder %s65, %s68
      %p74 = scmp.eq.s32.totalorder %s17, 0
      %p75 = por %p73, %p74
      %p76 = scmp.ne.s32.totalorder %s65, %s68
      %p77 = scmp.eq.s32.totalorder %s22, 1
      %p78 = por %p76, %p77
      %p79 = scmp.ne.s32.totalorder %s68, %s69
      %p80 = scmp.eq.s32.totalorder %s22, 0
      %p81 = por %p79, %p80
      %p82 = scmp.ne.s32.totalorder %s68, %s69
      %p83 = scmp.eq.s32.totalorder %s23, 1
      %p84 = por %p82, %p83
      %p86 = scmp.ne.s32.totalorder %s69, %s85
      %p87 = scmp.eq.s32.totalorder %s23, 0
      %p88 = por %p86, %p87
      %s89 = ssub.s32 %s25, %s32
      %p90 = scmp.eq.s32.totalorder %s89, 0
      %s92 = sadd.s32 %s91, 1
      %s93 = scalar_select %p90, %s91, %s92
      %p96 = pneg %p90
      %p97 = scmp.eq.s32.totalorder %s17, 1
      %p98 = por %p96, %p97
      %p99 = scmp.ne.s32.totalorder %s91, %s94
      %p100 = scmp.eq.s32.totalorder %s17, 0
      %p101 = por %p99, %p100
      %p102 = scmp.ne.s32.totalorder %s91, %s94
      %p103 = scmp.eq.s32.totalorder %s22, 1
      %p104 = por %p102, %p103
      %p105 = scmp.ne.s32.totalorder %s94, %s95
      %p106 = scmp.eq.s32.totalorder %s22, 0
      %p107 = por %p105, %p106
      %p108 = scmp.ne.s32.totalorder %s94, %s95
      %p109 = scmp.eq.s32.totalorder %s23, 1
      %p110 = por %p108, %p109
      %p112 = scmp.ne.s32.totalorder %s95, %s111
      %p113 = scmp.eq.s32.totalorder %s23, 0
      %p114 = por %p112, %p113
      %s115 = ssub.s32 %s25, %s32
      %p116 = scmp.eq.s32.totalorder %s115, 0
      %s118 = sadd.s32 %s117, 1
      %s119 = scalar_select %p116, %s117, %s118
      %p122 = pneg %p116
      %p123 = scmp.eq.s32.totalorder %s17, 1
      %p124 = por %p122, %p123
      %p125 = scmp.ne.s32.totalorder %s117, %s120
      %p126 = scmp.eq.s32.totalorder %s17, 0
      %p127 = por %p125, %p126
      %p128 = scmp.ne.s32.totalorder %s117, %s120
      %p129 = scmp.eq.s32.totalorder %s22, 1
      %p130 = por %p128, %p129
      %p131 = scmp.ne.s32.totalorder %s120, %s121
      %p132 = scmp.eq.s32.totalorder %s22, 0
      %p133 = por %p131, %p132
      %p134 = scmp.ne.s32.totalorder %s120, %s121
      %p135 = scmp.eq.s32.totalorder %s23, 1
      %p136 = por %p134, %p135
      %p138 = scmp.ne.s32.totalorder %s121, %s137
      %p139 = scmp.eq.s32.totalorder %s23, 0
      %p140 = por %p138, %p139
      %s141 = ssub.s32 %s25, %s32
      %p142 = scmp.eq.s32.totalorder %s141, 0
      %s144 = sadd.s32 %s143, 1
      %s145 = scalar_select %p142, %s143, %s144
      %p148 = pneg %p142
      %p149 = scmp.eq.s32.totalorder %s17, 1
      %p150 = por %p148, %p149
      %p151 = scmp.ne.s32.totalorder %s143, %s146
      %p152 = scmp.eq.s32.totalorder %s17, 0
      %p153 = por %p151, %p152
      %p154 = scmp.ne.s32.totalorder %s143, %s146
      %p155 = scmp.eq.s32.totalorder %s22, 1
      %p156 = por %p154, %p155
      %p157 = scmp.ne.s32.totalorder %s146, %s147
      %p158 = scmp.eq.s32.totalorder %s22, 0
      %p159 = por %p157, %p158
      %p160 = scmp.ne.s32.totalorder %s146, %s147
      %p161 = scmp.eq.s32.totalorder %s23, 1
      %p162 = por %p160, %p161
      %p164 = scmp.ne.s32.totalorder %s147, %s163
      %p165 = scmp.eq.s32.totalorder %s23, 0
      %p166 = por %p164, %p165
      %s167 = ssub.s32 %s25, %s32
      %p168 = scmp.eq.s32.totalorder %s167, 0
      %s170 = sadd.s32 %s169, 1
      %s171 = scalar_select %p168, %s169, %s170
      %p174 = pneg %p168
      %p175 = scmp.eq.s32.totalorder %s17, 1
      %p176 = por %p174, %p175
      %p177 = scmp.ne.s32.totalorder %s169, %s172
      %p178 = scmp.eq.s32.totalorder %s17, 0
      %p179 = por %p177, %p178
      %p180 = scmp.ne.s32.totalorder %s169, %s172
      %p181 = scmp.eq.s32.totalorder %s22, 1
      %p182 = por %p180, %p181
      %p183 = scmp.ne.s32.totalorder %s172, %s173
      %p184 = scmp.eq.s32.totalorder %s22, 0
      %p185 = por %p183, %p184
      %p186 = scmp.ne.s32.totalorder %s172, %s173
      %p187 = scmp.eq.s32.totalorder %s23, 1
      %p188 = por %p186, %p187
      %p190 = scmp.ne.s32.totalorder %s173, %s189
      %p191 = scmp.eq.s32.totalorder %s23, 0
      %p192 = por %p190, %p191
      %s194 = sadd.s32 %s193, 1
      %p197 = scmp.eq.s32.totalorder %s17, 1
      %p198 = scmp.ne.s32.totalorder %s193, %s195
      %p199 = scmp.eq.s32.totalorder %s17, 0
      %p200 = por %p198, %p199
      %p201 = scmp.ne.s32.totalorder %s193, %s195
      %p202 = scmp.eq.s32.totalorder %s22, 1
      %p203 = por %p201, %p202
      %p204 = scmp.ne.s32.totalorder %s195, %s196
      %p205 = scmp.eq.s32.totalorder %s22, 0
      %p206 = por %p204, %p205
      %p207 = scmp.ne.s32.totalorder %s195, %s196
      %p208 = scmp.eq.s32.totalorder %s23, 1
      %p209 = por %p207, %p208
      %p211 = scmp.ne.s32.totalorder %s196, %s210
      %p212 = scmp.eq.s32.totalorder %s23, 0
      %p213 = por %p211, %p212
      %s214 = ssub.s32 %s24, %s36
      %p215 = scmp.eq.s32.totalorder %s214, 0
      %s217 = sadd.s32 %s216, 1
      %s218 = scalar_select %p215, %s216, %s217
      %p221 = pneg %p215
      %p222 = scmp.eq.s32.totalorder %s17, 1
      %p223 = por %p221, %p222
      %p224 = scmp.ne.s32.totalorder %s216, %s219
      %p225 = scmp.eq.s32.totalorder %s17, 0
      %p226 = por %p224, %p225
      %p227 = scmp.ne.s32.totalorder %s216, %s219
      %p228 = scmp.eq.s32.totalorder %s22, 1
      %p229 = por %p227, %p228
      %p230 = scmp.ne.s32.totalorder %s219, %s220
      %p231 = scmp.eq.s32.totalorder %s22, 0
      %p232 = por %p230, %p231
      %p233 = scmp.ne.s32.totalorder %s219, %s220
      %p234 = scmp.eq.s32.totalorder %s23, 1
      %p235 = por %p233, %p234
      %p237 = scmp.ne.s32.totalorder %s220, %s236
      %p238 = scmp.eq.s32.totalorder %s23, 0
      %p239 = por %p237, %p238
      %p240 = scmp.le.s32.totalorder 1, %s17
      %p241 = scmp.lt.s32.totalorder %s17, 3
      %p242 = pnand %p240, %p241
      %p243 = pneg %p242
      // Predicated region
      $region9: #{tpu_custom_call.1} parent=5 // pred_check
        _
      $region10: #{tpu_custom_call.1} parent=5 // pred_check_branch
        %245 = sbr.rel (%p242) target = $region12
      $region11: #{tpu_custom_call.1} parent=5 // pred_region
        %s246 = ssub.s32 %s17, 1
        // Predicated region
        $region13: #{tpu_custom_call.1} parent=11 // pred_check
          %p247 = pneg %p55
        $region14: #{tpu_custom_call.1} parent=11 // pred_check_branch
          %249 = sbr.rel (%p247) target = $region16
        $region15: #{tpu_custom_call.1} parent=11 // pred_region
          %s250 = smul.u32 2, %s26
          %p251 = scmp.lt.s32.totalorder %s250, 1
          %s252 = scalar_select %p251, %s250, 1
          %s253 = smul.addr %s252, 4
          %s254 = smul.addr %s253, 8
          %s255 = scalar_lea.vmem %s0, %s254
          %s256 = smul.u32 2, %s26
        $region16: #{tpu_custom_call.1} parent=11 // pred_fallthru
          _
        // Predicated region
        $region17: #{tpu_custom_call.1} parent=11 // pred_check
          %p257 = pneg %p206
        $region18: #{tpu_custom_call.1} parent=11 // pred_check_branch
          %259 = sbr.rel (%p257) target = $region20
        $region19: #{tpu_custom_call.1} parent=11 // pred_region
          _
        $region20: #{tpu_custom_call.1} parent=11 // pred_fallthru
          _
      $region12: #{tpu_custom_call.1} parent=5 // pred_fallthru
        _
      %p260 = scmp.lt.s32.totalorder %s17, 2
      // Predicated region
      $region21: #{tpu_custom_call.1} parent=5 // pred_check
        %p261 = pneg %p260
      $region22: #{tpu_custom_call.1} parent=5 // pred_check_branch
        %263 = sbr.rel (%p261) target = $region24
      $region23: #{tpu_custom_call.1} parent=5 // pred_region
        // Predicated region
        $region25: #{tpu_custom_call.1} parent=23 // pred_check
          %p264 = pneg %p75
        $region26: #{tpu_custom_call.1} parent=23 // pred_check_branch
          %266 = sbr.rel (%p264) target = $region28
        $region27: #{tpu_custom_call.1} parent=23 // pred_region
          %s267 = sand.u32 %s65, 1
          %s268 = scalar_lea.sflag [#allocation4], %s267
          %s269 = sand.u32 %s65, 1
          %s270 = smul.addr %s269, 8
          %s271 = scalar_lea.vmem [#allocation3], %s270
          %s273 = ssub.s32 128, 128
          %274 = vsyncadd %s268, %s273
          %s275 = smul.addr %s25, 128
          %s276 = scalar_lea.hbm %s1, %s275
          %s278 = sshll.u32 %s271, 4
          %s279 = int_to_ptr.vmem [resolvable:$true] %s278
          %281 = dma.hbm_to_vmem [thread:$0]  %s276, 128, %s279, %s268
        $region28: #{tpu_custom_call.1} parent=23 // pred_fallthru
          _
        // Predicated region
        $region29: #{tpu_custom_call.1} parent=23 // pred_check
          %p282 = pneg %p101
        $region30: #{tpu_custom_call.1} parent=23 // pred_check_branch
          %284 = sbr.rel (%p282) target = $region32
        $region31: #{tpu_custom_call.1} parent=23 // pred_region
          %p285 = scmp.lt.s32.totalorder %s25, 1
          %s286 = scalar_select %p285, %s25, 1
          %s287 = smul.addr %s286, 4
          %s288 = smul.addr %s287, 4
          %s289 = scalar_lea.vmem %s2, %s288
        $region32: #{tpu_custom_call.1} parent=23 // pred_fallthru
          _
        // Predicated region
        $region33: #{tpu_custom_call.1} parent=23 // pred_check
          %p290 = pneg %p127
        $region34: #{tpu_custom_call.1} parent=23 // pred_check_branch
          %292 = sbr.rel (%p290) target = $region36
        $region35: #{tpu_custom_call.1} parent=23 // pred_region
          %p293 = scmp.lt.s32.totalorder %s25, 1
          %s294 = scalar_select %p293, %s25, 1
          %s295 = smul.addr %s294, 4
          %s296 = smul.addr %s295, 4
          %s297 = scalar_lea.vmem %s3, %s296
        $region36: #{tpu_custom_call.1} parent=23 // pred_fallthru
          _
        // Predicated region
        $region37: #{tpu_custom_call.1} parent=23 // pred_check
          %p298 = pneg %p153
        $region38: #{tpu_custom_call.1} parent=23 // pred_check_branch
          %300 = sbr.rel (%p298) target = $region40
        $region39: #{tpu_custom_call.1} parent=23 // pred_region
          %p301 = scmp.lt.s32.totalorder %s25, 1
          %s302 = scalar_select %p301, %s25, 1
          %s303 = smul.addr %s302, 4
          %s304 = smul.addr %s303, 4
          %s305 = scalar_lea.vmem %s4, %s304
        $region40: #{tpu_custom_call.1} parent=23 // pred_fallthru
          _
        // Predicated region
        $region41: #{tpu_custom_call.1} parent=23 // pred_check
          %p306 = pneg %p179
        $region42: #{tpu_custom_call.1} parent=23 // pred_check_branch
          %308 = sbr.rel (%p306) target = $region44
        $region43: #{tpu_custom_call.1} parent=23 // pred_region
          %p309 = scmp.lt.s32.totalorder %s25, 1
          %s310 = scalar_select %p309, %s25, 1
          %s311 = smul.addr %s310, 16
          %s312 = smul.addr %s311, 4
          %s313 = scalar_lea.vmem %s5, %s312
        $region44: #{tpu_custom_call.1} parent=23 // pred_fallthru
          _
      $region24: #{tpu_custom_call.1} parent=5 // pred_fallthru
        _
      %p314 = scmp.le.s32.totalorder 1, %s17
      %p315 = scmp.lt.s32.totalorder %s17, 3
      %p316 = pnand %p314, %p315
      %p317 = pneg %p316
      // Predicated region
      $region45: #{tpu_custom_call.1} parent=5 // pred_check
        _
      $region46: #{tpu_custom_call.1} parent=5 // pred_check_branch
        %319 = sbr.rel (%p316) target = $region48
      $region47: #{tpu_custom_call.1} parent=5 // pred_region
        %s320 = ssub.s32 %s17, 1
        %s321 = sand.u32 %s68, 1
        %s322 = scalar_lea.sflag [#allocation4], %s321
        %s323 = sand.u32 %s68, 1
        %s324 = smul.addr %s323, 8
        %s325 = scalar_lea.vmem [#allocation3], %s324
        // Predicated region
        $region49: #{tpu_custom_call.1} parent=47 // pred_check
          %p326 = pneg %p81
        $region50: #{tpu_custom_call.1} parent=47 // pred_check_branch
          %328 = sbr.rel (%p326) target = $region52
        $region51: #{tpu_custom_call.1} parent=47 // pred_region
          %329 = dma.done %s322, 128
        $region52: #{tpu_custom_call.1} parent=47 // pred_fallthru
          _
        %s330 = smul.u32 2, %s26
        %p331 = scmp.lt.s32.totalorder %s330, 1
        %s332 = scalar_select %p331, %s330, 1
        %s333 = smul.addr %s332, 4
        %s334 = smul.addr %s333, 8
        %s335 = scalar_lea.vmem %s0, %s334
        %p336 = pneg %p55
        %p337 = pneg %p52
        %s338 = sand.u32 %s68, 1
        %s339 = scalar_lea.sflag [#allocation4], %s338
        %s340 = sand.u32 %s68, 1
        %s341 = smul.addr %s340, 8
        %s342 = scalar_lea.vmem [#allocation3], %s341
        %p343 = pneg %p81
        %p344 = pneg %p78
        %p345 = scmp.lt.s32.totalorder %s27, 1
        %s346 = scalar_select %p345, %s27, 1
        %s347 = smul.addr %s346, 4
        %s348 = smul.addr %s347, 4
        %s349 = scalar_lea.vmem %s2, %s348
        %p350 = pneg %p107
        %p351 = pneg %p104
        %p352 = scmp.lt.s32.totalorder %s27, 1
        %s353 = scalar_select %p352, %s27, 1
        %s354 = smul.addr %s353, 4
        %s355 = smul.addr %s354, 4
        %s356 = scalar_lea.vmem %s3, %s355
        %p357 = pneg %p133
        %p358 = pneg %p130
        %p359 = scmp.lt.s32.totalorder %s27, 1
        %s360 = scalar_select %p359, %s27, 1
        %s361 = smul.addr %s360, 4
        %s362 = smul.addr %s361, 4
        %s363 = scalar_lea.vmem %s4, %s362
        %p364 = pneg %p159
        %p365 = pneg %p156
        %p366 = scmp.lt.s32.totalorder %s27, 1
        %s367 = scalar_select %p366, %s27, 1
        %s368 = smul.addr %s367, 16
        %s369 = smul.addr %s368, 4
        %s370 = scalar_lea.vmem %s5, %s369
        %p371 = pneg %p185
        %p372 = pneg %p182
        %p373 = pneg %p206
        %p374 = pneg %p203
        %p375 = pneg %p232
        %p376 = pneg %p229
        %s377 = smul.u32 2, %s26
        %p378 = scmp.lt.s32.totalorder %s377, 1
        %s379 = scalar_select %p378, %s377, 1
        %s380 = smul.addr %s379, 4
        %s381 = smul.addr %s380, 8
        %s382 = scalar_lea.vmem %s0, %s381
        %s383 = smul.u32 2, %s26
        %p384 = scmp.lt.s32.totalorder %s27, 1
        %s385 = scalar_select %p384, %s27, 1
        %s386 = smul.addr %s385, 4
        %s387 = smul.addr %s386, 4
        %s388 = scalar_lea.vmem %s2, %s387
        %p389 = scmp.lt.s32.totalorder %s27, 1
        %s390 = scalar_select %p389, %s27, 1
        %s391 = smul.addr %s390, 4
        %s392 = smul.addr %s391, 4
        %s393 = scalar_lea.vmem %s3, %s392
        %p394 = scmp.lt.s32.totalorder %s27, 1
        %s395 = scalar_select %p394, %s27, 1
        %s396 = smul.addr %s395, 4
        %s397 = smul.addr %s396, 4
        %s398 = scalar_lea.vmem %s4, %s397
        %p399 = scmp.lt.s32.totalorder %s27, 1
        %s400 = scalar_select %p399, %s27, 1
        %s401 = smul.addr %s400, 16
        %s402 = smul.addr %s401, 4
        %s403 = scalar_lea.vmem %s5, %s402
        %s404 = smul.u32 2, %s26
        %p406 = scmp.eq.s32.totalorder %s27, 0
        // Predicated region
        $region53: #{tpu_custom_call.1} parent=47 // pred_check
          %p407 = pneg %p406
        $region54: #{tpu_custom_call.1} parent=47 // pred_check_branch
          %409 = sbr.rel (%p407) target = $region56
        $region55: #{tpu_custom_call.1} parent=47 // pred_region
          %v410 = vld [vmem:[%s382] sm:$0xff]
          %v411 = vld [vmem:[%s382 + $0x8] sm:$0xff]
          %v412 = vld [vmem:[%s382 + $0x10] sm:$0xff]
          %v413 = vld [vmem:[%s382 + $0x18] sm:$0xff]
          %v414 = vld [vmem:[%s382 + $0x20] sm:$0xff]
          %v415 = vld [vmem:[%s382 + $0x28] sm:$0xff]
          %v416 = vld [vmem:[%s382 + $0x30] sm:$0xff]
          %v417 = vld [vmem:[%s382 + $0x38] sm:$0xff]
          %vm418 = vcmask 261120
          %419 = vst.msk [vmem:[#allocation2] sm:$0xff] %vm418, %v410
          %420 = vst.msk [vmem:[#allocation2 + $0x8] sm:$0xff] %vm418, %v411
          %421 = vst.msk [vmem:[#allocation2 + $0x10] sm:$0xff] %vm418, %v412
          %422 = vst.msk [vmem:[#allocation2 + $0x18] sm:$0xff] %vm418, %v413
          %423 = vst.msk [vmem:[#allocation2 + $0x20] sm:$0xff] %vm418, %v414
          %424 = vst.msk [vmem:[#allocation2 + $0x28] sm:$0xff] %vm418, %v415
          %425 = vst.msk [vmem:[#allocation2 + $0x30] sm:$0xff] %vm418, %v416
          %426 = vst.msk [vmem:[#allocation2 + $0x38] sm:$0xff] %vm418, %v417
        $region56: #{tpu_custom_call.1} parent=47 // pred_fallthru
          _
        %v427 = vld [vmem:[#allocation2] sm:$0xff]
        %v428 = vld [vmem:[#allocation2 + $0x8] sm:$0xff]
        %v429 = vld [vmem:[#allocation2 + $0x10] sm:$0xff]
        %v430 = vld [vmem:[#allocation2 + $0x18] sm:$0xff]
        %v431 = vld [vmem:[#allocation2 + $0x20] sm:$0xff]
        %v432 = vld [vmem:[#allocation2 + $0x28] sm:$0xff]
        %v433 = vld [vmem:[#allocation2 + $0x30] sm:$0xff]
        %v434 = vld [vmem:[#allocation2 + $0x38] sm:$0xff]
        %v435 = vld [vmem:[%s325] sm:$0xff]
        %vm436 = vcmask 261120
        %v437 = vsel %vm436, %v427, 0.0
        %438 = vadd.xlane.f32.xlu0 %v437
        %v439 = vpop.xlane.xlu0 %438
        %v440 = vsel %vm436, %v428, 0.0
        %441 = vadd.xlane.f32.xlu0 %v440
        %v442 = vpop.xlane.xlu0 %441
        %v443 = vsel %vm436, %v429, 0.0
        %444 = vadd.xlane.f32.xlu0 %v443
        %v445 = vpop.xlane.xlu0 %444
        %v446 = vsel %vm436, %v430, 0.0
        %447 = vadd.xlane.f32.xlu0 %v446
        %v448 = vpop.xlane.xlu0 %447
        %v449 = vsel %vm436, %v431, 0.0
        %450 = vadd.xlane.f32.xlu0 %v449
        %v451 = vpop.xlane.xlu0 %450
        %v452 = vsel %vm436, %v432, 0.0
        %453 = vadd.xlane.f32.xlu0 %v452
        %v454 = vpop.xlane.xlu0 %453
        %v455 = vsel %vm436, %v433, 0.0
        %456 = vadd.xlane.f32.xlu0 %v455
        %v457 = vpop.xlane.xlu0 %456
        %v458 = vsel %vm436, %v434, 0.0
        %459 = vadd.xlane.f32.xlu0 %v458
        %v460 = vpop.xlane.xlu0 %459
        %v461 = vrcp.pop 32.0
        %v462 = vmul.f32 %v439, %v461
        %v463 = vmul.f32 %v442, %v461
        %v464 = vmul.f32 %v445, %v461
        %v465 = vmul.f32 %v448, %v461
        %v466 = vmul.f32 %v451, %v461
        %v467 = vmul.f32 %v454, %v461
        %v468 = vmul.f32 %v457, %v461
        %v469 = vmul.f32 %v460, %v461
        %v470 = vsub.f32 %v427, %v462
        %v471 = vsub.f32 %v428, %v463
        %v472 = vsub.f32 %v429, %v464
        %v473 = vsub.f32 %v430, %v465
        %v474 = vsub.f32 %v431, %v466
        %v475 = vsub.f32 %v432, %v467
        %v476 = vsub.f32 %v433, %v468
        %v477 = vsub.f32 %v434, %v469
        %v478 = vmul.f32 %v470, %v470
        %v479 = vmul.f32 %v471, %v471
        %v480 = vmul.f32 %v472, %v472
        %v481 = vmul.f32 %v473, %v473
        %v482 = vmul.f32 %v474, %v474
        %v483 = vmul.f32 %v475, %v475
        %v484 = vmul.f32 %v476, %v476
        %v485 = vmul.f32 %v477, %v477
        %v486 = vsel %vm436, %v478, 0.0
        %487 = vadd.xlane.f32.xlu0 %v486
        %v488 = vpop.xlane.xlu0 %487
        %v489 = vsel %vm436, %v479, 0.0
        %490 = vadd.xlane.f32.xlu0 %v489
        %v491 = vpop.xlane.xlu0 %490
        %v492 = vsel %vm436, %v480, 0.0
        %493 = vadd.xlane.f32.xlu0 %v492
        %v494 = vpop.xlane.xlu0 %493
        %v495 = vsel %vm436, %v481, 0.0
        %496 = vadd.xlane.f32.xlu0 %v495
        %v497 = vpop.xlane.xlu0 %496
        %v498 = vsel %vm436, %v482, 0.0
        %499 = vadd.xlane.f32.xlu0 %v498
        %v500 = vpop.xlane.xlu0 %499
        %v501 = vsel %vm436, %v483, 0.0
        %502 = vadd.xlane.f32.xlu0 %v501
        %v503 = vpop.xlane.xlu0 %502
        %v504 = vsel %vm436, %v484, 0.0
        %505 = vadd.xlane.f32.xlu0 %v504
        %v506 = vpop.xlane.xlu0 %505
        %v507 = vsel %vm436, %v485, 0.0
        %508 = vadd.xlane.f32.xlu0 %v507
        %v509 = vpop.xlane.xlu0 %508
        %v510 = vmul.f32 %v488, %v461
        %v511 = vmul.f32 %v491, %v461
        %v512 = vmul.f32 %v494, %v461
        %v513 = vmul.f32 %v497, %v461
        %v514 = vmul.f32 %v500, %v461
        %v515 = vmul.f32 %v503, %v461
        %v516 = vmul.f32 %v506, %v461
        %v517 = vmul.f32 %v509, %v461
        %v518 = vadd.f32 %v510, 1e-05
        %v519 = vadd.f32 %v511, 1e-05
        %v520 = vadd.f32 %v512, 1e-05
        %v521 = vadd.f32 %v513, 1e-05
        %v522 = vadd.f32 %v514, 1e-05
        %v523 = vadd.f32 %v515, 1e-05
        %v524 = vadd.f32 %v516, 1e-05
        %v525 = vadd.f32 %v517, 1e-05
        %v526 = vrsqrt.pop %v518
        %v527 = vrsqrt.pop %v519
        %v528 = vrsqrt.pop %v520
        %v529 = vrsqrt.pop %v521
        %v530 = vrsqrt.pop %v522
        %v531 = vrsqrt.pop %v523
        %v532 = vrsqrt.pop %v524
        %v533 = vrsqrt.pop %v525
        %v534 = vmul.f32 %v470, %v526
        %v535 = vmul.f32 %v471, %v527
        %v536 = vmul.f32 %v472, %v528
        %v537 = vmul.f32 %v473, %v529
        %v538 = vmul.f32 %v474, %v530
        %v539 = vmul.f32 %v475, %v531
        %v540 = vmul.f32 %v476, %v532
        %v541 = vmul.f32 %v477, %v533
        %v542 = vlaneseq
        %v543 = vshrl.u32 %v542, 7
        %v544 = vsub.s32 0, %v543
        %v545 = vrot.slane %v435, %v544
        %v546 = vmul.f32 %v534, %v545
        %v547 = vmul.f32 %v535, %v545
        %v548 = vmul.f32 %v536, %v545
        %v549 = vmul.f32 %v537, %v545
        %v550 = vmul.f32 %v538, %v545
        %v551 = vmul.f32 %v539, %v545
        %v552 = vmul.f32 %v540, %v545
        %v553 = vmul.f32 %v541, %v545
        %v554 = vlaneseq
        %v555 = vshrl.u32 %v554, 7
        %v556 = vsub.s32 1, %v555
        %v557 = vrot.slane %v435, %v556
        %v558 = vadd.f32 %v546, %v557
        %v559 = vadd.f32 %v547, %v557
        %v560 = vadd.f32 %v548, %v557
        %v561 = vadd.f32 %v549, %v557
        %v562 = vadd.f32 %v550, %v557
        %v563 = vadd.f32 %v551, %v557
        %v564 = vadd.f32 %v552, %v557
        %v565 = vadd.f32 %v553, %v557
        %v566 = vpack.c.bf16 %v559, %v558
        %v567 = vpack.c.bf16 %v561, %v560
        %v568 = vpack.c.bf16 %v563, %v562
        %v569 = vpack.c.bf16 %v565, %v564
        %v570 = vld [vmem:[%s388] sm:$0xf]
        %v571 = vld [vmem:[%s388 + $0x4] sm:$0xf]
        %v572 = vld [vmem:[%s388 + $0x8] sm:$0xf]
        %v573 = vld [vmem:[%s388 + $0xc] sm:$0xf]
        %v574 = vlaneseq
        %v575 = vshrl.u32 %v574, 7
        %v576 = vsub.s32 2, %v575
        %v577 = vrot.slane %v435, %v576
        %v582 = vunpack.c.l.b16 %v570
        %v583 = vunpack.c.l.b16 %v571
        %v584 = vunpack.c.l.b16 %v572
        %v585 = vunpack.c.l.b16 %v573
        %v586 = vpack.c.b16 %v583, %v582
        %v587 = vpack.c.b16 %v585, %v584
        %v591 = vsel %vm436, %v566, 0
        %v594 = vsel %vm436, %v567, 0
        %v597 = vsel %vm436, %v568, 0
        %v600 = vsel %vm436, %v569, 0
        %602 = vmatprep.subr.bf16.mxu0 0
        %603 = vmatpush1.bf16.msra.mxu0 %v586
        %604 = vmatprep.subr.bf16.mxu0 0
        %605 = vmatpush1.bf16.msra.mxu0 %v587
        %606 = vmatprep.subr.bf16.mxu0 0
        %607 = vmatpush1.bf16.msra.mxu0 0
        %608 = vmatprep.subr.bf16.mxu0 0
        %609 = vmatpush1.bf16.msra.mxu0 0
        %610 = vmatprep.subr.bf16.mxu0 0
        %611 = vmatpush1.bf16.msra.mxu0 0
        %612 = vmatprep.subr.bf16.mxu0 0
        %613 = vmatpush1.bf16.msra.mxu0 0
        %614 = vmatprep.subr.bf16.mxu0 0
        %615 = vmatpush1.bf16.msra.mxu0 0
        %616 = vmatprep.subr.bf16.mxu0 0
        %617 = vmatpush1.bf16.msra.mxu0 0
        %618 = vmatprep.subr.bf16.mxu0 0
        %619 = vmatpush1.bf16.msra.mxu0 0
        %620 = vmatprep.subr.bf16.mxu0 0
        %621 = vmatpush1.bf16.msra.mxu0 0
        %622 = vmatprep.subr.bf16.mxu0 0
        %623 = vmatpush1.bf16.msra.mxu0 0
        %624 = vmatprep.subr.bf16.mxu0 0
        %625 = vmatpush1.bf16.msra.mxu0 0
        %626 = vmatprep.subr.bf16.mxu0 0
        %627 = vmatpush1.bf16.msra.mxu0 0
        %628 = vmatprep.subr.bf16.mxu0 0
        %629 = vmatpush1.bf16.msra.mxu0 0
        %630 = vmatprep.subr.bf16.mxu0 0
        %631 = vmatpush1.bf16.msra.mxu0 0
        %632 = vmatprep.subr.bf16.mxu0 0
        %633 = vmatpush1.bf16.msra.mxu0 0
        %634 = vmatprep.mubr.bf16.mxu0 0
        %635 = vmatmul.mubr.bf16.gmra.mrb[0].mxu0 %v591
        %v636 = vpop.f32.mrb[0].mxu0
        %v637 = vadd.f32 %v577, %v636
        %v638 = vpop.f32.mrb[0].mxu0
        %v639 = vpop.f32.mrb[0].mxu0
        %v640 = vadd.f32 %v577, %v639
        %v641 = vpop.f32.mrb[0].mxu0
        %642 = vmatprep.mubr.bf16.mxu0 0
        %643 = vmatmul.mubr.bf16.gmra.mrb[0].mxu0 %v594
        %v644 = vpop.f32.mrb[0].mxu0
        %v645 = vadd.f32 %v577, %v644
        %v646 = vpop.f32.mrb[0].mxu0
        %v647 = vpop.f32.mrb[0].mxu0
        %v648 = vadd.f32 %v577, %v647
        %v649 = vpop.f32.mrb[0].mxu0
        %650 = vmatprep.mubr.bf16.mxu0 0
        %651 = vmatmul.mubr.bf16.gmra.mrb[0].mxu0 %v597
        %v652 = vpop.f32.mrb[0].mxu0
        %v653 = vadd.f32 %v577, %v652
        %v654 = vpop.f32.mrb[0].mxu0
        %v655 = vpop.f32.mrb[0].mxu0
        %v656 = vadd.f32 %v577, %v655
        %v657 = vpop.f32.mrb[0].mxu0
        %658 = vmatprep.mubr.bf16.mxu0 0
        %659 = vmatmul.mubr.bf16.gmra.mrb[0].mxu0 %v600
        %v660 = vpop.f32.mrb[0].mxu0
        %v661 = vadd.f32 %v577, %v660
        %v662 = vpop.f32.mrb[0].mxu0
        %v663 = vpop.f32.mrb[0].mxu0
        %v664 = vadd.f32 %v577, %v663
        %v665 = vpop.f32.mrb[0].mxu0
        %666 = vdwg.mxu0
        %v667 = vpack.c.bf16 %v640, %v637
        %v668 = vpack.c.bf16 %v648, %v645
        %v669 = vpack.c.bf16 %v656, %v653
        %v670 = vpack.c.bf16 %v664, %v661
        %673 = vrot.lane.b32.xlu0 %v667, 96
        %v674 = vpop.permute.xlu0 %673
        %675 = vrot.lane.b32.xlu0 %v668, 96
        %v676 = vpop.permute.xlu0 %675
        %vm677 = vcmask 64512
        %v679 = vsel %vm677, %v667, 0
        %v682 = vsel %vm677, %v668, 0
        %v685 = vsel %vm677, %v674, 0
        %v688 = vsel %vm677, %v676, 0
        %690 = vmatprep.subr.bf16.mxu0 0
        %691 = vmatpush1.bf16.xpose.msra.mxu0 %v685
        %692 = vmatprep.subr.bf16.mxu0 0
        %693 = vmatpush1.bf16.xpose.msra.mxu0 %v688
        %694 = vmatprep.subr.bf16.mxu0 0
        %695 = vmatpush1.bf16.xpose.msra.mxu0 0
        %696 = vmatprep.subr.bf16.mxu0 0
        %697 = vmatpush1.bf16.xpose.msra.mxu0 0
        %698 = vmatprep.subr.bf16.mxu0 0
        %699 = vmatpush1.bf16.xpose.msra.mxu0 0
        %700 = vmatprep.subr.bf16.mxu0 0
        %701 = vmatpush1.bf16.xpose.msra.mxu0 0
        %702 = vmatprep.subr.bf16.mxu0 0
        %703 = vmatpush1.bf16.xpose.msra.mxu0 0
        %704 = vmatprep.subr.bf16.mxu0 0
        %705 = vmatpush1.bf16.xpose.msra.mxu0 0
        %706 = vmatprep.subr.bf16.mxu0 0
        %707 = vmatpush1.bf16.xpose.msra.mxu0 0
        %708 = vmatprep.subr.bf16.mxu0 0
        %709 = vmatpush1.bf16.xpose.msra.mxu0 0
        %710 = vmatprep.subr.bf16.mxu0 0
        %711 = vmatpush1.bf16.xpose.msra.mxu0 0
        %712 = vmatprep.subr.bf16.mxu0 0
        %713 = vmatpush1.bf16.xpose.msra.mxu0 0
        %714 = vmatprep.subr.bf16.mxu0 0
        %715 = vmatpush1.bf16.xpose.msra.mxu0 0
        %716 = vmatprep.subr.bf16.mxu0 0
        %717 = vmatpush1.bf16.xpose.msra.mxu0 0
        %718 = vmatprep.subr.bf16.mxu0 0
        %719 = vmatpush1.bf16.xpose.msra.mxu0 0
        %720 = vmatprep.subr.bf16.mxu0 0
        %721 = vmatpush1.bf16.xpose.msra.mxu0 0
        %722 = vmatprep.mubr.bf16.mxu0 0
        %723 = vmatmul.mubr.bf16.gmra.mrb[0].mxu0 %v679
        %v724 = vpop.f32.mrb[0].mxu0
        %v725 = vadd.f32 0.0, %v724
        %v726 = vpop.f32.mrb[0].mxu0
        %v727 = vpop.f32.mrb[0].mxu0
        %v728 = vadd.f32 0.0, %v727
        %v729 = vpop.f32.mrb[0].mxu0
        %730 = vmatprep.mubr.bf16.mxu0 0
        %731 = vmatmul.mubr.bf16.gmra.mrb[0].mxu0 %v682
        %v732 = vpop.f32.mrb[0].mxu0
        %v733 = vadd.f32 0.0, %v732
        %v734 = vpop.f32.mrb[0].mxu0
        %v735 = vpop.f32.mrb[0].mxu0
        %v736 = vadd.f32 0.0, %v735
        %v737 = vpop.f32.mrb[0].mxu0
        %738 = vdwg.mxu0
        %741 = vrot.lane.b32.xlu0 %v669, 96
        %v742 = vpop.permute.xlu0 %741
        %743 = vrot.lane.b32.xlu0 %v670, 96
        %v744 = vpop.permute.xlu0 %743
        %v746 = vsel %vm677, %v669, 0
        %v749 = vsel %vm677, %v670, 0
        %v752 = vsel %vm677, %v742, 0
        %v755 = vsel %vm677, %v744, 0
        %757 = vmatprep.subr.bf16.mxu0 0
        %758 = vmatpush1.bf16.xpose.msra.mxu0 %v752
        %759 = vmatprep.subr.bf16.mxu0 0
        %760 = vmatpush1.bf16.xpose.msra.mxu0 %v755
        %761 = vmatprep.subr.bf16.mxu0 0
        %762 = vmatpush1.bf16.xpose.msra.mxu0 0
        %763 = vmatprep.subr.bf16.mxu0 0
        %764 = vmatpush1.bf16.xpose.msra.mxu0 0
        %765 = vmatprep.subr.bf16.mxu0 0
        %766 = vmatpush1.bf16.xpose.msra.mxu0 0
        %767 = vmatprep.subr.bf16.mxu0 0
        %768 = vmatpush1.bf16.xpose.msra.mxu0 0
        %769 = vmatprep.subr.bf16.mxu0 0
        %770 = vmatpush1.bf16.xpose.msra.mxu0 0
        %771 = vmatprep.subr.bf16.mxu0 0
        %772 = vmatpush1.bf16.xpose.msra.mxu0 0
        %773 = vmatprep.subr.bf16.mxu0 0
        %774 = vmatpush1.bf16.xpose.msra.mxu0 0
        %775 = vmatprep.subr.bf16.mxu0 0
        %776 = vmatpush1.bf16.xpose.msra.mxu0 0
        %777 = vmatprep.subr.bf16.mxu0 0
        %778 = vmatpush1.bf16.xpose.msra.mxu0 0
        %779 = vmatprep.subr.bf16.mxu0 0
        %780 = vmatpush1.bf16.xpose.msra.mxu0 0
        %781 = vmatprep.subr.bf16.mxu0 0
        %782 = vmatpush1.bf16.xpose.msra.mxu0 0
        %783 = vmatprep.subr.bf16.mxu0 0
        %784 = vmatpush1.bf16.xpose.msra.mxu0 0
        %785 = vmatprep.subr.bf16.mxu0 0
        %786 = vmatpush1.bf16.xpose.msra.mxu0 0
        %787 = vmatprep.subr.bf16.mxu0 0
        %788 = vmatpush1.bf16.xpose.msra.mxu0 0
        %789 = vmatprep.mubr.bf16.mxu0 0
        %790 = vmatmul.mubr.bf16.gmra.mrb[0].mxu0 %v746
        %v791 = vpop.f32.mrb[0].mxu0
        %v792 = vadd.f32 0.0, %v791
        %v793 = vpop.f32.mrb[0].mxu0
        %v794 = vpop.f32.mrb[0].mxu0
        %v795 = vadd.f32 0.0, %v794
        %v796 = vpop.f32.mrb[0].mxu0
        %797 = vmatprep.mubr.bf16.mxu0 0
        %798 = vmatmul.mubr.bf16.gmra.mrb[0].mxu0 %v749
        %v799 = vpop.f32.mrb[0].mxu0
        %v800 = vadd.f32 0.0, %v799
        %v801 = vpop.f32.mrb[0].mxu0
        %v802 = vpop.f32.mrb[0].mxu0
        %v803 = vadd.f32 0.0, %v802
        %v804 = vpop.f32.mrb[0].mxu0
        %805 = vdwg.mxu0
        %v806 = vmul.f32 %v725, 0.35355338
        %v807 = vmul.f32 %v728, 0.35355338
        %v808 = vmul.f32 %v733, 0.35355338
        %v809 = vmul.f32 %v736, 0.35355338
        %v810 = vmul.f32 %v792, 0.35355338
        %v811 = vmul.f32 %v795, 0.35355338
        %v812 = vmul.f32 %v800, 0.35355338
        %v813 = vmul.f32 %v803, 0.35355338
        %v814 = vsel %vm436, %v806, -inf
        %815 = vmax.xlane.f32.xlu0 %v814
        %v816 = vpop.xlane.xlu0 %815
        %v817 = vsel %vm436, %v807, -inf
        %818 = vmax.xlane.f32.xlu0 %v817
        %v819 = vpop.xlane.xlu0 %818
        %v820 = vsel %vm436, %v808, -inf
        %821 = vmax.xlane.f32.xlu0 %v820
        %v822 = vpop.xlane.xlu0 %821
        %v823 = vsel %vm436, %v809, -inf
        %824 = vmax.xlane.f32.xlu0 %v823
        %v825 = vpop.xlane.xlu0 %824
        %v826 = vsel %vm436, %v810, -inf
        %827 = vmax.xlane.f32.xlu0 %v826
        %v828 = vpop.xlane.xlu0 %827
        %v829 = vsel %vm436, %v811, -inf
        %830 = vmax.xlane.f32.xlu0 %v829
        %v831 = vpop.xlane.xlu0 %830
        %v832 = vsel %vm436, %v812, -inf
        %833 = vmax.xlane.f32.xlu0 %v832
        %v834 = vpop.xlane.xlu0 %833
        %v835 = vsel %vm436, %v813, -inf
        %836 = vmax.xlane.f32.xlu0 %v835
        %v837 = vpop.xlane.xlu0 %836
        %v838 = vsub.f32 %v806, %v816
        %v839 = vsub.f32 %v807, %v819
        %v840 = vsub.f32 %v808, %v822
        %v841 = vsub.f32 %v809, %v825
        %v842 = vsub.f32 %v810, %v828
        %v843 = vsub.f32 %v811, %v831
        %v844 = vsub.f32 %v812, %v834
        %v845 = vsub.f32 %v813, %v837
        %v846 = vmul.f32 %v838, 1.442695
        %v847 = vpow.pop %v846
        %v848 = vmul.f32 %v839, 1.442695
        %v849 = vpow.pop %v848
        %v850 = vmul.f32 %v840, 1.442695
        %v851 = vpow.pop %v850
        %v852 = vmul.f32 %v841, 1.442695
        %v853 = vpow.pop %v852
        %v854 = vmul.f32 %v842, 1.442695
        %v855 = vpow.pop %v854
        %v856 = vmul.f32 %v843, 1.442695
        %v857 = vpow.pop %v856
        %v858 = vmul.f32 %v844, 1.442695
        %v859 = vpow.pop %v858
        %v860 = vmul.f32 %v845, 1.442695
        %v861 = vpow.pop %v860
        %v862 = vsel %vm436, %v847, 0.0
        %863 = vadd.xlane.f32.xlu0 %v862
        %v864 = vpop.xlane.xlu0 %863
        %v865 = vsel %vm436, %v849, 0.0
        %866 = vadd.xlane.f32.xlu0 %v865
        %v867 = vpop.xlane.xlu0 %866
        %v868 = vsel %vm436, %v851, 0.0
        %869 = vadd.xlane.f32.xlu0 %v868
        %v870 = vpop.xlane.xlu0 %869
        %v871 = vsel %vm436, %v853, 0.0
        %872 = vadd.xlane.f32.xlu0 %v871
        %v873 = vpop.xlane.xlu0 %872
        %v874 = vsel %vm436, %v855, 0.0
        %875 = vadd.xlane.f32.xlu0 %v874
        %v876 = vpop.xlane.xlu0 %875
        %v877 = vsel %vm436, %v857, 0.0
        %878 = vadd.xlane.f32.xlu0 %v877
        %v879 = vpop.xlane.xlu0 %878
        %v880 = vsel %vm436, %v859, 0.0
        %881 = vadd.xlane.f32.xlu0 %v880
        %v882 = vpop.xlane.xlu0 %881
        %v883 = vsel %vm436, %v861, 0.0
        %884 = vadd.xlane.f32.xlu0 %v883
        %v885 = vpop.xlane.xlu0 %884
        %v886 = vrcp.pop %v864
        %v887 = vrcp.pop %v867
        %v888 = vrcp.pop %v870
        %v889 = vrcp.pop %v873
        %v890 = vrcp.pop %v876
        %v891 = vrcp.pop %v879
        %v892 = vrcp.pop %v882
        %v893 = vrcp.pop %v885
        %v894 = vmul.f32 %v847, %v886
        %v895 = vmul.f32 %v849, %v887
        %v896 = vmul.f32 %v851, %v888
        %v897 = vmul.f32 %v853, %v889
        %v898 = vmul.f32 %v855, %v890
        %v899 = vmul.f32 %v857, %v891
        %v900 = vmul.f32 %v859, %v892
        %v901 = vmul.f32 %v861, %v893
        %v902 = vpack.c.bf16 %v895, %v894
        %v903 = vpack.c.bf16 %v897, %v896
        %v904 = vpack.c.bf16 %v899, %v898
        %v905 = vpack.c.bf16 %v901, %v900
        %906 = vrot.lane.b32.xlu0 %v667, 64
        %v907 = vpop.permute.xlu0 %906
        %908 = vrot.lane.b32.xlu0 %v668, 64
        %v909 = vpop.permute.xlu0 %908
        %v913 = vsel %vm436, %v902, 0
        %v916 = vsel %vm436, %v903, 0
        %918 = vmatprep.subr.bf16.mxu0 0
        %919 = vmatpush1.bf16.msra.mxu0 %v907
        %920 = vmatprep.subr.bf16.mxu0 0
        %921 = vmatpush1.bf16.msra.mxu0 %v909
        %922 = vmatprep.subr.bf16.mxu0 0
        %923 = vmatpush1.bf16.msra.mxu0 0
        %924 = vmatprep.subr.bf16.mxu0 0
        %925 = vmatpush1.bf16.msra.mxu0 0
        %926 = vmatprep.subr.bf16.mxu0 0
        %927 = vmatpush1.bf16.msra.mxu0 0
        %928 = vmatprep.subr.bf16.mxu0 0
        %929 = vmatpush1.bf16.msra.mxu0 0
        %930 = vmatprep.subr.bf16.mxu0 0
        %931 = vmatpush1.bf16.msra.mxu0 0
        %932 = vmatprep.subr.bf16.mxu0 0
        %933 = vmatpush1.bf16.msra.mxu0 0
        %934 = vmatprep.subr.bf16.mxu0 0
        %935 = vmatpush1.bf16.msra.mxu0 0
        %936 = vmatprep.subr.bf16.mxu0 0
        %937 = vmatpush1.bf16.msra.mxu0 0
        %938 = vmatprep.subr.bf16.mxu0 0
        %939 = vmatpush1.bf16.msra.mxu0 0
        %940 = vmatprep.subr.bf16.mxu0 0
        %941 = vmatpush1.bf16.msra.mxu0 0
        %942 = vmatprep.subr.bf16.mxu0 0
        %943 = vmatpush1.bf16.msra.mxu0 0
        %944 = vmatprep.subr.bf16.mxu0 0
        %945 = vmatpush1.bf16.msra.mxu0 0
        %946 = vmatprep.subr.bf16.mxu0 0
        %947 = vmatpush1.bf16.msra.mxu0 0
        %948 = vmatprep.subr.bf16.mxu0 0
        %949 = vmatpush1.bf16.msra.mxu0 0
        %950 = vmatprep.mubr.bf16.mxu0 0
        %951 = vmatmul.mubr.bf16.gmra.mrb[0].mxu0 %v913
        %v952 = vpop.f32.mrb[0].mxu0
        %v953 = vadd.f32 0.0, %v952
        %v954 = vpop.f32.mrb[0].mxu0
        %v955 = vpop.f32.mrb[0].mxu0
        %v956 = vadd.f32 0.0, %v955
        %v957 = vpop.f32.mrb[0].mxu0
        %958 = vmatprep.mubr.bf16.mxu0 0
        %959 = vmatmul.mubr.bf16.gmra.mrb[0].mxu0 %v916
        %v960 = vpop.f32.mrb[0].mxu0
        %v961 = vadd.f32 0.0, %v960
        %v962 = vpop.f32.mrb[0].mxu0
        %v963 = vpop.f32.mrb[0].mxu0
        %v964 = vadd.f32 0.0, %v963
        %v965 = vpop.f32.mrb[0].mxu0
        %966 = vdwg.mxu0
        %967 = vrot.lane.b32.xlu0 %v669, 64
        %v968 = vpop.permute.xlu0 %967
        %969 = vrot.lane.b32.xlu0 %v670, 64
        %v970 = vpop.permute.xlu0 %969
        %v974 = vsel %vm436, %v904, 0
        %v977 = vsel %vm436, %v905, 0
        %979 = vmatprep.subr.bf16.mxu0 0
        %980 = vmatpush1.bf16.msra.mxu0 %v968
        %981 = vmatprep.subr.bf16.mxu0 0
        %982 = vmatpush1.bf16.msra.mxu0 %v970
        %983 = vmatprep.subr.bf16.mxu0 0
        %984 = vmatpush1.bf16.msra.mxu0 0
        %985 = vmatprep.subr.bf16.mxu0 0
        %986 = vmatpush1.bf16.msra.mxu0 0
        %987 = vmatprep.subr.bf16.mxu0 0
        %988 = vmatpush1.bf16.msra.mxu0 0
        %989 = vmatprep.subr.bf16.mxu0 0
        %990 = vmatpush1.bf16.msra.mxu0 0
        %991 = vmatprep.subr.bf16.mxu0 0
        %992 = vmatpush1.bf16.msra.mxu0 0
        %993 = vmatprep.subr.bf16.mxu0 0
        %994 = vmatpush1.bf16.msra.mxu0 0
        %995 = vmatprep.subr.bf16.mxu0 0
        %996 = vmatpush1.bf16.msra.mxu0 0
        %997 = vmatprep.subr.bf16.mxu0 0
        %998 = vmatpush1.bf16.msra.mxu0 0
        %999 = vmatprep.subr.bf16.mxu0 0
        %1000 = vmatpush1.bf16.msra.mxu0 0
        %1001 = vmatprep.subr.bf16.mxu0 0
        %1002 = vmatpush1.bf16.msra.mxu0 0
        %1003 = vmatprep.subr.bf16.mxu0 0
        %1004 = vmatpush1.bf16.msra.mxu0 0
        %1005 = vmatprep.subr.bf16.mxu0 0
        %1006 = vmatpush1.bf16.msra.mxu0 0
        %1007 = vmatprep.subr.bf16.mxu0 0
        %1008 = vmatpush1.bf16.msra.mxu0 0
        %1009 = vmatprep.subr.bf16.mxu0 0
        %1010 = vmatpush1.bf16.msra.mxu0 0
        %1011 = vmatprep.mubr.bf16.mxu0 0
        %1012 = vmatmul.mubr.bf16.gmra.mrb[0].mxu0 %v974
        %v1013 = vpop.f32.mrb[0].mxu0
        %v1014 = vadd.f32 0.0, %v1013
        %v1015 = vpop.f32.mrb[0].mxu0
        %v1016 = vpop.f32.mrb[0].mxu0
        %v1017 = vadd.f32 0.0, %v1016
        %v1018 = vpop.f32.mrb[0].mxu0
        %1019 = vmatprep.mubr.bf16.mxu0 0
        %1020 = vmatmul.mubr.bf16.gmra.mrb[0].mxu0 %v977
        %v1021 = vpop.f32.mrb[0].mxu0
        %v1022 = vadd.f32 0.0, %v1021
        %v1023 = vpop.f32.mrb[0].mxu0
        %v1024 = vpop.f32.mrb[0].mxu0
        %v1025 = vadd.f32 0.0, %v1024
        %v1026 = vpop.f32.mrb[0].mxu0
        %1027 = vdwg.mxu0
        %v1028 = vpack.c.bf16 %v956, %v953
        %v1029 = vpack.c.bf16 %v964, %v961
        %v1030 = vpack.c.bf16 %v1017, %v1014
        %v1031 = vpack.c.bf16 %v1025, %v1022
        %1032 = vrot.lane.b32.xlu0 %v667, 120
        %v1033 = vpop.permute.xlu0 %1032
        %1034 = vrot.lane.b32.xlu0 %v668, 120
        %v1035 = vpop.permute.xlu0 %1034
        %1036 = vrot.lane.b32.xlu0 %v667, 88
        %v1037 = vpop.permute.xlu0 %1036
        %1038 = vrot.lane.b32.xlu0 %v668, 88
        %v1039 = vpop.permute.xlu0 %1038
        %v1041 = vsel %vm677, %v1033, 0
        %v1044 = vsel %vm677, %v1035, 0
        %v1047 = vsel %vm677, %v1037, 0
        %v1050 = vsel %vm677, %v1039, 0
        %1052 = vmatprep.subr.bf16.mxu0 0
        %1053 = vmatpush1.bf16.xpose.msra.mxu0 %v1047
        %1054 = vmatprep.subr.bf16.mxu0 0
        %1055 = vmatpush1.bf16.xpose.msra.mxu0 %v1050
        %1056 = vmatprep.subr.bf16.mxu0 0
        %1057 = vmatpush1.bf16.xpose.msra.mxu0 0
        %1058 = vmatprep.subr.bf16.mxu0 0
        %1059 = vmatpush1.bf16.xpose.msra.mxu0 0
        %1060 = vmatprep.subr.bf16.mxu0 0
        %1061 = vmatpush1.bf16.xpose.msra.mxu0 0
        %1062 = vmatprep.subr.bf16.mxu0 0
        %1063 = vmatpush1.bf16.xpose.msra.mxu0 0
        %1064 = vmatprep.subr.bf16.mxu0 0
        %1065 = vmatpush1.bf16.xpose.msra.mxu0 0
        %1066 = vmatprep.subr.bf16.mxu0 0
        %1067 = vmatpush1.bf16.xpose.msra.mxu0 0
        %1068 = vmatprep.subr.bf16.mxu0 0
        %1069 = vmatpush1.bf16.xpose.msra.mxu0 0
        %1070 = vmatprep.subr.bf16.mxu0 0
        %1071 = vmatpush1.bf16.xpose.msra.mxu0 0
        %1072 = vmatprep.subr.bf16.mxu0 0
        %1073 = vmatpush1.bf16.xpose.msra.mxu0 0
        %1074 = vmatprep.subr.bf16.mxu0 0
        %1075 = vmatpush1.bf16.xpose.msra.mxu0 0
        %1076 = vmatprep.subr.bf16.mxu0 0
        %1077 = vmatpush1.bf16.xpose.msra.mxu0 0
        %1078 = vmatprep.subr.bf16.mxu0 0
        %1079 = vmatpush1.bf16.xpose.msra.mxu0 0
        %1080 = vmatprep.subr.bf16.mxu0 0
        %1081 = vmatpush1.bf16.xpose.msra.mxu0 0
        %1082 = vmatprep.subr.bf16.mxu0 0
        %1083 = vmatpush1.bf16.xpose.msra.mxu0 0
        %1084 = vmatprep.mubr.bf16.mxu0 0
        %1085 = vmatmul.mubr.bf16.gmra.mrb[0].mxu0 %v1041
        %v1086 = vpop.f32.mrb[0].mxu0
        %v1087 = vadd.f32 0.0, %v1086
        %v1088 = vpop.f32.mrb[0].mxu0
        %v1089 = vpop.f32.mrb[0].mxu0
        %v1090 = vadd.f32 0.0, %v1089
        %v1091 = vpop.f32.mrb[0].mxu0
        %1092 = vmatprep.mubr.bf16.mxu0 0
        %1093 = vmatmul.mubr.bf16.gmra.mrb[0].mxu0 %v1044
        %v1094 = vpop.f32.mrb[0].mxu0
        %v1095 = vadd.f32 0.0, %v1094
        %v1096 = vpop.f32.mrb[0].mxu0
        %v1097 = vpop.f32.mrb[0].mxu0
        %v1098 = vadd.f32 0.0, %v1097
        %v1099 = vpop.f32.mrb[0].mxu0
        %1100 = vdwg.mxu0
        %1101 = vrot.lane.b32.xlu0 %v669, 120
        %v1102 = vpop.permute.xlu0 %1101
        %1103 = vrot.lane.b32.xlu0 %v670, 120
        %v1104 = vpop.permute.xlu0 %1103
        %1105 = vrot.lane.b32.xlu0 %v669, 88
        %v1106 = vpop.permute.xlu0 %1105
        %1107 = vrot.lane.b32.xlu0 %v670, 88
        %v1108 = vpop.permute.xlu0 %1107
        %v1110 = vsel %vm677, %v1102, 0
        %v1113 = vsel %vm677, %v1104, 0
        %v1116 = vsel %vm677, %v1106, 0
        %v1119 = vsel %vm677, %v1108, 0
        %1121 = vmatprep.subr.bf16.mxu0 0
        %1122 = vmatpush1.bf16.xpose.msra.mxu0 %v1116
        %1123 = vmatprep.subr.bf16.mxu0 0
        %1124 = vmatpush1.bf16.xpose.msra.mxu0 %v1119
        %1125 = vmatprep.subr.bf16.mxu0 0
        %1126 = vmatpush1.bf16.xpose.msra.mxu0 0
        %1127 = vmatprep.subr.bf16.mxu0 0
        %1128 = vmatpush1.bf16.xpose.msra.mxu0 0
        %1129 = vmatprep.subr.bf16.mxu0 0
        %1130 = vmatpush1.bf16.xpose.msra.mxu0 0
        %1131 = vmatprep.subr.bf16.mxu0 0
        %1132 = vmatpush1.bf16.xpose.msra.mxu0 0
        %1133 = vmatprep.subr.bf16.mxu0 0
        %1134 = vmatpush1.bf16.xpose.msra.mxu0 0
        %1135 = vmatprep.subr.bf16.mxu0 0
        %1136 = vmatpush1.bf16.xpose.msra.mxu0 0
        %1137 = vmatprep.subr.bf16.mxu0 0
        %1138 = vmatpush1.bf16.xpose.msra.mxu0 0
        %1139 = vmatprep.subr.bf16.mxu0 0
        %1140 = vmatpush1.bf16.xpose.msra.mxu0 0
        %1141 = vmatprep.subr.bf16.mxu0 0
        %1142 = vmatpush1.bf16.xpose.msra.mxu0 0
        %1143 = vmatprep.subr.bf16.mxu0 0
        %1144 = vmatpush1.bf16.xpose.msra.mxu0 0
        %1145 = vmatprep.subr.bf16.mxu0 0
        %1146 = vmatpush1.bf16.xpose.msra.mxu0 0
        %1147 = vmatprep.subr.bf16.mxu0 0
        %1148 = vmatpush1.bf16.xpose.msra.mxu0 0
        %1149 = vmatprep.subr.bf16.mxu0 0
        %1150 = vmatpush1.bf16.xpose.msra.mxu0 0
        %1151 = vmatprep.subr.bf16.mxu0 0
        %1152 = vmatpush1.bf16.xpose.msra.mxu0 0
        %1153 = vmatprep.mubr.bf16.mxu0 0
        %1154 = vmatmul.mubr.bf16.gmra.mrb[0].mxu0 %v1110
        %v1155 = vpop.f32.mrb[0].mxu0
        %v1156 = vadd.f32 0.0, %v1155
        %v1157 = vpop.f32.mrb[0].mxu0
        %v1158 = vpop.f32.mrb[0].mxu0
        %v1159 = vadd.f32 0.0, %v1158
        %v1160 = vpop.f32.mrb[0].mxu0
        %1161 = vmatprep.mubr.bf16.mxu0 0
        %1162 = vmatmul.mubr.bf16.gmra.mrb[0].mxu0 %v1113
        %v1163 = vpop.f32.mrb[0].mxu0
        %v1164 = vadd.f32 0.0, %v1163
        %v1165 = vpop.f32.mrb[0].mxu0
        %v1166 = vpop.f32.mrb[0].mxu0
        %v1167 = vadd.f32 0.0, %v1166
        %v1168 = vpop.f32.mrb[0].mxu0
        %1169 = vdwg.mxu0
        %v1170 = vmul.f32 %v1087, 0.35355338
        %v1171 = vmul.f32 %v1090, 0.35355338
        %v1172 = vmul.f32 %v1095, 0.35355338
        %v1173 = vmul.f32 %v1098, 0.35355338
        %v1174 = vmul.f32 %v1156, 0.35355338
        %v1175 = vmul.f32 %v1159, 0.35355338
        %v1176 = vmul.f32 %v1164, 0.35355338
        %v1177 = vmul.f32 %v1167, 0.35355338
        %v1178 = vsel %vm436, %v1170, -inf
        %1179 = vmax.xlane.f32.xlu0 %v1178
        %v1180 = vpop.xlane.xlu0 %1179
        %v1181 = vsel %vm436, %v1171, -inf
        %1182 = vmax.xlane.f32.xlu0 %v1181
        %v1183 = vpop.xlane.xlu0 %1182
        %v1184 = vsel %vm436, %v1172, -inf
        %1185 = vmax.xlane.f32.xlu0 %v1184
        %v1186 = vpop.xlane.xlu0 %1185
        %v1187 = vsel %vm436, %v1173, -inf
        %1188 = vmax.xlane.f32.xlu0 %v1187
        %v1189 = vpop.xlane.xlu0 %1188
        %v1190 = vsel %vm436, %v1174, -inf
        %1191 = vmax.xlane.f32.xlu0 %v1190
        %v1192 = vpop.xlane.xlu0 %1191
        %v1193 = vsel %vm436, %v1175, -inf
        %1194 = vmax.xlane.f32.xlu0 %v1193
        %v1195 = vpop.xlane.xlu0 %1194
        %v1196 = vsel %vm436, %v1176, -inf
        %1197 = vmax.xlane.f32.xlu0 %v1196
        %v1198 = vpop.xlane.xlu0 %1197
        %v1199 = vsel %vm436, %v1177, -inf
        %1200 = vmax.xlane.f32.xlu0 %v1199
        %v1201 = vpop.xlane.xlu0 %1200
        %v1202 = vsub.f32 %v1170, %v1180
        %v1203 = vsub.f32 %v1171, %v1183
        %v1204 = vsub.f32 %v1172, %v1186
        %v1205 = vsub.f32 %v1173, %v1189
        %v1206 = vsub.f32 %v1174, %v1192
        %v1207 = vsub.f32 %v1175, %v1195
        %v1208 = vsub.f32 %v1176, %v1198
        %v1209 = vsub.f32 %v1177, %v1201
        %v1210 = vmul.f32 %v1202, 1.442695
        %v1211 = vpow.pop %v1210
        %v1212 = vmul.f32 %v1203, 1.442695
        %v1213 = vpow.pop %v1212
        %v1214 = vmul.f32 %v1204, 1.442695
        %v1215 = vpow.pop %v1214
        %v1216 = vmul.f32 %v1205, 1.442695
        %v1217 = vpow.pop %v1216
        %v1218 = vmul.f32 %v1206, 1.442695
        %v1219 = vpow.pop %v1218
        %v1220 = vmul.f32 %v1207, 1.442695
        %v1221 = vpow.pop %v1220
        %v1222 = vmul.f32 %v1208, 1.442695
        %v1223 = vpow.pop %v1222
        %v1224 = vmul.f32 %v1209, 1.442695
        %v1225 = vpow.pop %v1224
        %v1226 = vsel %vm436, %v1211, 0.0
        %1227 = vadd.xlane.f32.xlu0 %v1226
        %v1228 = vpop.xlane.xlu0 %1227
        %v1229 = vsel %vm436, %v1213, 0.0
        %1230 = vadd.xlane.f32.xlu0 %v1229
        %v1231 = vpop.xlane.xlu0 %1230
        %v1232 = vsel %vm436, %v1215, 0.0
        %1233 = vadd.xlane.f32.xlu0 %v1232
        %v1234 = vpop.xlane.xlu0 %1233
        %v1235 = vsel %vm436, %v1217, 0.0
        %1236 = vadd.xlane.f32.xlu0 %v1235
        %v1237 = vpop.xlane.xlu0 %1236
        %v1238 = vsel %vm436, %v1219, 0.0
        %1239 = vadd.xlane.f32.xlu0 %v1238
        %v1240 = vpop.xlane.xlu0 %1239
        %v1241 = vsel %vm436, %v1221, 0.0
        %1242 = vadd.xlane.f32.xlu0 %v1241
        %v1243 = vpop.xlane.xlu0 %1242
        %v1244 = vsel %vm436, %v1223, 0.0
        %1245 = vadd.xlane.f32.xlu0 %v1244
        %v1246 = vpop.xlane.xlu0 %1245
        %v1247 = vsel %vm436, %v1225, 0.0
        %1248 = vadd.xlane.f32.xlu0 %v1247
        %v1249 = vpop.xlane.xlu0 %1248
        %v1250 = vrcp.pop %v1228
        %v1251 = vrcp.pop %v1231
        %v1252 = vrcp.pop %v1234
        %v1253 = vrcp.pop %v1237
        %v1254 = vrcp.pop %v1240
        %v1255 = vrcp.pop %v1243
        %v1256 = vrcp.pop %v1246
        %v1257 = vrcp.pop %v1249
        %v1258 = vmul.f32 %v1211, %v1250
        %v1259 = vmul.f32 %v1213, %v1251
        %v1260 = vmul.f32 %v1215, %v1252
        %v1261 = vmul.f32 %v1217, %v1253
        %v1262 = vmul.f32 %v1219, %v1254
        %v1263 = vmul.f32 %v1221, %v1255
        %v1264 = vmul.f32 %v1223, %v1256
        %v1265 = vmul.f32 %v1225, %v1257
        %v1266 = vpack.c.bf16 %v1259, %v1258
        %v1267 = vpack.c.bf16 %v1261, %v1260
        %v1268 = vpack.c.bf16 %v1263, %v1262
        %v1269 = vpack.c.bf16 %v1265, %v1264
        %1270 = vrot.lane.b32.xlu0 %v667, 56
        %v1271 = vpop.permute.xlu0 %1270
        %1272 = vrot.lane.b32.xlu0 %v668, 56
        %v1273 = vpop.permute.xlu0 %1272
        %v1277 = vsel %vm436, %v1266, 0
        %v1280 = vsel %vm436, %v1267, 0
        %1282 = vmatprep.subr.bf16.mxu0 0
        %1283 = vmatpush1.bf16.msra.mxu0 %v1271
        %1284 = vmatprep.subr.bf16.mxu0 0
        %1285 = vmatpush1.bf16.msra.mxu0 %v1273
        %1286 = vmatprep.subr.bf16.mxu0 0
        %1287 = vmatpush1.bf16.msra.mxu0 0
        %1288 = vmatprep.subr.bf16.mxu0 0
        %1289 = vmatpush1.bf16.msra.mxu0 0
        %1290 = vmatprep.subr.bf16.mxu0 0
        %1291 = vmatpush1.bf16.msra.mxu0 0
        %1292 = vmatprep.subr.bf16.mxu0 0
        %1293 = vmatpush1.bf16.msra.mxu0 0
        %1294 = vmatprep.subr.bf16.mxu0 0
        %1295 = vmatpush1.bf16.msra.mxu0 0
        %1296 = vmatprep.subr.bf16.mxu0 0
        %1297 = vmatpush1.bf16.msra.mxu0 0
        %1298 = vmatprep.subr.bf16.mxu0 0
        %1299 = vmatpush1.bf16.msra.mxu0 0
        %1300 = vmatprep.subr.bf16.mxu0 0
        %1301 = vmatpush1.bf16.msra.mxu0 0
        %1302 = vmatprep.subr.bf16.mxu0 0
        %1303 = vmatpush1.bf16.msra.mxu0 0
        %1304 = vmatprep.subr.bf16.mxu0 0
        %1305 = vmatpush1.bf16.msra.mxu0 0
        %1306 = vmatprep.subr.bf16.mxu0 0
        %1307 = vmatpush1.bf16.msra.mxu0 0
        %1308 = vmatprep.subr.bf16.mxu0 0
        %1309 = vmatpush1.bf16.msra.mxu0 0
        %1310 = vmatprep.subr.bf16.mxu0 0
        %1311 = vmatpush1.bf16.msra.mxu0 0
        %1312 = vmatprep.subr.bf16.mxu0 0
        %1313 = vmatpush1.bf16.msra.mxu0 0
        %1314 = vmatprep.mubr.bf16.mxu0 0
        %1315 = vmatmul.mubr.bf16.gmra.mrb[0].mxu0 %v1277
        %v1316 = vpop.f32.mrb[0].mxu0
        %v1317 = vadd.f32 0.0, %v1316
        %v1318 = vpop.f32.mrb[0].mxu0
        %v1319 = vpop.f32.mrb[0].mxu0
        %v1320 = vadd.f32 0.0, %v1319
        %v1321 = vpop.f32.mrb[0].mxu0
        %1322 = vmatprep.mubr.bf16.mxu0 0
        %1323 = vmatmul.mubr.bf16.gmra.mrb[0].mxu0 %v1280
        %v1324 = vpop.f32.mrb[0].mxu0
        %v1325 = vadd.f32 0.0, %v1324
        %v1326 = vpop.f32.mrb[0].mxu0
        %v1327 = vpop.f32.mrb[0].mxu0
        %v1328 = vadd.f32 0.0, %v1327
        %v1329 = vpop.f32.mrb[0].mxu0
        %1330 = vdwg.mxu0
        %1331 = vrot.lane.b32.xlu0 %v669, 56
        %v1332 = vpop.permute.xlu0 %1331
        %1333 = vrot.lane.b32.xlu0 %v670, 56
        %v1334 = vpop.permute.xlu0 %1333
        %v1338 = vsel %vm436, %v1268, 0
        %v1341 = vsel %vm436, %v1269, 0
        %1343 = vmatprep.subr.bf16.mxu0 0
        %1344 = vmatpush1.bf16.msra.mxu0 %v1332
        %1345 = vmatprep.subr.bf16.mxu0 0
        %1346 = vmatpush1.bf16.msra.mxu0 %v1334
        %1347 = vmatprep.subr.bf16.mxu0 0
        %1348 = vmatpush1.bf16.msra.mxu0 0
        %1349 = vmatprep.subr.bf16.mxu0 0
        %1350 = vmatpush1.bf16.msra.mxu0 0
        %1351 = vmatprep.subr.bf16.mxu0 0
        %1352 = vmatpush1.bf16.msra.mxu0 0
        %1353 = vmatprep.subr.bf16.mxu0 0
        %1354 = vmatpush1.bf16.msra.mxu0 0
        %1355 = vmatprep.subr.bf16.mxu0 0
        %1356 = vmatpush1.bf16.msra.mxu0 0
        %1357 = vmatprep.subr.bf16.mxu0 0
        %1358 = vmatpush1.bf16.msra.mxu0 0
        %1359 = vmatprep.subr.bf16.mxu0 0
        %1360 = vmatpush1.bf16.msra.mxu0 0
        %1361 = vmatprep.subr.bf16.mxu0 0
        %1362 = vmatpush1.bf16.msra.mxu0 0
        %1363 = vmatprep.subr.bf16.mxu0 0
        %1364 = vmatpush1.bf16.msra.mxu0 0
        %1365 = vmatprep.subr.bf16.mxu0 0
        %1366 = vmatpush1.bf16.msra.mxu0 0
        %1367 = vmatprep.subr.bf16.mxu0 0
        %1368 = vmatpush1.bf16.msra.mxu0 0
        %1369 = vmatprep.subr.bf16.mxu0 0
        %1370 = vmatpush1.bf16.msra.mxu0 0
        %1371 = vmatprep.subr.bf16.mxu0 0
        %1372 = vmatpush1.bf16.msra.mxu0 0
        %1373 = vmatprep.subr.bf16.mxu0 0
        %1374 = vmatpush1.bf16.msra.mxu0 0
        %1375 = vmatprep.mubr.bf16.mxu0 0
        %1376 = vmatmul.mubr.bf16.gmra.mrb[0].mxu0 %v1338
        %v1377 = vpop.f32.mrb[0].mxu0
        %v1378 = vadd.f32 0.0, %v1377
        %v1379 = vpop.f32.mrb[0].mxu0
        %v1380 = vpop.f32.mrb[0].mxu0
        %v1381 = vadd.f32 0.0, %v1380
        %v1382 = vpop.f32.mrb[0].mxu0
        %1383 = vmatprep.mubr.bf16.mxu0 0
        %1384 = vmatmul.mubr.bf16.gmra.mrb[0].mxu0 %v1341
        %v1385 = vpop.f32.mrb[0].mxu0
        %v1386 = vadd.f32 0.0, %v1385
        %v1387 = vpop.f32.mrb[0].mxu0
        %v1388 = vpop.f32.mrb[0].mxu0
        %v1389 = vadd.f32 0.0, %v1388
        %v1390 = vpop.f32.mrb[0].mxu0
        %1391 = vdwg.mxu0
        %v1392 = vpack.c.bf16 %v1320, %v1317
        %v1393 = vpack.c.bf16 %v1328, %v1325
        %v1394 = vpack.c.bf16 %v1381, %v1378
        %v1395 = vpack.c.bf16 %v1389, %v1386
        %1396 = vrot.lane.b32.xlu0 %v667, 112
        %v1397 = vpop.permute.xlu0 %1396
        %1398 = vrot.lane.b32.xlu0 %v668, 112
        %v1399 = vpop.permute.xlu0 %1398
        %1400 = vrot.lane.b32.xlu0 %v667, 80
        %v1401 = vpop.permute.xlu0 %1400
        %1402 = vrot.lane.b32.xlu0 %v668, 80
        %v1403 = vpop.permute.xlu0 %1402
        %v1405 = vsel %vm677, %v1397, 0
        %v1408 = vsel %vm677, %v1399, 0
        %v1411 = vsel %vm677, %v1401, 0
        %v1414 = vsel %vm677, %v1403, 0
        %1416 = vmatprep.subr.bf16.mxu0 0
        %1417 = vmatpush1.bf16.xpose.msra.mxu0 %v1411
        %1418 = vmatprep.subr.bf16.mxu0 0
        %1419 = vmatpush1.bf16.xpose.msra.mxu0 %v1414
        %1420 = vmatprep.subr.bf16.mxu0 0
        %1421 = vmatpush1.bf16.xpose.msra.mxu0 0
        %1422 = vmatprep.subr.bf16.mxu0 0
        %1423 = vmatpush1.bf16.xpose.msra.mxu0 0
        %1424 = vmatprep.subr.bf16.mxu0 0
        %1425 = vmatpush1.bf16.xpose.msra.mxu0 0
        %1426 = vmatprep.subr.bf16.mxu0 0
        %1427 = vmatpush1.bf16.xpose.msra.mxu0 0
        %1428 = vmatprep.subr.bf16.mxu0 0
        %1429 = vmatpush1.bf16.xpose.msra.mxu0 0
        %1430 = vmatprep.subr.bf16.mxu0 0
        %1431 = vmatpush1.bf16.xpose.msra.mxu0 0
        %1432 = vmatprep.subr.bf16.mxu0 0
        %1433 = vmatpush1.bf16.xpose.msra.mxu0 0
        %1434 = vmatprep.subr.bf16.mxu0 0
        %1435 = vmatpush1.bf16.xpose.msra.mxu0 0
        %1436 = vmatprep.subr.bf16.mxu0 0
        %1437 = vmatpush1.bf16.xpose.msra.mxu0 0
        %1438 = vmatprep.subr.bf16.mxu0 0
        %1439 = vmatpush1.bf16.xpose.msra.mxu0 0
        %1440 = vmatprep.subr.bf16.mxu0 0
        %1441 = vmatpush1.bf16.xpose.msra.mxu0 0
        %1442 = vmatprep.subr.bf16.mxu0 0
        %1443 = vmatpush1.bf16.xpose.msra.mxu0 0
        %1444 = vmatprep.subr.bf16.mxu0 0
        %1445 = vmatpush1.bf16.xpose.msra.mxu0 0
        %1446 = vmatprep.subr.bf16.mxu0 0
        %1447 = vmatpush1.bf16.xpose.msra.mxu0 0
        %1448 = vmatprep.mubr.bf16.mxu0 0
        %1449 = vmatmul.mubr.bf16.gmra.mrb[0].mxu0 %v1405
        %v1450 = vpop.f32.mrb[0].mxu0
        %v1451 = vadd.f32 0.0, %v1450
        %v1452 = vpop.f32.mrb[0].mxu0
        %v1453 = vpop.f32.mrb[0].mxu0
        %v1454 = vadd.f32 0.0, %v1453
        %v1455 = vpop.f32.mrb[0].mxu0
        %1456 = vmatprep.mubr.bf16.mxu0 0
        %1457 = vmatmul.mubr.bf16.gmra.mrb[0].mxu0 %v1408
        %v1458 = vpop.f32.mrb[0].mxu0
        %v1459 = vadd.f32 0.0, %v1458
        %v1460 = vpop.f32.mrb[0].mxu0
        %v1461 = vpop.f32.mrb[0].mxu0
        %v1462 = vadd.f32 0.0, %v1461
        %v1463 = vpop.f32.mrb[0].mxu0
        %1464 = vdwg.mxu0
        %1465 = vrot.lane.b32.xlu0 %v669, 112
        %v1466 = vpop.permute.xlu0 %1465
        %1467 = vrot.lane.b32.xlu0 %v670, 112
        %v1468 = vpop.permute.xlu0 %1467
        %1469 = vrot.lane.b32.xlu0 %v669, 80
        %v1470 = vpop.permute.xlu0 %1469
        %1471 = vrot.lane.b32.xlu0 %v670, 80
        %v1472 = vpop.permute.xlu0 %1471
        %v1474 = vsel %vm677, %v1466, 0
        %v1477 = vsel %vm677, %v1468, 0
        %v1480 = vsel %vm677, %v1470, 0
        %v1483 = vsel %vm677, %v1472, 0
        %1485 = vmatprep.subr.bf16.mxu0 0
        %1486 = vmatpush1.bf16.xpose.msra.mxu0 %v1480
        %1487 = vmatprep.subr.bf16.mxu0 0
        %1488 = vmatpush1.bf16.xpose.msra.mxu0 %v1483
        %1489 = vmatprep.subr.bf16.mxu0 0
        %1490 = vmatpush1.bf16.xpose.msra.mxu0 0
        %1491 = vmatprep.subr.bf16.mxu0 0
        %1492 = vmatpush1.bf16.xpose.msra.mxu0 0
        %1493 = vmatprep.subr.bf16.mxu0 0
        %1494 = vmatpush1.bf16.xpose.msra.mxu0 0
        %1495 = vmatprep.subr.bf16.mxu0 0
        %1496 = vmatpush1.bf16.xpose.msra.mxu0 0
        %1497 = vmatprep.subr.bf16.mxu0 0
        %1498 = vmatpush1.bf16.xpose.msra.mxu0 0
        %1499 = vmatprep.subr.bf16.mxu0 0
        %1500 = vmatpush1.bf16.xpose.msra.mxu0 0
        %1501 = vmatprep.subr.bf16.mxu0 0
        %1502 = vmatpush1.bf16.xpose.msra.mxu0 0
        %1503 = vmatprep.subr.bf16.mxu0 0
        %1504 = vmatpush1.bf16.xpose.msra.mxu0 0
        %1505 = vmatprep.subr.bf16.mxu0 0
        %1506 = vmatpush1.bf16.xpose.msra.mxu0 0
        %1507 = vmatprep.subr.bf16.mxu0 0
        %1508 = vmatpush1.bf16.xpose.msra.mxu0 0
        %1509 = vmatprep.subr.bf16.mxu0 0
        %1510 = vmatpush1.bf16.xpose.msra.mxu0 0
        %1511 = vmatprep.subr.bf16.mxu0 0
        %1512 = vmatpush1.bf16.xpose.msra.mxu0 0
        %1513 = vmatprep.subr.bf16.mxu0 0
        %1514 = vmatpush1.bf16.xpose.msra.mxu0 0
        %1515 = vmatprep.subr.bf16.mxu0 0
        %1516 = vmatpush1.bf16.xpose.msra.mxu0 0
        %1517 = vmatprep.mubr.bf16.mxu0 0
        %1518 = vmatmul.mubr.bf16.gmra.mrb[0].mxu0 %v1474
        %v1519 = vpop.f32.mrb[0].mxu0
        %v1520 = vadd.f32 0.0, %v1519
        %v1521 = vpop.f32.mrb[0].mxu0
        %v1522 = vpop.f32.mrb[0].mxu0
        %v1523 = vadd.f32 0.0, %v1522
        %v1524 = vpop.f32.mrb[0].mxu0
        %1525 = vmatprep.mubr.bf16.mxu0 0
        %1526 = vmatmul.mubr.bf16.gmra.mrb[0].mxu0 %v1477
        %v1527 = vpop.f32.mrb[0].mxu0
        %v1528 = vadd.f32 0.0, %v1527
        %v1529 = vpop.f32.mrb[0].mxu0
        %v1530 = vpop.f32.mrb[0].mxu0
        %v1531 = vadd.f32 0.0, %v1530
        %v1532 = vpop.f32.mrb[0].mxu0
        %1533 = vdwg.mxu0
        %v1534 = vmul.f32 %v1451, 0.35355338
        %v1535 = vmul.f32 %v1454, 0.35355338
        %v1536 = vmul.f32 %v1459, 0.35355338
        %v1537 = vmul.f32 %v1462, 0.35355338
        %v1538 = vmul.f32 %v1520, 0.35355338
        %v1539 = vmul.f32 %v1523, 0.35355338
        %v1540 = vmul.f32 %v1528, 0.35355338
        %v1541 = vmul.f32 %v1531, 0.35355338
        %v1542 = vsel %vm436, %v1534, -inf
        %1543 = vmax.xlane.f32.xlu0 %v1542
        %v1544 = vpop.xlane.xlu0 %1543
        %v1545 = vsel %vm436, %v1535, -inf
        %1546 = vmax.xlane.f32.xlu0 %v1545
        %v1547 = vpop.xlane.xlu0 %1546
        %v1548 = vsel %vm436, %v1536, -inf
        %1549 = vmax.xlane.f32.xlu0 %v1548
        %v1550 = vpop.xlane.xlu0 %1549
        %v1551 = vsel %vm436, %v1537, -inf
        %1552 = vmax.xlane.f32.xlu0 %v1551
        %v1553 = vpop.xlane.xlu0 %1552
        %v1554 = vsel %vm436, %v1538, -inf
        %1555 = vmax.xlane.f32.xlu0 %v1554
        %v1556 = vpop.xlane.xlu0 %1555
        %v1557 = vsel %vm436, %v1539, -inf
        %1558 = vmax.xlane.f32.xlu0 %v1557
        %v1559 = vpop.xlane.xlu0 %1558
        %v1560 = vsel %vm436, %v1540, -inf
        %1561 = vmax.xlane.f32.xlu0 %v1560
        %v1562 = vpop.xlane.xlu0 %1561
        %v1563 = vsel %vm436, %v1541, -inf
        %1564 = vmax.xlane.f32.xlu0 %v1563
        %v1565 = vpop.xlane.xlu0 %1564
        %v1566 = vsub.f32 %v1534, %v1544
        %v1567 = vsub.f32 %v1535, %v1547
        %v1568 = vsub.f32 %v1536, %v1550
        %v1569 = vsub.f32 %v1537, %v1553
        %v1570 = vsub.f32 %v1538, %v1556
        %v1571 = vsub.f32 %v1539, %v1559
        %v1572 = vsub.f32 %v1540, %v1562
        %v1573 = vsub.f32 %v1541, %v1565
        %v1574 = vmul.f32 %v1566, 1.442695
        %v1575 = vpow.pop %v1574
        %v1576 = vmul.f32 %v1567, 1.442695
        %v1577 = vpow.pop %v1576
        %v1578 = vmul.f32 %v1568, 1.442695
        %v1579 = vpow.pop %v1578
        %v1580 = vmul.f32 %v1569, 1.442695
        %v1581 = vpow.pop %v1580
        %v1582 = vmul.f32 %v1570, 1.442695
        %v1583 = vpow.pop %v1582
        %v1584 = vmul.f32 %v1571, 1.442695
        %v1585 = vpow.pop %v1584
        %v1586 = vmul.f32 %v1572, 1.442695
        %v1587 = vpow.pop %v1586
        %v1588 = vmul.f32 %v1573, 1.442695
        %v1589 = vpow.pop %v1588
        %v1590 = vsel %vm436, %v1575, 0.0
        %1591 = vadd.xlane.f32.xlu0 %v1590
        %v1592 = vpop.xlane.xlu0 %1591
        %v1593 = vsel %vm436, %v1577, 0.0
        %1594 = vadd.xlane.f32.xlu0 %v1593
        %v1595 = vpop.xlane.xlu0 %1594
        %v1596 = vsel %vm436, %v1579, 0.0
        %1597 = vadd.xlane.f32.xlu0 %v1596
        %v1598 = vpop.xlane.xlu0 %1597
        %v1599 = vsel %vm436, %v1581, 0.0
        %1600 = vadd.xlane.f32.xlu0 %v1599
        %v1601 = vpop.xlane.xlu0 %1600
        %v1602 = vsel %vm436, %v1583, 0.0
        %1603 = vadd.xlane.f32.xlu0 %v1602
        %v1604 = vpop.xlane.xlu0 %1603
        %v1605 = vsel %vm436, %v1585, 0.0
        %1606 = vadd.xlane.f32.xlu0 %v1605
        %v1607 = vpop.xlane.xlu0 %1606
        %v1608 = vsel %vm436, %v1587, 0.0
        %1609 = vadd.xlane.f32.xlu0 %v1608
        %v1610 = vpop.xlane.xlu0 %1609
        %v1611 = vsel %vm436, %v1589, 0.0
        %1612 = vadd.xlane.f32.xlu0 %v1611
        %v1613 = vpop.xlane.xlu0 %1612
        %v1614 = vrcp.pop %v1592
        %v1615 = vrcp.pop %v1595
        %v1616 = vrcp.pop %v1598
        %v1617 = vrcp.pop %v1601
        %v1618 = vrcp.pop %v1604
        %v1619 = vrcp.pop %v1607
        %v1620 = vrcp.pop %v1610
        %v1621 = vrcp.pop %v1613
        %v1622 = vmul.f32 %v1575, %v1614
        %v1623 = vmul.f32 %v1577, %v1615
        %v1624 = vmul.f32 %v1579, %v1616
        %v1625 = vmul.f32 %v1581, %v1617
        %v1626 = vmul.f32 %v1583, %v1618
        %v1627 = vmul.f32 %v1585, %v1619
        %v1628 = vmul.f32 %v1587, %v1620
        %v1629 = vmul.f32 %v1589, %v1621
        %v1630 = vpack.c.bf16 %v1623, %v1622
        %v1631 = vpack.c.bf16 %v1625, %v1624
        %v1632 = vpack.c.bf16 %v1627, %v1626
        %v1633 = vpack.c.bf16 %v1629, %v1628
        %1634 = vrot.lane.b32.xlu0 %v667, 48
        %v1635 = vpop.permute.xlu0 %1634
        %1636 = vrot.lane.b32.xlu0 %v668, 48
        %v1637 = vpop.permute.xlu0 %1636
        %v1641 = vsel %vm436, %v1630, 0
        %v1644 = vsel %vm436, %v1631, 0
        %1646 = vmatprep.subr.bf16.mxu0 0
        %1647 = vmatpush1.bf16.msra.mxu0 %v1635
        %1648 = vmatprep.subr.bf16.mxu0 0
        %1649 = vmatpush1.bf16.msra.mxu0 %v1637
        %1650 = vmatprep.subr.bf16.mxu0 0
        %1651 = vmatpush1.bf16.msra.mxu0 0
        %1652 = vmatprep.subr.bf16.mxu0 0
        %1653 = vmatpush1.bf16.msra.mxu0 0
        %1654 = vmatprep.subr.bf16.mxu0 0
        %1655 = vmatpush1.bf16.msra.mxu0 0
        %1656 = vmatprep.subr.bf16.mxu0 0
        %1657 = vmatpush1.bf16.msra.mxu0 0
        %1658 = vmatprep.subr.bf16.mxu0 0
        %1659 = vmatpush1.bf16.msra.mxu0 0
        %1660 = vmatprep.subr.bf16.mxu0 0
        %1661 = vmatpush1.bf16.msra.mxu0 0
        %1662 = vmatprep.subr.bf16.mxu0 0
        %1663 = vmatpush1.bf16.msra.mxu0 0
        %1664 = vmatprep.subr.bf16.mxu0 0
        %1665 = vmatpush1.bf16.msra.mxu0 0
        %1666 = vmatprep.subr.bf16.mxu0 0
        %1667 = vmatpush1.bf16.msra.mxu0 0
        %1668 = vmatprep.subr.bf16.mxu0 0
        %1669 = vmatpush1.bf16.msra.mxu0 0
        %1670 = vmatprep.subr.bf16.mxu0 0
        %1671 = vmatpush1.bf16.msra.mxu0 0
        %1672 = vmatprep.subr.bf16.mxu0 0
        %1673 = vmatpush1.bf16.msra.mxu0 0
        %1674 = vmatprep.subr.bf16.mxu0 0
        %1675 = vmatpush1.bf16.msra.mxu0 0
        %1676 = vmatprep.subr.bf16.mxu0 0
        %1677 = vmatpush1.bf16.msra.mxu0 0
        %1678 = vmatprep.mubr.bf16.mxu0 0
        %1679 = vmatmul.mubr.bf16.gmra.mrb[0].mxu0 %v1641
        %v1680 = vpop.f32.mrb[0].mxu0
        %v1681 = vadd.f32 0.0, %v1680
        %v1682 = vpop.f32.mrb[0].mxu0
        %v1683 = vpop.f32.mrb[0].mxu0
        %v1684 = vadd.f32 0.0, %v1683
        %v1685 = vpop.f32.mrb[0].mxu0
        %1686 = vmatprep.mubr.bf16.mxu0 0
        %1687 = vmatmul.mubr.bf16.gmra.mrb[0].mxu0 %v1644
        %v1688 = vpop.f32.mrb[0].mxu0
        %v1689 = vadd.f32 0.0, %v1688
        %v1690 = vpop.f32.mrb[0].mxu0
        %v1691 = vpop.f32.mrb[0].mxu0
        %v1692 = vadd.f32 0.0, %v1691
        %v1693 = vpop.f32.mrb[0].mxu0
        %1694 = vdwg.mxu0
        %1695 = vrot.lane.b32.xlu0 %v669, 48
        %v1696 = vpop.permute.xlu0 %1695
        %1697 = vrot.lane.b32.xlu0 %v670, 48
        %v1698 = vpop.permute.xlu0 %1697
        %v1702 = vsel %vm436, %v1632, 0
        %v1705 = vsel %vm436, %v1633, 0
        %1707 = vmatprep.subr.bf16.mxu0 0
        %1708 = vmatpush1.bf16.msra.mxu0 %v1696
        %1709 = vmatprep.subr.bf16.mxu0 0
        %1710 = vmatpush1.bf16.msra.mxu0 %v1698
        %1711 = vmatprep.subr.bf16.mxu0 0
        %1712 = vmatpush1.bf16.msra.mxu0 0
        %1713 = vmatprep.subr.bf16.mxu0 0
        %1714 = vmatpush1.bf16.msra.mxu0 0
        %1715 = vmatprep.subr.bf16.mxu0 0
        %1716 = vmatpush1.bf16.msra.mxu0 0
        %1717 = vmatprep.subr.bf16.mxu0 0
        %1718 = vmatpush1.bf16.msra.mxu0 0
        %1719 = vmatprep.subr.bf16.mxu0 0
        %1720 = vmatpush1.bf16.msra.mxu0 0
        %1721 = vmatprep.subr.bf16.mxu0 0
        %1722 = vmatpush1.bf16.msra.mxu0 0
        %1723 = vmatprep.subr.bf16.mxu0 0
        %1724 = vmatpush1.bf16.msra.mxu0 0
        %1725 = vmatprep.subr.bf16.mxu0 0
        %1726 = vmatpush1.bf16.msra.mxu0 0
        %1727 = vmatprep.subr.bf16.mxu0 0
        %1728 = vmatpush1.bf16.msra.mxu0 0
        %1729 = vmatprep.subr.bf16.mxu0 0
        %1730 = vmatpush1.bf16.msra.mxu0 0
        %1731 = vmatprep.subr.bf16.mxu0 0
        %1732 = vmatpush1.bf16.msra.mxu0 0
        %1733 = vmatprep.subr.bf16.mxu0 0
        %1734 = vmatpush1.bf16.msra.mxu0 0
        %1735 = vmatprep.subr.bf16.mxu0 0
        %1736 = vmatpush1.bf16.msra.mxu0 0
        %1737 = vmatprep.subr.bf16.mxu0 0
        %1738 = vmatpush1.bf16.msra.mxu0 0
        %1739 = vmatprep.mubr.bf16.mxu0 0
        %1740 = vmatmul.mubr.bf16.gmra.mrb[0].mxu0 %v1702
        %v1741 = vpop.f32.mrb[0].mxu0
        %v1742 = vadd.f32 0.0, %v1741
        %v1743 = vpop.f32.mrb[0].mxu0
        %v1744 = vpop.f32.mrb[0].mxu0
        %v1745 = vadd.f32 0.0, %v1744
        %v1746 = vpop.f32.mrb[0].mxu0
        %1747 = vmatprep.mubr.bf16.mxu0 0
        %1748 = vmatmul.mubr.bf16.gmra.mrb[0].mxu0 %v1705
        %v1749 = vpop.f32.mrb[0].mxu0
        %v1750 = vadd.f32 0.0, %v1749
        %v1751 = vpop.f32.mrb[0].mxu0
        %v1752 = vpop.f32.mrb[0].mxu0
        %v1753 = vadd.f32 0.0, %v1752
        %v1754 = vpop.f32.mrb[0].mxu0
        %1755 = vdwg.mxu0
        %v1756 = vpack.c.bf16 %v1684, %v1681
        %v1757 = vpack.c.bf16 %v1692, %v1689
        %v1758 = vpack.c.bf16 %v1745, %v1742
        %v1759 = vpack.c.bf16 %v1753, %v1750
        %1760 = vrot.lane.b32.xlu0 %v667, 104
        %v1761 = vpop.permute.xlu0 %1760
        %1762 = vrot.lane.b32.xlu0 %v668, 104
        %v1763 = vpop.permute.xlu0 %1762
        %1764 = vrot.lane.b32.xlu0 %v667, 72
        %v1765 = vpop.permute.xlu0 %1764
        %1766 = vrot.lane.b32.xlu0 %v668, 72
        %v1767 = vpop.permute.xlu0 %1766
        %v1769 = vsel %vm677, %v1761, 0
        %v1772 = vsel %vm677, %v1763, 0
        %v1775 = vsel %vm677, %v1765, 0
        %v1778 = vsel %vm677, %v1767, 0
        %1780 = vmatprep.subr.bf16.mxu0 0
        %1781 = vmatpush1.bf16.xpose.msra.mxu0 %v1775
        %1782 = vmatprep.subr.bf16.mxu0 0
        %1783 = vmatpush1.bf16.xpose.msra.mxu0 %v1778
        %1784 = vmatprep.subr.bf16.mxu0 0
        %1785 = vmatpush1.bf16.xpose.msra.mxu0 0
        %1786 = vmatprep.subr.bf16.mxu0 0
        %1787 = vmatpush1.bf16.xpose.msra.mxu0 0
        %1788 = vmatprep.subr.bf16.mxu0 0
        %1789 = vmatpush1.bf16.xpose.msra.mxu0 0
        %1790 = vmatprep.subr.bf16.mxu0 0
        %1791 = vmatpush1.bf16.xpose.msra.mxu0 0
        %1792 = vmatprep.subr.bf16.mxu0 0
        %1793 = vmatpush1.bf16.xpose.msra.mxu0 0
        %1794 = vmatprep.subr.bf16.mxu0 0
        %1795 = vmatpush1.bf16.xpose.msra.mxu0 0
        %1796 = vmatprep.subr.bf16.mxu0 0
        %1797 = vmatpush1.bf16.xpose.msra.mxu0 0
        %1798 = vmatprep.subr.bf16.mxu0 0
        %1799 = vmatpush1.bf16.xpose.msra.mxu0 0
        %1800 = vmatprep.subr.bf16.mxu0 0
        %1801 = vmatpush1.bf16.xpose.msra.mxu0 0
        %1802 = vmatprep.subr.bf16.mxu0 0
        %1803 = vmatpush1.bf16.xpose.msra.mxu0 0
        %1804 = vmatprep.subr.bf16.mxu0 0
        %1805 = vmatpush1.bf16.xpose.msra.mxu0 0
        %1806 = vmatprep.subr.bf16.mxu0 0
        %1807 = vmatpush1.bf16.xpose.msra.mxu0 0
        %1808 = vmatprep.subr.bf16.mxu0 0
        %1809 = vmatpush1.bf16.xpose.msra.mxu0 0
        %1810 = vmatprep.subr.bf16.mxu0 0
        %1811 = vmatpush1.bf16.xpose.msra.mxu0 0
        %1812 = vmatprep.mubr.bf16.mxu0 0
        %1813 = vmatmul.mubr.bf16.gmra.mrb[0].mxu0 %v1769
        %v1814 = vpop.f32.mrb[0].mxu0
        %v1815 = vadd.f32 0.0, %v1814
        %v1816 = vpop.f32.mrb[0].mxu0
        %v1817 = vpop.f32.mrb[0].mxu0
        %v1818 = vadd.f32 0.0, %v1817
        %v1819 = vpop.f32.mrb[0].mxu0
        %1820 = vmatprep.mubr.bf16.mxu0 0
        %1821 = vmatmul.mubr.bf16.gmra.mrb[0].mxu0 %v1772
        %v1822 = vpop.f32.mrb[0].mxu0
        %v1823 = vadd.f32 0.0, %v1822
        %v1824 = vpop.f32.mrb[0].mxu0
        %v1825 = vpop.f32.mrb[0].mxu0
        %v1826 = vadd.f32 0.0, %v1825
        %v1827 = vpop.f32.mrb[0].mxu0
        %1828 = vdwg.mxu0
        %1829 = vrot.lane.b32.xlu0 %v669, 104
        %v1830 = vpop.permute.xlu0 %1829
        %1831 = vrot.lane.b32.xlu0 %v670, 104
        %v1832 = vpop.permute.xlu0 %1831
        %1833 = vrot.lane.b32.xlu0 %v669, 72
        %v1834 = vpop.permute.xlu0 %1833
        %1835 = vrot.lane.b32.xlu0 %v670, 72
        %v1836 = vpop.permute.xlu0 %1835
        %v1838 = vsel %vm677, %v1830, 0
        %v1841 = vsel %vm677, %v1832, 0
        %v1844 = vsel %vm677, %v1834, 0
        %v1847 = vsel %vm677, %v1836, 0
        %1849 = vmatprep.subr.bf16.mxu0 0
        %1850 = vmatpush1.bf16.xpose.msra.mxu0 %v1844
        %1851 = vmatprep.subr.bf16.mxu0 0
        %1852 = vmatpush1.bf16.xpose.msra.mxu0 %v1847
        %1853 = vmatprep.subr.bf16.mxu0 0
        %1854 = vmatpush1.bf16.xpose.msra.mxu0 0
        %1855 = vmatprep.subr.bf16.mxu0 0
        %1856 = vmatpush1.bf16.xpose.msra.mxu0 0
        %1857 = vmatprep.subr.bf16.mxu0 0
        %1858 = vmatpush1.bf16.xpose.msra.mxu0 0
        %1859 = vmatprep.subr.bf16.mxu0 0
        %1860 = vmatpush1.bf16.xpose.msra.mxu0 0
        %1861 = vmatprep.subr.bf16.mxu0 0
        %1862 = vmatpush1.bf16.xpose.msra.mxu0 0
        %1863 = vmatprep.subr.bf16.mxu0 0
        %1864 = vmatpush1.bf16.xpose.msra.mxu0 0
        %1865 = vmatprep.subr.bf16.mxu0 0
        %1866 = vmatpush1.bf16.xpose.msra.mxu0 0
        %1867 = vmatprep.subr.bf16.mxu0 0
        %1868 = vmatpush1.bf16.xpose.msra.mxu0 0
        %1869 = vmatprep.subr.bf16.mxu0 0
        %1870 = vmatpush1.bf16.xpose.msra.mxu0 0
        %1871 = vmatprep.subr.bf16.mxu0 0
        %1872 = vmatpush1.bf16.xpose.msra.mxu0 0
        %1873 = vmatprep.subr.bf16.mxu0 0
        %1874 = vmatpush1.bf16.xpose.msra.mxu0 0
        %1875 = vmatprep.subr.bf16.mxu0 0
        %1876 = vmatpush1.bf16.xpose.msra.mxu0 0
        %1877 = vmatprep.subr.bf16.mxu0 0
        %1878 = vmatpush1.bf16.xpose.msra.mxu0 0
        %1879 = vmatprep.subr.bf16.mxu0 0
        %1880 = vmatpush1.bf16.xpose.msra.mxu0 0
        %1881 = vmatprep.mubr.bf16.mxu0 0
        %1882 = vmatmul.mubr.bf16.gmra.mrb[0].mxu0 %v1838
        %v1883 = vpop.f32.mrb[0].mxu0
        %v1884 = vadd.f32 0.0, %v1883
        %v1885 = vpop.f32.mrb[0].mxu0
        %v1886 = vpop.f32.mrb[0].mxu0
        %v1887 = vadd.f32 0.0, %v1886
        %v1888 = vpop.f32.mrb[0].mxu0
        %1889 = vmatprep.mubr.bf16.mxu0 0
        %1890 = vmatmul.mubr.bf16.gmra.mrb[0].mxu0 %v1841
        %v1891 = vpop.f32.mrb[0].mxu0
        %v1892 = vadd.f32 0.0, %v1891
        %v1893 = vpop.f32.mrb[0].mxu0
        %v1894 = vpop.f32.mrb[0].mxu0
        %v1895 = vadd.f32 0.0, %v1894
        %v1896 = vpop.f32.mrb[0].mxu0
        %1897 = vdwg.mxu0
        %v1898 = vmul.f32 %v1815, 0.35355338
        %v1899 = vmul.f32 %v1818, 0.35355338
        %v1900 = vmul.f32 %v1823, 0.35355338
        %v1901 = vmul.f32 %v1826, 0.35355338
        %v1902 = vmul.f32 %v1884, 0.35355338
        %v1903 = vmul.f32 %v1887, 0.35355338
        %v1904 = vmul.f32 %v1892, 0.35355338
        %v1905 = vmul.f32 %v1895, 0.35355338
        %v1906 = vsel %vm436, %v1898, -inf
        %1907 = vmax.xlane.f32.xlu0 %v1906
        %v1908 = vpop.xlane.xlu0 %1907
        %v1909 = vsel %vm436, %v1899, -inf
        %1910 = vmax.xlane.f32.xlu0 %v1909
        %v1911 = vpop.xlane.xlu0 %1910
        %v1912 = vsel %vm436, %v1900, -inf
        %1913 = vmax.xlane.f32.xlu0 %v1912
        %v1914 = vpop.xlane.xlu0 %1913
        %v1915 = vsel %vm436, %v1901, -inf
        %1916 = vmax.xlane.f32.xlu0 %v1915
        %v1917 = vpop.xlane.xlu0 %1916
        %v1918 = vsel %vm436, %v1902, -inf
        %1919 = vmax.xlane.f32.xlu0 %v1918
        %v1920 = vpop.xlane.xlu0 %1919
        %v1921 = vsel %vm436, %v1903, -inf
        %1922 = vmax.xlane.f32.xlu0 %v1921
        %v1923 = vpop.xlane.xlu0 %1922
        %v1924 = vsel %vm436, %v1904, -inf
        %1925 = vmax.xlane.f32.xlu0 %v1924
        %v1926 = vpop.xlane.xlu0 %1925
        %v1927 = vsel %vm436, %v1905, -inf
        %1928 = vmax.xlane.f32.xlu0 %v1927
        %v1929 = vpop.xlane.xlu0 %1928
        %v1930 = vsub.f32 %v1898, %v1908
        %v1931 = vsub.f32 %v1899, %v1911
        %v1932 = vsub.f32 %v1900, %v1914
        %v1933 = vsub.f32 %v1901, %v1917
        %v1934 = vsub.f32 %v1902, %v1920
        %v1935 = vsub.f32 %v1903, %v1923
        %v1936 = vsub.f32 %v1904, %v1926
        %v1937 = vsub.f32 %v1905, %v1929
        %v1938 = vmul.f32 %v1930, 1.442695
        %v1939 = vpow.pop %v1938
        %v1940 = vmul.f32 %v1931, 1.442695
        %v1941 = vpow.pop %v1940
        %v1942 = vmul.f32 %v1932, 1.442695
        %v1943 = vpow.pop %v1942
        %v1944 = vmul.f32 %v1933, 1.442695
        %v1945 = vpow.pop %v1944
        %v1946 = vmul.f32 %v1934, 1.442695
        %v1947 = vpow.pop %v1946
        %v1948 = vmul.f32 %v1935, 1.442695
        %v1949 = vpow.pop %v1948
        %v1950 = vmul.f32 %v1936, 1.442695
        %v1951 = vpow.pop %v1950
        %v1952 = vmul.f32 %v1937, 1.442695
        %v1953 = vpow.pop %v1952
        %v1954 = vsel %vm436, %v1939, 0.0
        %1955 = vadd.xlane.f32.xlu0 %v1954
        %v1956 = vpop.xlane.xlu0 %1955
        %v1957 = vsel %vm436, %v1941, 0.0
        %1958 = vadd.xlane.f32.xlu0 %v1957
        %v1959 = vpop.xlane.xlu0 %1958
        %v1960 = vsel %vm436, %v1943, 0.0
        %1961 = vadd.xlane.f32.xlu0 %v1960
        %v1962 = vpop.xlane.xlu0 %1961
        %v1963 = vsel %vm436, %v1945, 0.0
        %1964 = vadd.xlane.f32.xlu0 %v1963
        %v1965 = vpop.xlane.xlu0 %1964
        %v1966 = vsel %vm436, %v1947, 0.0
        %1967 = vadd.xlane.f32.xlu0 %v1966
        %v1968 = vpop.xlane.xlu0 %1967
        %v1969 = vsel %vm436, %v1949, 0.0
        %1970 = vadd.xlane.f32.xlu0 %v1969
        %v1971 = vpop.xlane.xlu0 %1970
        %v1972 = vsel %vm436, %v1951, 0.0
        %1973 = vadd.xlane.f32.xlu0 %v1972
        %v1974 = vpop.xlane.xlu0 %1973
        %v1975 = vsel %vm436, %v1953, 0.0
        %1976 = vadd.xlane.f32.xlu0 %v1975
        %v1977 = vpop.xlane.xlu0 %1976
        %v1978 = vrcp.pop %v1956
        %v1979 = vrcp.pop %v1959
        %v1980 = vrcp.pop %v1962
        %v1981 = vrcp.pop %v1965
        %v1982 = vrcp.pop %v1968
        %v1983 = vrcp.pop %v1971
        %v1984 = vrcp.pop %v1974
        %v1985 = vrcp.pop %v1977
        %v1986 = vmul.f32 %v1939, %v1978
        %v1987 = vmul.f32 %v1941, %v1979
        %v1988 = vmul.f32 %v1943, %v1980
        %v1989 = vmul.f32 %v1945, %v1981
        %v1990 = vmul.f32 %v1947, %v1982
        %v1991 = vmul.f32 %v1949, %v1983
        %v1992 = vmul.f32 %v1951, %v1984
        %v1993 = vmul.f32 %v1953, %v1985
        %v1994 = vpack.c.bf16 %v1987, %v1986
        %v1995 = vpack.c.bf16 %v1989, %v1988
        %v1996 = vpack.c.bf16 %v1991, %v1990
        %v1997 = vpack.c.bf16 %v1993, %v1992
        %1998 = vrot.lane.b32.xlu0 %v667, 40
        %v1999 = vpop.permute.xlu0 %1998
        %2000 = vrot.lane.b32.xlu0 %v668, 40
        %v2001 = vpop.permute.xlu0 %2000
        %v2005 = vsel %vm436, %v1994, 0
        %v2008 = vsel %vm436, %v1995, 0
        %2010 = vmatprep.subr.bf16.mxu0 0
        %2011 = vmatpush1.bf16.msra.mxu0 %v1999
        %2012 = vmatprep.subr.bf16.mxu0 0
        %2013 = vmatpush1.bf16.msra.mxu0 %v2001
        %2014 = vmatprep.subr.bf16.mxu0 0
        %2015 = vmatpush1.bf16.msra.mxu0 0
        %2016 = vmatprep.subr.bf16.mxu0 0
        %2017 = vmatpush1.bf16.msra.mxu0 0
        %2018 = vmatprep.subr.bf16.mxu0 0
        %2019 = vmatpush1.bf16.msra.mxu0 0
        %2020 = vmatprep.subr.bf16.mxu0 0
        %2021 = vmatpush1.bf16.msra.mxu0 0
        %2022 = vmatprep.subr.bf16.mxu0 0
        %2023 = vmatpush1.bf16.msra.mxu0 0
        %2024 = vmatprep.subr.bf16.mxu0 0
        %2025 = vmatpush1.bf16.msra.mxu0 0
        %2026 = vmatprep.subr.bf16.mxu0 0
        %2027 = vmatpush1.bf16.msra.mxu0 0
        %2028 = vmatprep.subr.bf16.mxu0 0
        %2029 = vmatpush1.bf16.msra.mxu0 0
        %2030 = vmatprep.subr.bf16.mxu0 0
        %2031 = vmatpush1.bf16.msra.mxu0 0
        %2032 = vmatprep.subr.bf16.mxu0 0
        %2033 = vmatpush1.bf16.msra.mxu0 0
        %2034 = vmatprep.subr.bf16.mxu0 0
        %2035 = vmatpush1.bf16.msra.mxu0 0
        %2036 = vmatprep.subr.bf16.mxu0 0
        %2037 = vmatpush1.bf16.msra.mxu0 0
        %2038 = vmatprep.subr.bf16.mxu0 0
        %2039 = vmatpush1.bf16.msra.mxu0 0
        %2040 = vmatprep.subr.bf16.mxu0 0
        %2041 = vmatpush1.bf16.msra.mxu0 0
        %2042 = vmatprep.mubr.bf16.mxu0 0
        %2043 = vmatmul.mubr.bf16.gmra.mrb[0].mxu0 %v2005
        %v2044 = vpop.f32.mrb[0].mxu0
        %v2045 = vadd.f32 0.0, %v2044
        %v2046 = vpop.f32.mrb[0].mxu0
        %v2047 = vpop.f32.mrb[0].mxu0
        %v2048 = vadd.f32 0.0, %v2047
        %v2049 = vpop.f32.mrb[0].mxu0
        %2050 = vmatprep.mubr.bf16.mxu0 0
        %2051 = vmatmul.mubr.bf16.gmra.mrb[0].mxu0 %v2008
        %v2052 = vpop.f32.mrb[0].mxu0
        %v2053 = vadd.f32 0.0, %v2052
        %v2054 = vpop.f32.mrb[0].mxu0
        %v2055 = vpop.f32.mrb[0].mxu0
        %v2056 = vadd.f32 0.0, %v2055
        %v2057 = vpop.f32.mrb[0].mxu0
        %2058 = vdwg.mxu0
        %2059 = vrot.lane.b32.xlu0 %v669, 40
        %v2060 = vpop.permute.xlu0 %2059
        %2061 = vrot.lane.b32.xlu0 %v670, 40
        %v2062 = vpop.permute.xlu0 %2061
        %v2066 = vsel %vm436, %v1996, 0
        %v2069 = vsel %vm436, %v1997, 0
        %2071 = vmatprep.subr.bf16.mxu0 0
        %2072 = vmatpush1.bf16.msra.mxu0 %v2060
        %2073 = vmatprep.subr.bf16.mxu0 0
        %2074 = vmatpush1.bf16.msra.mxu0 %v2062
        %2075 = vmatprep.subr.bf16.mxu0 0
        %2076 = vmatpush1.bf16.msra.mxu0 0
        %2077 = vmatprep.subr.bf16.mxu0 0
        %2078 = vmatpush1.bf16.msra.mxu0 0
        %2079 = vmatprep.subr.bf16.mxu0 0
        %2080 = vmatpush1.bf16.msra.mxu0 0
        %2081 = vmatprep.subr.bf16.mxu0 0
        %2082 = vmatpush1.bf16.msra.mxu0 0
        %2083 = vmatprep.subr.bf16.mxu0 0
        %2084 = vmatpush1.bf16.msra.mxu0 0
        %2085 = vmatprep.subr.bf16.mxu0 0
        %2086 = vmatpush1.bf16.msra.mxu0 0
        %2087 = vmatprep.subr.bf16.mxu0 0
        %2088 = vmatpush1.bf16.msra.mxu0 0
        %2089 = vmatprep.subr.bf16.mxu0 0
        %2090 = vmatpush1.bf16.msra.mxu0 0
        %2091 = vmatprep.subr.bf16.mxu0 0
        %2092 = vmatpush1.bf16.msra.mxu0 0
        %2093 = vmatprep.subr.bf16.mxu0 0
        %2094 = vmatpush1.bf16.msra.mxu0 0
        %2095 = vmatprep.subr.bf16.mxu0 0
        %2096 = vmatpush1.bf16.msra.mxu0 0
        %2097 = vmatprep.subr.bf16.mxu0 0
        %2098 = vmatpush1.bf16.msra.mxu0 0
        %2099 = vmatprep.subr.bf16.mxu0 0
        %2100 = vmatpush1.bf16.msra.mxu0 0
        %2101 = vmatprep.subr.bf16.mxu0 0
        %2102 = vmatpush1.bf16.msra.mxu0 0
        %2103 = vmatprep.mubr.bf16.mxu0 0
        %2104 = vmatmul.mubr.bf16.gmra.mrb[0].mxu0 %v2066
        %v2105 = vpop.f32.mrb[0].mxu0
        %v2106 = vadd.f32 0.0, %v2105
        %v2107 = vpop.f32.mrb[0].mxu0
        %v2108 = vpop.f32.mrb[0].mxu0
        %v2109 = vadd.f32 0.0, %v2108
        %v2110 = vpop.f32.mrb[0].mxu0
        %2111 = vmatprep.mubr.bf16.mxu0 0
        %2112 = vmatmul.mubr.bf16.gmra.mrb[0].mxu0 %v2069
        %v2113 = vpop.f32.mrb[0].mxu0
        %v2114 = vadd.f32 0.0, %v2113
        %v2115 = vpop.f32.mrb[0].mxu0
        %v2116 = vpop.f32.mrb[0].mxu0
        %v2117 = vadd.f32 0.0, %v2116
        %v2118 = vpop.f32.mrb[0].mxu0
        %2119 = vdwg.mxu0
        %v2120 = vpack.c.bf16 %v2048, %v2045
        %v2121 = vpack.c.bf16 %v2056, %v2053
        %v2122 = vpack.c.bf16 %v2109, %v2106
        %v2123 = vpack.c.bf16 %v2117, %v2114
        %2128 = vrot.lane.b32.xlu0 %v1392, 8
        %v2129 = vpop.permute.xlu0 %2128
        %2130 = vrot.lane.b32.xlu0 %v1393, 8
        %v2131 = vpop.permute.xlu0 %2130
        %2132 = vrot.lane.b32.xlu0 %v1394, 8
        %v2133 = vpop.permute.xlu0 %2132
        %2134 = vrot.lane.b32.xlu0 %v1395, 8
        %v2135 = vpop.permute.xlu0 %2134
        %2140 = vrot.lane.b32.xlu0 %v1756, 16
        %v2141 = vpop.permute.xlu0 %2140
        %2142 = vrot.lane.b32.xlu0 %v1757, 16
        %v2143 = vpop.permute.xlu0 %2142
        %2144 = vrot.lane.b32.xlu0 %v1758, 16
        %v2145 = vpop.permute.xlu0 %2144
        %2146 = vrot.lane.b32.xlu0 %v1759, 16
        %v2147 = vpop.permute.xlu0 %2146
        %2152 = vrot.lane.b32.xlu0 %v2120, 24
        %v2153 = vpop.permute.xlu0 %2152
        %2154 = vrot.lane.b32.xlu0 %v2121, 24
        %v2155 = vpop.permute.xlu0 %2154
        %2156 = vrot.lane.b32.xlu0 %v2122, 24
        %v2157 = vpop.permute.xlu0 %2156
        %2158 = vrot.lane.b32.xlu0 %v2123, 24
        %v2159 = vpop.permute.xlu0 %2158
        %v2162 = vsel %vm677, %v1028, %v2129
        %v2165 = vsel %vm677, %v1029, %v2131
        %v2168 = vsel %vm677, %v1030, %v2133
        %v2171 = vsel %vm677, %v1031, %v2135
        %vm2172 = vcmask 130048
        %v2174 = vsel %vm2172, %v2162, %v2141
        %v2176 = vsel %vm2172, %v2165, %v2143
        %v2178 = vsel %vm2172, %v2168, %v2145
        %v2180 = vsel %vm2172, %v2171, %v2147
        %vm2181 = vcmask 195584
        %v2183 = vsel %vm2181, %v2174, %v2153
        %v2185 = vsel %vm2181, %v2176, %v2155
        %v2187 = vsel %vm2181, %v2178, %v2157
        %v2189 = vsel %vm2181, %v2180, %v2159
        %v2190 = vld [vmem:[%s393] sm:$0xf]
        %v2191 = vld [vmem:[%s393 + $0x4] sm:$0xf]
        %v2192 = vld [vmem:[%s393 + $0x8] sm:$0xf]
        %v2193 = vld [vmem:[%s393 + $0xc] sm:$0xf]
        %v2198 = vunpack.c.l.b16 %v2190
        %v2199 = vunpack.c.l.b16 %v2191
        %v2200 = vunpack.c.l.b16 %v2192
        %v2201 = vunpack.c.l.b16 %v2193
        %v2202 = vpack.c.b16 %v2199, %v2198
        %v2203 = vpack.c.b16 %v2201, %v2200
        %v2206 = vsel %vm436, %v2183, 0
        %v2208 = vsel %vm436, %v2185, 0
        %v2210 = vsel %vm436, %v2187, 0
        %v2212 = vsel %vm436, %v2189, 0
        %2214 = vmatprep.subr.bf16.mxu0 0
        %2215 = vmatpush1.bf16.msra.mxu0 %v2202
        %2216 = vmatprep.subr.bf16.mxu0 0
        %2217 = vmatpush1.bf16.msra.mxu0 %v2203
        %2218 = vmatprep.subr.bf16.mxu0 0
        %2219 = vmatpush1.bf16.msra.mxu0 0
        %2220 = vmatprep.subr.bf16.mxu0 0
        %2221 = vmatpush1.bf16.msra.mxu0 0
        %2222 = vmatprep.subr.bf16.mxu0 0
        %2223 = vmatpush1.bf16.msra.mxu0 0
        %2224 = vmatprep.subr.bf16.mxu0 0
        %2225 = vmatpush1.bf16.msra.mxu0 0
        %2226 = vmatprep.subr.bf16.mxu0 0
        %2227 = vmatpush1.bf16.msra.mxu0 0
        %2228 = vmatprep.subr.bf16.mxu0 0
        %2229 = vmatpush1.bf16.msra.mxu0 0
        %2230 = vmatprep.subr.bf16.mxu0 0
        %2231 = vmatpush1.bf16.msra.mxu0 0
        %2232 = vmatprep.subr.bf16.mxu0 0
        %2233 = vmatpush1.bf16.msra.mxu0 0
        %2234 = vmatprep.subr.bf16.mxu0 0
        %2235 = vmatpush1.bf16.msra.mxu0 0
        %2236 = vmatprep.subr.bf16.mxu0 0
        %2237 = vmatpush1.bf16.msra.mxu0 0
        %2238 = vmatprep.subr.bf16.mxu0 0
        %2239 = vmatpush1.bf16.msra.mxu0 0
        %2240 = vmatprep.subr.bf16.mxu0 0
        %2241 = vmatpush1.bf16.msra.mxu0 0
        %2242 = vmatprep.subr.bf16.mxu0 0
        %2243 = vmatpush1.bf16.msra.mxu0 0
        %2244 = vmatprep.subr.bf16.mxu0 0
        %2245 = vmatpush1.bf16.msra.mxu0 0
        %2246 = vmatprep.mubr.bf16.mxu0 0
        %2247 = vmatmul.mubr.bf16.gmra.mrb[0].mxu0 %v2206
        %v2248 = vpop.f32.mrb[0].mxu0
        %v2249 = vadd.f32 0.0, %v2248
        %v2250 = vpop.f32.mrb[0].mxu0
        %v2251 = vpop.f32.mrb[0].mxu0
        %v2252 = vadd.f32 0.0, %v2251
        %v2253 = vpop.f32.mrb[0].mxu0
        %2254 = vmatprep.mubr.bf16.mxu0 0
        %2255 = vmatmul.mubr.bf16.gmra.mrb[0].mxu0 %v2208
        %v2256 = vpop.f32.mrb[0].mxu0
        %v2257 = vadd.f32 0.0, %v2256
        %v2258 = vpop.f32.mrb[0].mxu0
        %v2259 = vpop.f32.mrb[0].mxu0
        %v2260 = vadd.f32 0.0, %v2259
        %v2261 = vpop.f32.mrb[0].mxu0
        %2262 = vmatprep.mubr.bf16.mxu0 0
        %2263 = vmatmul.mubr.bf16.gmra.mrb[0].mxu0 %v2210
        %v2264 = vpop.f32.mrb[0].mxu0
        %v2265 = vadd.f32 0.0, %v2264
        %v2266 = vpop.f32.mrb[0].mxu0
        %v2267 = vpop.f32.mrb[0].mxu0
        %v2268 = vadd.f32 0.0, %v2267
        %v2269 = vpop.f32.mrb[0].mxu0
        %2270 = vmatprep.mubr.bf16.mxu0 0
        %2271 = vmatmul.mubr.bf16.gmra.mrb[0].mxu0 %v2212
        %v2272 = vpop.f32.mrb[0].mxu0
        %v2273 = vadd.f32 0.0, %v2272
        %v2274 = vpop.f32.mrb[0].mxu0
        %v2275 = vpop.f32.mrb[0].mxu0
        %v2276 = vadd.f32 0.0, %v2275
        %v2277 = vpop.f32.mrb[0].mxu0
        %2278 = vdwg.mxu0
        %v2279 = vadd.f32 %v427, %v2249
        %v2280 = vadd.f32 %v428, %v2252
        %v2281 = vadd.f32 %v429, %v2257
        %v2282 = vadd.f32 %v430, %v2260
        %v2283 = vadd.f32 %v431, %v2265
        %v2284 = vadd.f32 %v432, %v2268
        %v2285 = vadd.f32 %v433, %v2273
        %v2286 = vadd.f32 %v434, %v2276
        %v2287 = vlaneseq
        %v2288 = vshrl.u32 %v2287, 7
        %v2289 = vsub.s32 3, %v2288
        %v2290 = vrot.slane %v435, %v2289
        %v2291 = vadd.f32 %v2279, %v2290
        %v2292 = vadd.f32 %v2280, %v2290
        %v2293 = vadd.f32 %v2281, %v2290
        %v2294 = vadd.f32 %v2282, %v2290
        %v2295 = vadd.f32 %v2283, %v2290
        %v2296 = vadd.f32 %v2284, %v2290
        %v2297 = vadd.f32 %v2285, %v2290
        %v2298 = vadd.f32 %v2286, %v2290
        %v2299 = vsel %vm436, %v2291, 0.0
        %2300 = vadd.xlane.f32.xlu0 %v2299
        %v2301 = vpop.xlane.xlu0 %2300
        %v2302 = vsel %vm436, %v2292, 0.0
        %2303 = vadd.xlane.f32.xlu0 %v2302
        %v2304 = vpop.xlane.xlu0 %2303
        %v2305 = vsel %vm436, %v2293, 0.0
        %2306 = vadd.xlane.f32.xlu0 %v2305
        %v2307 = vpop.xlane.xlu0 %2306
        %v2308 = vsel %vm436, %v2294, 0.0
        %2309 = vadd.xlane.f32.xlu0 %v2308
        %v2310 = vpop.xlane.xlu0 %2309
        %v2311 = vsel %vm436, %v2295, 0.0
        %2312 = vadd.xlane.f32.xlu0 %v2311
        %v2313 = vpop.xlane.xlu0 %2312
        %v2314 = vsel %vm436, %v2296, 0.0
        %2315 = vadd.xlane.f32.xlu0 %v2314
        %v2316 = vpop.xlane.xlu0 %2315
        %v2317 = vsel %vm436, %v2297, 0.0
        %2318 = vadd.xlane.f32.xlu0 %v2317
        %v2319 = vpop.xlane.xlu0 %2318
        %v2320 = vsel %vm436, %v2298, 0.0
        %2321 = vadd.xlane.f32.xlu0 %v2320
        %v2322 = vpop.xlane.xlu0 %2321
        %v2323 = vmul.f32 %v2301, %v461
        %v2324 = vmul.f32 %v2304, %v461
        %v2325 = vmul.f32 %v2307, %v461
        %v2326 = vmul.f32 %v2310, %v461
        %v2327 = vmul.f32 %v2313, %v461
        %v2328 = vmul.f32 %v2316, %v461
        %v2329 = vmul.f32 %v2319, %v461
        %v2330 = vmul.f32 %v2322, %v461
        %v2331 = vsub.f32 %v2291, %v2323
        %v2332 = vsub.f32 %v2292, %v2324
        %v2333 = vsub.f32 %v2293, %v2325
        %v2334 = vsub.f32 %v2294, %v2326
        %v2335 = vsub.f32 %v2295, %v2327
        %v2336 = vsub.f32 %v2296, %v2328
        %v2337 = vsub.f32 %v2297, %v2329
        %v2338 = vsub.f32 %v2298, %v2330
        %v2339 = vmul.f32 %v2331, %v2331
        %v2340 = vmul.f32 %v2332, %v2332
        %v2341 = vmul.f32 %v2333, %v2333
        %v2342 = vmul.f32 %v2334, %v2334
        %v2343 = vmul.f32 %v2335, %v2335
        %v2344 = vmul.f32 %v2336, %v2336
        %v2345 = vmul.f32 %v2337, %v2337
        %v2346 = vmul.f32 %v2338, %v2338
        %v2347 = vsel %vm436, %v2339, 0.0
        %2348 = vadd.xlane.f32.xlu0 %v2347
        %v2349 = vpop.xlane.xlu0 %2348
        %v2350 = vsel %vm436, %v2340, 0.0
        %2351 = vadd.xlane.f32.xlu0 %v2350
        %v2352 = vpop.xlane.xlu0 %2351
        %v2353 = vsel %vm436, %v2341, 0.0
        %2354 = vadd.xlane.f32.xlu0 %v2353
        %v2355 = vpop.xlane.xlu0 %2354
        %v2356 = vsel %vm436, %v2342, 0.0
        %2357 = vadd.xlane.f32.xlu0 %v2356
        %v2358 = vpop.xlane.xlu0 %2357
        %v2359 = vsel %vm436, %v2343, 0.0
        %2360 = vadd.xlane.f32.xlu0 %v2359
        %v2361 = vpop.xlane.xlu0 %2360
        %v2362 = vsel %vm436, %v2344, 0.0
        %2363 = vadd.xlane.f32.xlu0 %v2362
        %v2364 = vpop.xlane.xlu0 %2363
        %v2365 = vsel %vm436, %v2345, 0.0
        %2366 = vadd.xlane.f32.xlu0 %v2365
        %v2367 = vpop.xlane.xlu0 %2366
        %v2368 = vsel %vm436, %v2346, 0.0
        %2369 = vadd.xlane.f32.xlu0 %v2368
        %v2370 = vpop.xlane.xlu0 %2369
        %v2371 = vmul.f32 %v2349, %v461
        %v2372 = vmul.f32 %v2352, %v461
        %v2373 = vmul.f32 %v2355, %v461
        %v2374 = vmul.f32 %v2358, %v461
        %v2375 = vmul.f32 %v2361, %v461
        %v2376 = vmul.f32 %v2364, %v461
        %v2377 = vmul.f32 %v2367, %v461
        %v2378 = vmul.f32 %v2370, %v461
        %v2379 = vadd.f32 %v2371, 1e-05
        %v2380 = vadd.f32 %v2372, 1e-05
        %v2381 = vadd.f32 %v2373, 1e-05
        %v2382 = vadd.f32 %v2374, 1e-05
        %v2383 = vadd.f32 %v2375, 1e-05
        %v2384 = vadd.f32 %v2376, 1e-05
        %v2385 = vadd.f32 %v2377, 1e-05
        %v2386 = vadd.f32 %v2378, 1e-05
        %v2387 = vrsqrt.pop %v2379
        %v2388 = vrsqrt.pop %v2380
        %v2389 = vrsqrt.pop %v2381
        %v2390 = vrsqrt.pop %v2382
        %v2391 = vrsqrt.pop %v2383
        %v2392 = vrsqrt.pop %v2384
        %v2393 = vrsqrt.pop %v2385
        %v2394 = vrsqrt.pop %v2386
        %v2395 = vmul.f32 %v2331, %v2387
        %v2396 = vmul.f32 %v2332, %v2388
        %v2397 = vmul.f32 %v2333, %v2389
        %v2398 = vmul.f32 %v2334, %v2390
        %v2399 = vmul.f32 %v2335, %v2391
        %v2400 = vmul.f32 %v2336, %v2392
        %v2401 = vmul.f32 %v2337, %v2393
        %v2402 = vmul.f32 %v2338, %v2394
        %v2403 = vlaneseq
        %v2404 = vshrl.u32 %v2403, 7
        %v2405 = vsub.s32 4, %v2404
        %v2406 = vrot.slane %v435, %v2405
        %v2407 = vmul.f32 %v2395, %v2406
        %v2408 = vmul.f32 %v2396, %v2406
        %v2409 = vmul.f32 %v2397, %v2406
        %v2410 = vmul.f32 %v2398, %v2406
        %v2411 = vmul.f32 %v2399, %v2406
        %v2412 = vmul.f32 %v2400, %v2406
        %v2413 = vmul.f32 %v2401, %v2406
        %v2414 = vmul.f32 %v2402, %v2406
        %v2415 = vlaneseq
        %v2416 = vshrl.u32 %v2415, 7
        %v2417 = vsub.s32 5, %v2416
        %v2418 = vrot.slane %v435, %v2417
        %v2419 = vadd.f32 %v2407, %v2418
        %v2420 = vadd.f32 %v2408, %v2418
        %v2421 = vadd.f32 %v2409, %v2418
        %v2422 = vadd.f32 %v2410, %v2418
        %v2423 = vadd.f32 %v2411, %v2418
        %v2424 = vadd.f32 %v2412, %v2418
        %v2425 = vadd.f32 %v2413, %v2418
        %v2426 = vadd.f32 %v2414, %v2418
        %v2427 = vpack.c.bf16 %v2420, %v2419
        %v2428 = vpack.c.bf16 %v2422, %v2421
        %v2429 = vpack.c.bf16 %v2424, %v2423
        %v2430 = vpack.c.bf16 %v2426, %v2425
        %v2431 = vld [vmem:[%s398] sm:$0xf]
        %v2432 = vld [vmem:[%s398 + $0x4] sm:$0xf]
        %v2433 = vld [vmem:[%s398 + $0x8] sm:$0xf]
        %v2434 = vld [vmem:[%s398 + $0xc] sm:$0xf]
        %v2435 = vlaneseq
        %v2436 = vshrl.u32 %v2435, 7
        %v2437 = vsub.s32 6, %v2436
        %v2438 = vrot.slane %v435, %v2437
        %v2443 = vunpack.c.l.b16 %v2431
        %v2444 = vunpack.c.l.b16 %v2432
        %v2445 = vunpack.c.l.b16 %v2433
        %v2446 = vunpack.c.l.b16 %v2434
        %v2447 = vpack.c.b16 %v2444, %v2443
        %v2448 = vpack.c.b16 %v2446, %v2445
        %v2452 = vsel %vm436, %v2427, 0
        %v2455 = vsel %vm436, %v2428, 0
        %v2458 = vsel %vm436, %v2429, 0
        %v2461 = vsel %vm436, %v2430, 0
        %2463 = vmatprep.subr.bf16.mxu0 0
        %2464 = vmatpush1.bf16.msra.mxu0 %v2447
        %2465 = vmatprep.subr.bf16.mxu0 0
        %2466 = vmatpush1.bf16.msra.mxu0 %v2448
        %2467 = vmatprep.subr.bf16.mxu0 0
        %2468 = vmatpush1.bf16.msra.mxu0 0
        %2469 = vmatprep.subr.bf16.mxu0 0
        %2470 = vmatpush1.bf16.msra.mxu0 0
        %2471 = vmatprep.subr.bf16.mxu0 0
        %2472 = vmatpush1.bf16.msra.mxu0 0
        %2473 = vmatprep.subr.bf16.mxu0 0
        %2474 = vmatpush1.bf16.msra.mxu0 0
        %2475 = vmatprep.subr.bf16.mxu0 0
        %2476 = vmatpush1.bf16.msra.mxu0 0
        %2477 = vmatprep.subr.bf16.mxu0 0
        %2478 = vmatpush1.bf16.msra.mxu0 0
        %2479 = vmatprep.subr.bf16.mxu0 0
        %2480 = vmatpush1.bf16.msra.mxu0 0
        %2481 = vmatprep.subr.bf16.mxu0 0
        %2482 = vmatpush1.bf16.msra.mxu0 0
        %2483 = vmatprep.subr.bf16.mxu0 0
        %2484 = vmatpush1.bf16.msra.mxu0 0
        %2485 = vmatprep.subr.bf16.mxu0 0
        %2486 = vmatpush1.bf16.msra.mxu0 0
        %2487 = vmatprep.subr.bf16.mxu0 0
        %2488 = vmatpush1.bf16.msra.mxu0 0
        %2489 = vmatprep.subr.bf16.mxu0 0
        %2490 = vmatpush1.bf16.msra.mxu0 0
        %2491 = vmatprep.subr.bf16.mxu0 0
        %2492 = vmatpush1.bf16.msra.mxu0 0
        %2493 = vmatprep.subr.bf16.mxu0 0
        %2494 = vmatpush1.bf16.msra.mxu0 0
        %2495 = vmatprep.mubr.bf16.mxu0 0
        %2496 = vmatmul.mubr.bf16.gmra.mrb[0].mxu0 %v2452
        %v2497 = vpop.f32.mrb[0].mxu0
        %v2498 = vadd.f32 %v2438, %v2497
        %v2499 = vpop.f32.mrb[0].mxu0
        %v2500 = vpop.f32.mrb[0].mxu0
        %v2501 = vadd.f32 %v2438, %v2500
        %v2502 = vpop.f32.mrb[0].mxu0
        %2503 = vmatprep.mubr.bf16.mxu0 0
        %2504 = vmatmul.mubr.bf16.gmra.mrb[0].mxu0 %v2455
        %v2505 = vpop.f32.mrb[0].mxu0
        %v2506 = vadd.f32 %v2438, %v2505
        %v2507 = vpop.f32.mrb[0].mxu0
        %v2508 = vpop.f32.mrb[0].mxu0
        %v2509 = vadd.f32 %v2438, %v2508
        %v2510 = vpop.f32.mrb[0].mxu0
        %2511 = vmatprep.mubr.bf16.mxu0 0
        %2512 = vmatmul.mubr.bf16.gmra.mrb[0].mxu0 %v2458
        %v2513 = vpop.f32.mrb[0].mxu0
        %v2514 = vadd.f32 %v2438, %v2513
        %v2515 = vpop.f32.mrb[0].mxu0
        %v2516 = vpop.f32.mrb[0].mxu0
        %v2517 = vadd.f32 %v2438, %v2516
        %v2518 = vpop.f32.mrb[0].mxu0
        %2519 = vmatprep.mubr.bf16.mxu0 0
        %2520 = vmatmul.mubr.bf16.gmra.mrb[0].mxu0 %v2461
        %v2521 = vpop.f32.mrb[0].mxu0
        %v2522 = vadd.f32 %v2438, %v2521
        %v2523 = vpop.f32.mrb[0].mxu0
        %v2524 = vpop.f32.mrb[0].mxu0
        %v2525 = vadd.f32 %v2438, %v2524
        %v2526 = vpop.f32.mrb[0].mxu0
        %2527 = vdwg.mxu0
        %v2528 = vmax.f32 %v2498, 0.0
        %v2529 = vmax.f32 %v2501, 0.0
        %v2530 = vmax.f32 %v2506, 0.0
        %v2531 = vmax.f32 %v2509, 0.0
        %v2532 = vmax.f32 %v2514, 0.0
        %v2533 = vmax.f32 %v2517, 0.0
        %v2534 = vmax.f32 %v2522, 0.0
        %v2535 = vmax.f32 %v2525, 0.0
        %v2536 = vpack.c.bf16 %v2529, %v2528
        %v2537 = vpack.c.bf16 %v2531, %v2530
        %v2538 = vpack.c.bf16 %v2533, %v2532
        %v2539 = vpack.c.bf16 %v2535, %v2534
        %v2540 = vld [vmem:[%s403] sm:$0xf]
        %v2541 = vld [vmem:[%s403 + $0x4] sm:$0xf]
        %v2542 = vld [vmem:[%s403 + $0x8] sm:$0xf]
        %v2543 = vld [vmem:[%s403 + $0xc] sm:$0xf]
        %v2544 = vld [vmem:[%s403 + $0x10] sm:$0xf]
        %v2545 = vld [vmem:[%s403 + $0x14] sm:$0xf]
        %v2546 = vld [vmem:[%s403 + $0x18] sm:$0xf]
        %v2547 = vld [vmem:[%s403 + $0x1c] sm:$0xf]
        %v2548 = vld [vmem:[%s403 + $0x20] sm:$0xf]
        %v2549 = vld [vmem:[%s403 + $0x24] sm:$0xf]
        %v2550 = vld [vmem:[%s403 + $0x28] sm:$0xf]
        %v2551 = vld [vmem:[%s403 + $0x2c] sm:$0xf]
        %v2552 = vld [vmem:[%s403 + $0x30] sm:$0xf]
        %v2553 = vld [vmem:[%s403 + $0x34] sm:$0xf]
        %v2554 = vld [vmem:[%s403 + $0x38] sm:$0xf]
        %v2555 = vld [vmem:[%s403 + $0x3c] sm:$0xf]
        %v2556 = vlaneseq
        %v2557 = vshrl.u32 %v2556, 7
        %v2558 = vsub.s32 7, %v2557
        %v2559 = vrot.slane %v435, %v2558
        %v2576 = vunpack.c.l.b16 %v2540
        %v2577 = vunpack.c.l.b16 %v2541
        %v2578 = vunpack.c.l.b16 %v2542
        %v2579 = vunpack.c.l.b16 %v2543
        %v2580 = vunpack.c.l.b16 %v2544
        %v2581 = vunpack.c.l.b16 %v2545
        %v2582 = vunpack.c.l.b16 %v2546
        %v2583 = vunpack.c.l.b16 %v2547
        %v2584 = vunpack.c.l.b16 %v2548
        %v2585 = vunpack.c.l.b16 %v2549
        %v2586 = vunpack.c.l.b16 %v2550
        %v2587 = vunpack.c.l.b16 %v2551
        %v2588 = vunpack.c.l.b16 %v2552
        %v2589 = vunpack.c.l.b16 %v2553
        %v2590 = vunpack.c.l.b16 %v2554
        %v2591 = vunpack.c.l.b16 %v2555
        %v2592 = vpack.c.b16 %v2577, %v2576
        %v2593 = vpack.c.b16 %v2579, %v2578
        %v2594 = vpack.c.b16 %v2581, %v2580
        %v2595 = vpack.c.b16 %v2583, %v2582
        %v2596 = vpack.c.b16 %v2585, %v2584
        %v2597 = vpack.c.b16 %v2587, %v2586
        %v2598 = vpack.c.b16 %v2589, %v2588
        %v2599 = vpack.c.b16 %v2591, %v2590
        %2608 = vmatprep.subr.bf16.mxu0 0
        %2609 = vmatpush1.bf16.msra.mxu0 %v2592
        %2610 = vmatprep.subr.bf16.mxu0 0
        %2611 = vmatpush1.bf16.msra.mxu0 %v2593
        %2612 = vmatprep.subr.bf16.mxu0 0
        %2613 = vmatpush1.bf16.msra.mxu0 %v2594
        %2614 = vmatprep.subr.bf16.mxu0 0
        %2615 = vmatpush1.bf16.msra.mxu0 %v2595
        %2616 = vmatprep.subr.bf16.mxu0 0
        %2617 = vmatpush1.bf16.msra.mxu0 %v2596
        %2618 = vmatprep.subr.bf16.mxu0 0
        %2619 = vmatpush1.bf16.msra.mxu0 %v2597
        %2620 = vmatprep.subr.bf16.mxu0 0
        %2621 = vmatpush1.bf16.msra.mxu0 %v2598
        %2622 = vmatprep.subr.bf16.mxu0 0
        %2623 = vmatpush1.bf16.msra.mxu0 %v2599
        %2624 = vmatprep.subr.bf16.mxu0 0
        %2625 = vmatpush1.bf16.msra.mxu0 0
        %2626 = vmatprep.subr.bf16.mxu0 0
        %2627 = vmatpush1.bf16.msra.mxu0 0
        %2628 = vmatprep.subr.bf16.mxu0 0
        %2629 = vmatpush1.bf16.msra.mxu0 0
        %2630 = vmatprep.subr.bf16.mxu0 0
        %2631 = vmatpush1.bf16.msra.mxu0 0
        %2632 = vmatprep.subr.bf16.mxu0 0
        %2633 = vmatpush1.bf16.msra.mxu0 0
        %2634 = vmatprep.subr.bf16.mxu0 0
        %2635 = vmatpush1.bf16.msra.mxu0 0
        %2636 = vmatprep.subr.bf16.mxu0 0
        %2637 = vmatpush1.bf16.msra.mxu0 0
        %2638 = vmatprep.subr.bf16.mxu0 0
        %2639 = vmatpush1.bf16.msra.mxu0 0
        %2640 = vmatprep.mubr.bf16.mxu0 0
        %2641 = vmatmul.mubr.bf16.gmra.mrb[0].mxu0 %v2536
        %v2642 = vpop.f32.mrb[0].mxu0
        %v2643 = vadd.f32 %v2559, %v2642
        %v2644 = vpop.f32.mrb[0].mxu0
        %v2645 = vpop.f32.mrb[0].mxu0
        %v2646 = vadd.f32 %v2559, %v2645
        %v2647 = vpop.f32.mrb[0].mxu0
        %2648 = vmatprep.mubr.bf16.mxu0 0
        %2649 = vmatmul.mubr.bf16.gmra.mrb[0].mxu0 %v2537
        %v2650 = vpop.f32.mrb[0].mxu0
        %v2651 = vadd.f32 %v2559, %v2650
        %v2652 = vpop.f32.mrb[0].mxu0
        %v2653 = vpop.f32.mrb[0].mxu0
        %v2654 = vadd.f32 %v2559, %v2653
        %v2655 = vpop.f32.mrb[0].mxu0
        %2656 = vmatprep.mubr.bf16.mxu0 0
        %2657 = vmatmul.mubr.bf16.gmra.mrb[0].mxu0 %v2538
        %v2658 = vpop.f32.mrb[0].mxu0
        %v2659 = vadd.f32 %v2559, %v2658
        %v2660 = vpop.f32.mrb[0].mxu0
        %v2661 = vpop.f32.mrb[0].mxu0
        %v2662 = vadd.f32 %v2559, %v2661
        %v2663 = vpop.f32.mrb[0].mxu0
        %2664 = vmatprep.mubr.bf16.mxu0 0
        %2665 = vmatmul.mubr.bf16.gmra.mrb[0].mxu0 %v2539
        %v2666 = vpop.f32.mrb[0].mxu0
        %v2667 = vadd.f32 %v2559, %v2666
        %v2668 = vpop.f32.mrb[0].mxu0
        %v2669 = vpop.f32.mrb[0].mxu0
        %v2670 = vadd.f32 %v2559, %v2669
        %v2671 = vpop.f32.mrb[0].mxu0
        %2672 = vdwg.mxu0
        %v2673 = vadd.f32 %v2291, %v2643
        %v2674 = vadd.f32 %v2292, %v2646
        %v2675 = vadd.f32 %v2293, %v2651
        %v2676 = vadd.f32 %v2294, %v2654
        %v2677 = vadd.f32 %v2295, %v2659
        %v2678 = vadd.f32 %v2296, %v2662
        %v2679 = vadd.f32 %v2297, %v2667
        %v2680 = vadd.f32 %v2298, %v2670
        %2681 = vst.msk [vmem:[#allocation2] sm:$0xff] %vm436, %v2673
        %2682 = vst.msk [vmem:[#allocation2 + $0x8] sm:$0xff] %vm436, %v2674
        %2683 = vst.msk [vmem:[#allocation2 + $0x10] sm:$0xff] %vm436, %v2675
        %2684 = vst.msk [vmem:[#allocation2 + $0x18] sm:$0xff] %vm436, %v2676
        %2685 = vst.msk [vmem:[#allocation2 + $0x20] sm:$0xff] %vm436, %v2677
        %2686 = vst.msk [vmem:[#allocation2 + $0x28] sm:$0xff] %vm436, %v2678
        %2687 = vst.msk [vmem:[#allocation2 + $0x30] sm:$0xff] %vm436, %v2679
        %2688 = vst.msk [vmem:[#allocation2 + $0x38] sm:$0xff] %vm436, %v2680
        %p2689 = scmp.eq.s32.totalorder %s27, 1
        // Predicated region
        $region57: #{tpu_custom_call.1} parent=47 // pred_check
          %p2690 = pneg %p2689
        $region58: #{tpu_custom_call.1} parent=47 // pred_check_branch
          %2692 = sbr.rel (%p2690) target = $region60
        $region59: #{tpu_custom_call.1} parent=47 // pred_region
          %v2693 = vld [vmem:[%s6] sm:$0x3]
          %v2694 = vsel %vm436, %v2673, 0.0
          %2695 = vadd.xlane.f32.xlu0 %v2694
          %v2696 = vpop.xlane.xlu0 %2695
          %v2697 = vsel %vm436, %v2674, 0.0
          %2698 = vadd.xlane.f32.xlu0 %v2697
          %v2699 = vpop.xlane.xlu0 %2698
          %v2700 = vsel %vm436, %v2675, 0.0
          %2701 = vadd.xlane.f32.xlu0 %v2700
          %v2702 = vpop.xlane.xlu0 %2701
          %v2703 = vsel %vm436, %v2676, 0.0
          %2704 = vadd.xlane.f32.xlu0 %v2703
          %v2705 = vpop.xlane.xlu0 %2704
          %v2706 = vsel %vm436, %v2677, 0.0
          %2707 = vadd.xlane.f32.xlu0 %v2706
          %v2708 = vpop.xlane.xlu0 %2707
          %v2709 = vsel %vm436, %v2678, 0.0
          %2710 = vadd.xlane.f32.xlu0 %v2709
          %v2711 = vpop.xlane.xlu0 %2710
          %v2712 = vsel %vm436, %v2679, 0.0
          %2713 = vadd.xlane.f32.xlu0 %v2712
          %v2714 = vpop.xlane.xlu0 %2713
          %v2715 = vsel %vm436, %v2680, 0.0
          %2716 = vadd.xlane.f32.xlu0 %v2715
          %v2717 = vpop.xlane.xlu0 %2716
          %v2718 = vmul.f32 %v2696, %v461
          %v2719 = vmul.f32 %v2699, %v461
          %v2720 = vmul.f32 %v2702, %v461
          %v2721 = vmul.f32 %v2705, %v461
          %v2722 = vmul.f32 %v2708, %v461
          %v2723 = vmul.f32 %v2711, %v461
          %v2724 = vmul.f32 %v2714, %v461
          %v2725 = vmul.f32 %v2717, %v461
          %v2726 = vsub.f32 %v2673, %v2718
          %v2727 = vsub.f32 %v2674, %v2719
          %v2728 = vsub.f32 %v2675, %v2720
          %v2729 = vsub.f32 %v2676, %v2721
          %v2730 = vsub.f32 %v2677, %v2722
          %v2731 = vsub.f32 %v2678, %v2723
          %v2732 = vsub.f32 %v2679, %v2724
          %v2733 = vsub.f32 %v2680, %v2725
          %v2734 = vmul.f32 %v2726, %v2726
          %v2735 = vmul.f32 %v2727, %v2727
          %v2736 = vmul.f32 %v2728, %v2728
          %v2737 = vmul.f32 %v2729, %v2729
          %v2738 = vmul.f32 %v2730, %v2730
          %v2739 = vmul.f32 %v2731, %v2731
          %v2740 = vmul.f32 %v2732, %v2732
          %v2741 = vmul.f32 %v2733, %v2733
          %v2742 = vsel %vm436, %v2734, 0.0
          %2743 = vadd.xlane.f32.xlu0 %v2742
          %v2744 = vpop.xlane.xlu0 %2743
          %v2745 = vsel %vm436, %v2735, 0.0
          %2746 = vadd.xlane.f32.xlu0 %v2745
          %v2747 = vpop.xlane.xlu0 %2746
          %v2748 = vsel %vm436, %v2736, 0.0
          %2749 = vadd.xlane.f32.xlu0 %v2748
          %v2750 = vpop.xlane.xlu0 %2749
          %v2751 = vsel %vm436, %v2737, 0.0
          %2752 = vadd.xlane.f32.xlu0 %v2751
          %v2753 = vpop.xlane.xlu0 %2752
          %v2754 = vsel %vm436, %v2738, 0.0
          %2755 = vadd.xlane.f32.xlu0 %v2754
          %v2756 = vpop.xlane.xlu0 %2755
          %v2757 = vsel %vm436, %v2739, 0.0
          %2758 = vadd.xlane.f32.xlu0 %v2757
          %v2759 = vpop.xlane.xlu0 %2758
          %v2760 = vsel %vm436, %v2740, 0.0
          %2761 = vadd.xlane.f32.xlu0 %v2760
          %v2762 = vpop.xlane.xlu0 %2761
          %v2763 = vsel %vm436, %v2741, 0.0
          %2764 = vadd.xlane.f32.xlu0 %v2763
          %v2765 = vpop.xlane.xlu0 %2764
          %v2766 = vmul.f32 %v2744, %v461
          %v2767 = vmul.f32 %v2747, %v461
          %v2768 = vmul.f32 %v2750, %v461
          %v2769 = vmul.f32 %v2753, %v461
          %v2770 = vmul.f32 %v2756, %v461
          %v2771 = vmul.f32 %v2759, %v461
          %v2772 = vmul.f32 %v2762, %v461
          %v2773 = vmul.f32 %v2765, %v461
          %v2774 = vadd.f32 %v2766, 1e-05
          %v2775 = vadd.f32 %v2767, 1e-05
          %v2776 = vadd.f32 %v2768, 1e-05
          %v2777 = vadd.f32 %v2769, 1e-05
          %v2778 = vadd.f32 %v2770, 1e-05
          %v2779 = vadd.f32 %v2771, 1e-05
          %v2780 = vadd.f32 %v2772, 1e-05
          %v2781 = vadd.f32 %v2773, 1e-05
          %v2782 = vrsqrt.pop %v2774
          %v2783 = vrsqrt.pop %v2775
          %v2784 = vrsqrt.pop %v2776
          %v2785 = vrsqrt.pop %v2777
          %v2786 = vrsqrt.pop %v2778
          %v2787 = vrsqrt.pop %v2779
          %v2788 = vrsqrt.pop %v2780
          %v2789 = vrsqrt.pop %v2781
          %v2790 = vmul.f32 %v2726, %v2782
          %v2791 = vmul.f32 %v2727, %v2783
          %v2792 = vmul.f32 %v2728, %v2784
          %v2793 = vmul.f32 %v2729, %v2785
          %v2794 = vmul.f32 %v2730, %v2786
          %v2795 = vmul.f32 %v2731, %v2787
          %v2796 = vmul.f32 %v2732, %v2788
          %v2797 = vmul.f32 %v2733, %v2789
          %v2798 = vlaneseq
          %v2799 = vshrl.u32 %v2798, 7
          %v2800 = vsub.s32 0, %v2799
          %v2801 = vrot.slane %v2693, %v2800
          %v2802 = vmul.f32 %v2790, %v2801
          %v2803 = vmul.f32 %v2791, %v2801
          %v2804 = vmul.f32 %v2792, %v2801
          %v2805 = vmul.f32 %v2793, %v2801
          %v2806 = vmul.f32 %v2794, %v2801
          %v2807 = vmul.f32 %v2795, %v2801
          %v2808 = vmul.f32 %v2796, %v2801
          %v2809 = vmul.f32 %v2797, %v2801
          %v2810 = vlaneseq
          %v2811 = vshrl.u32 %v2810, 7
          %v2812 = vsub.s32 1, %v2811
          %v2813 = vrot.slane %v2693, %v2812
          %v2814 = vadd.f32 %v2802, %v2813
          %v2815 = vadd.f32 %v2803, %v2813
          %v2816 = vadd.f32 %v2804, %v2813
          %v2817 = vadd.f32 %v2805, %v2813
          %v2818 = vadd.f32 %v2806, %v2813
          %v2819 = vadd.f32 %v2807, %v2813
          %v2820 = vadd.f32 %v2808, %v2813
          %v2821 = vadd.f32 %v2809, %v2813
          %2822 = vst.msk [vmem:[#allocation6] sm:$0xff] %vm436, %v2814
          %2823 = vst.msk [vmem:[#allocation6 + $0x8] sm:$0xff] %vm436, %v2815
          %2824 = vst.msk [vmem:[#allocation6 + $0x10] sm:$0xff] %vm436, %v2816
          %2825 = vst.msk [vmem:[#allocation6 + $0x18] sm:$0xff] %vm436, %v2817
          %2826 = vst.msk [vmem:[#allocation6 + $0x20] sm:$0xff] %vm436, %v2818
          %2827 = vst.msk [vmem:[#allocation6 + $0x28] sm:$0xff] %vm436, %v2819
          %2828 = vst.msk [vmem:[#allocation6 + $0x30] sm:$0xff] %vm436, %v2820
          %2829 = vst.msk [vmem:[#allocation6 + $0x38] sm:$0xff] %vm436, %v2821
        $region60: #{tpu_custom_call.1} parent=47 // pred_fallthru
          _
        // Predicated region
        $region61: #{tpu_custom_call.1} parent=47 // pred_check
          %p2830 = pneg %p229
        $region62: #{tpu_custom_call.1} parent=47 // pred_check_branch
          %2832 = sbr.rel (%p2830) target = $region64
        $region63: #{tpu_custom_call.1} parent=47 // pred_region
          %s2833 = smul.u32 2, %s26
          %s2835 = ssub.s32 1024, 1024
          %2836 = vsyncadd [#allocation5], %s2835
          %s2837 = smul.addr %s2833, 4
          %s2838 = smul.addr %s2837, 128
          %s2839 = scalar_lea.hbm %s7, %s2838
          %s2840 = sshll.u32 [#allocation6], 4
          %s2841 = int_to_ptr.vmem [resolvable:$true] %s2840
          %2846 = dma.vmem_to_hbm [thread:$0]  %s2841, 1024, %s2839, [#allocation5], 128, 128, 8
        $region64: #{tpu_custom_call.1} parent=47 // pred_fallthru
          _
        // Predicated region
        $region65: #{tpu_custom_call.1} parent=47 // pred_check
          %p2847 = pneg %p229
        $region66: #{tpu_custom_call.1} parent=47 // pred_check_branch
          %2849 = sbr.rel (%p2847) target = $region68
        $region67: #{tpu_custom_call.1} parent=47 // pred_region
          %2850 = dma.done [#allocation5], 1024
        $region68: #{tpu_custom_call.1} parent=47 // pred_fallthru
          _
      $region48: #{tpu_custom_call.1} parent=5 // pred_fallthru
        _
      %p2851 = scmp.le.s32.totalorder 2, %s17
      // Predicated region
      $region69: #{tpu_custom_call.1} parent=5 // pred_check
        %p2852 = pneg %p2851
      $region70: #{tpu_custom_call.1} parent=5 // pred_check_branch
        %2854 = sbr.rel (%p2852) target = $region72
      $region71: #{tpu_custom_call.1} parent=5 // pred_region
        %s2855 = ssub.s32 %s17, 2
      $region72: #{tpu_custom_call.1} parent=5 // pred_fallthru
        _
    $region6: #{tpu_custom_call.1} parent=1 // loop_footer
      %s21 = sadd.s32 1, %s17
    $region7: #{tpu_custom_call.1} parent=1 // loop_footer_branch
      %16 = sbr.rel target = $region3
    $region8: #{tpu_custom_call.1} parent=1 // loop_exit
      _
    %2856 = vsyncpa [#allocation4], 1
    %s2857 = scalar_lea.sflag [#allocation4], 1
    %2858 = vsyncpa %s2857, 1
    %2859 = vsyncpa [#allocation5], 1
    %s2860 = scalar_lea.sflag [#allocation5], 1
    %2861 = vsyncpa %s2860, 1

</llo_original>
